<compile_context>
chip_gen: v5e
topology: v5e:2x2
jax: 0.10.0
libtpu: 0.0.40
codegen_flags: <defaults>
</compile_context>

<pallas_src>
import functools

import jax
import jax.numpy as jnp
from jax.experimental import pallas as pl
from jax.experimental.pallas import tpu as pltpu


X_DIM, H_DIM, Z_DIM, CONV_DIM = 784, 400, 20, 8 * 2 * 2
Z_PAD = 128          # lane-padded z dimension
X_PAD = 896          # 7 * 128, lane-dense recon output


def _fs(shape):
    """Full-array block spec for a grid=(1,) kernel."""
    return pl.BlockSpec(shape, lambda i: (0,) * len(shape))


def _softplus(v):
    # stable softplus built only from exp/log/abs/max (f32 EUP/VPU path)
    return jnp.maximum(v, 0.0) + jnp.log(1.0 + jnp.exp(-jnp.abs(v)))


# ----------------------------------------------------------------------------
# Kernel 1: conv1 + ReLU + 2x2/stride-2 max-pool
# ----------------------------------------------------------------------------

def _conv1_pool_kernel(col_ref, w_ref, b_ref, o_ref):
    w = w_ref[...]
    b = b_ref[...]
    acc = None
    for t in range(4):                      # 4 pooling taps, unrolled at trace time
        h = jnp.dot(col_ref[t], w, preferred_element_type=jnp.float32) + b
        h = jnp.maximum(h, 0.0)
        acc = h if acc is None else jnp.maximum(acc, h)
    o_ref[...] = acc


def conv1_pool(col1, w1, b1):
    T, R, K = col1.shape
    Cout = w1.shape[1]
    return pl.pallas_call(
        _conv1_pool_kernel,
        grid=(1,),
        in_specs=[_fs((T, R, K)), _fs((K, Cout)), _fs((1, Cout))],
        out_specs=_fs((R, Cout)),
        out_shape=jax.ShapeDtypeStruct((R, Cout), jnp.float32),
        compiler_params=pltpu.CompilerParams(dimension_semantics=("arbitrary",)),
    )(col1, w1, b1)


# ----------------------------------------------------------------------------
# Kernel 2: conv2 + pool + flatten + full dense chain + loss (one launch)
# ----------------------------------------------------------------------------

def _fused_kernel(col_ref, w2_ref, b2_ref, e0w_ref, e0b_ref,
                  wmv_ref, bmv_ref, dzw_ref, dzb_ref,
                  d0w_ref, d0b_ref, xt_ref, recon_ref, loss_ref):
    # conv2 + ReLU + 2x2/stride-1 max-pool + flatten via block-diagonal weight.
    w2 = w2_ref[...]
    b2 = b2_ref[...]
    feat = None
    for t in range(4):                      # pooling taps
        h = jnp.dot(col_ref[t], w2, preferred_element_type=jnp.float32) + b2
        h = jnp.maximum(h, 0.0)
        feat = h if feat is None else jnp.maximum(feat, h)        # (B, 32)

    # en0 (bf16 weights, f32 accumulation)
    en0 = jnp.dot(feat.astype(jnp.bfloat16), e0w_ref[...],
                  preferred_element_type=jnp.float32) + e0b_ref[...]
    en0 = jnp.maximum(en0, 0.0)                                   # (B, 400)

    # [mean | lvar] with eval BatchNorm folded in, lane-padded to 2*128
    ml = jnp.dot(en0, wmv_ref[...],
                 preferred_element_type=jnp.float32) + bmv_ref[...]   # (B, 256)
    mean = ml[:, :Z_PAD]      # cols [0, 20) valid, rest exactly zero
    lvar = ml[:, Z_PAD:]      # cols [0, 20) valid, rest exactly zero

    # KLD: padded columns contribute 1 + 0 - 0 - exp(0) = 0, so no mask needed.
    kld = -0.5 * jnp.sum(1.0 + lvar - mean * mean - jnp.exp(lvar))

    # sample(): eval mode -> z = mean (already BN'd)
    dez = jnp.dot(mean.astype(jnp.bfloat16), dzw_ref[...],
                  preferred_element_type=jnp.float32) + dzb_ref[...]
    dez = jnp.maximum(dez, 0.0)                                   # (B, 400)

    # de0 logits, lane-padded 784 -> 896
    logits = jnp.dot(dez.astype(jnp.bfloat16), d0w_ref[...],
                     preferred_element_type=jnp.float32) + d0b_ref[...]  # (B, 896)

    recon_ref[...] = jax.nn.sigmoid(logits)

    # BCE from logits: log(sigmoid(x)) = -softplus(-x), clamped at -100 (PyTorch)
    t_x = xt_ref[...]
    logp = jnp.maximum(-_softplus(-logits), -100.0)
    log1mp = jnp.maximum(-_softplus(logits), -100.0)
    lane = jax.lax.broadcasted_iota(jnp.int32, logits.shape, 1)
    bce_el = jnp.where(lane < X_DIM, t_x * logp + (1.0 - t_x) * log1mp, 0.0)
    bce = -jnp.sum(bce_el)

    loss_ref[...] = jnp.reshape(bce + kld, (1, 1))


def fused_dense(col2, q, xt):
    B = xt.shape[0]
    args = (col2, q["w2"], q["b2"], q["e0w"], q["e0b"], q["wmv"], q["bmv"],
            q["dzw"], q["dzb"], q["d0w"], q["d0b"], xt)
    recon, loss = pl.pallas_call(
        _fused_kernel,
        grid=(1,),
        in_specs=[_fs(a.shape) for a in args],
        out_specs=[_fs((B, X_PAD)), _fs((1, 1))],
        out_shape=[jax.ShapeDtypeStruct((B, X_PAD), jnp.float32),
                   jax.ShapeDtypeStruct((1, 1), jnp.float32)],
        compiler_params=pltpu.CompilerParams(dimension_semantics=("arbitrary",)),
    )(*args)
    return recon, loss


# ----------------------------------------------------------------------------
# im2col glue (tiny XLA ops on KB-sized tensors, outside the kernels)
# ----------------------------------------------------------------------------

def _prep_col1(x):
    """x: (B,1,28,28) -> (4, B*25, 9); group axis = pooling tap (dh, dw)."""
    B = x.shape[0]
    xp = jnp.pad(x[:, 0], ((0, 0), (1, 1), (1, 1)))            # (B, 30, 30)
    # conv1 windows are non-overlapping on the padded 30x30: pure reshape/transpose.
    a = xp.reshape(B, 5, 2, 3, 5, 2, 3)                        # (b, ph, dh, kh, pw, dw, kw)
    a = a.transpose(2, 5, 0, 1, 4, 3, 6)                       # (dh, dw, b, ph, pw, kh, kw)
    return a.reshape(4, B * 25, 9)


def _prep_col2(pooled1, B):
    """pooled1: (B*25, 16) NHWC -> (4, B, 576); group axis = pooling tap."""
    sp = pooled1.reshape(B, 5, 5, 16)
    sp = jnp.pad(sp, ((0, 0), (1, 1), (1, 1), (0, 0)))         # (B, 7, 7, 16)
    taps = []
    for dh in range(2):
        for dw in range(2):
            pos = []
            for ph in range(2):
                for pw in range(2):
                    r0, c0 = 2 * (ph + dh), 2 * (pw + dw)
                    patch = sp[:, r0:r0 + 3, c0:c0 + 3, :]     # (B, 3, 3, 16)
                    pos.append(patch.reshape(B, 144))
            taps.append(jnp.concatenate(pos, axis=-1))          # (B, 4*144)
    return jnp.stack(taps, axis=0)                              # (4, B, 576)


# ----------------------------------------------------------------------------
# Forward
# ----------------------------------------------------------------------------

def m1_ff_forward(x, q):
    B = x.shape[0]
    col1 = _prep_col1(x)                                        # (4, B*25, 9)
    pooled1 = conv1_pool(col1, q["w1"], q["b1"])                # (B*25, 16)
    col2 = _prep_col2(pooled1, B)                               # (4, B, 576)
    xt = jnp.pad(x.reshape(B, X_DIM), ((0, 0), (0, X_PAD - X_DIM)))
    recon_pad, loss = fused_dense(col2, q, xt)
    return {"input_x": x, "recon_x": recon_pad[:, :X_DIM], "loss": loss[0, 0]}


# ----------------------------------------------------------------------------
# Parameters: PyTorch-style init + kernel-layout preparation (BN fold, padding,
# permutation, bf16 casts).  Done once, outside any kernel.
# ----------------------------------------------------------------------------

def init_params(key):
    def unif(k, shape, fan_in):
        bound = 1.0 / jnp.sqrt(jnp.float32(fan_in))
        return jax.random.uniform(k, shape, jnp.float32, -bound, bound)

    ks = jax.random.split(key, 16)
    p = {}
    p["conv1_w"] = unif(ks[0], (16, 1, 3, 3), 1 * 9)
    p["conv1_b"] = unif(ks[1], (16,), 1 * 9)
    p["conv2_w"] = unif(ks[2], (8, 16, 3, 3), 16 * 9)
    p["conv2_b"] = unif(ks[3], (8,), 16 * 9)
    p["en0_w"] = unif(ks[4], (CONV_DIM, H_DIM), CONV_DIM)
    p["en0_b"] = unif(ks[5], (1, H_DIM), CONV_DIM)
    p["enm_w"] = unif(ks[6], (H_DIM, Z_DIM), H_DIM)
    p["enm_b"] = unif(ks[7], (1, Z_DIM), H_DIM)
    p["env_w"] = unif(ks[8], (H_DIM, Z_DIM), H_DIM)
    p["env_b"] = unif(ks[9], (1, Z_DIM), H_DIM)
    p["dez_w"] = unif(ks[10], (Z_DIM, H_DIM), Z_DIM)
    p["dez_b"] = unif(ks[11], (1, H_DIM), Z_DIM)
    p["de0_w"] = unif(ks[12], (H_DIM, X_DIM), H_DIM)
    p["de0_b"] = unif(ks[13], (1, X_DIM), H_DIM)
    # BatchNorm1d defaults: gamma=1, beta=0, running_mean=0, running_var=1
    for tag in ("bnm", "bnv"):
        p[f"{tag}_g"] = jnp.ones((1, Z_DIM), jnp.float32)
        p[f"{tag}_b"] = jnp.zeros((1, Z_DIM), jnp.float32)
        p[f"{tag}_rm"] = jnp.zeros((1, Z_DIM), jnp.float32)
        p[f"{tag}_rv"] = jnp.ones((1, Z_DIM), jnp.float32)
    return p


def prepare_params(p, eps=1e-3):
    q = {}
    # conv1: (16,1,3,3) -> (9,16), column = output channel, row = kh*3+kw
    q["w1"] = p["conv1_w"].reshape(16, 9).T
    q["b1"] = p["conv1_b"].reshape(1, 16)

    # conv2: (8,16,3,3) -> (144,8) rows ordered ((kh*3+kw)*16 + cin); replicated
    # block-diagonally so the conv2 GEMM directly emits the flattened (B,32) feature.
    w2m = p["conv2_w"].transpose(2, 3, 1, 0).reshape(144, 8)
    w2bd = jnp.zeros((4 * 144, 4 * 8), jnp.float32)
    for s in range(4):
        w2bd = w2bd.at[s * 144:(s + 1) * 144, s * 8:(s + 1) * 8].set(w2m)
    q["w2"] = w2bd
    q["b2"] = jnp.tile(p["conv2_b"].reshape(1, 8), (1, 4))      # (1, 32)

    # en0: permute rows so kernel feature layout (s*8 + c) matches torch (c*4 + s)
    perm = jnp.array([c * 4 + s for s in range(4) for c in range(8)], jnp.int32)
    q["e0w"] = p["en0_w"][perm].astype(jnp.bfloat16)            # (32, 400)
    q["e0b"] = p["en0_b"]

    # en_mean / en_lvar with eval BatchNorm folded, concatenated + lane-padded
    sm = p["bnm_g"] / jnp.sqrt(p["bnm_rv"] + eps)
    sv = p["bnv_g"] / jnp.sqrt(p["bnv_rv"] + eps)
    wmv = jnp.zeros((H_DIM, 2 * Z_PAD), jnp.float32)
    wmv = wmv.at[:, :Z_DIM].set(p["enm_w"] * sm)
    wmv = wmv.at[:, Z_PAD:Z_PAD + Z_DIM].set(p["env_w"] * sv)
    bmv = jnp.zeros((1, 2 * Z_PAD), jnp.float32)
    bmv = bmv.at[:, :Z_DIM].set((p["enm_b"] - p["bnm_rm"]) * sm + p["bnm_b"])
    bmv = bmv.at[:, Z_PAD:Z_PAD + Z_DIM].set((p["env_b"] - p["bnv_rm"]) * sv + p["bnv_b"])
    q["wmv"], q["bmv"] = wmv, bmv

    # dez: rows padded 20 -> 128 (z is lane-padded with exact zeros)
    q["dzw"] = jnp.zeros((Z_PAD, H_DIM), jnp.float32).at[:Z_DIM].set(
        p["dez_w"]).astype(jnp.bfloat16)
    q["dzb"] = p["dez_b"]

    # de0: columns padded 784 -> 896 (recon sliced outside, loss masked in-kernel)
    q["d0w"] = jnp.zeros((H_DIM, X_PAD), jnp.float32).at[:, :X_DIM].set(
        p["de0_w"]).astype(jnp.bfloat16)
    q["d0b"] = jnp.zeros((1, X_PAD), jnp.float32).at[:, :X_DIM].set(p["de0_b"])
    return q


if __name__ == "__main__":
    key = jax.random.PRNGKey(0)
    pkey, xkey = jax.random.split(key)
    params = init_params(pkey)
    q = prepare_params(params)

    # MNIST-like input in [0, 1]; 28x28 is required by the architecture (conv_dim=32).
    x = jax.random.uniform(xkey, (2, 1, 28, 28), jnp.float32)

    fwd = jax.jit(functools.partial(m1_ff_forward, q=q))
    out = jax.block_until_ready(fwd(x))

    assert out["recon_x"].shape == (2, X_DIM)
    assert bool(jnp.isfinite(out["loss"]))
    print("KERNEL_OK")
</pallas_src>

<mosaic_0001>
module attributes {stable_mosaic.version = 11 : i64} {
  func.func @_conv1_pool_kernel(%arg0: i32, %arg1: memref<4x50x9xf32, #tpu.memory_space<vmem>>, %arg2: memref<9x16xf32, #tpu.memory_space<vmem>>, %arg3: memref<1x16xf32, #tpu.memory_space<vmem>>, %arg4: memref<50x16xf32, #tpu.memory_space<vmem>>) attributes {dimension_semantics = [#tpu.dimension_semantics<arbitrary>], iteration_bounds = array<i64: 1>, scalar_prefetch = 0 : i64, scratch_operands = 0 : i64, tpu.core_type = #tpu.core_type<tc>, window_params = [{pipeline_mode = #tpu.pipeline_mode<synchronous>, transform_indices = @transform_0, window_bounds = array<i64: 4, 50, 9>}, {pipeline_mode = #tpu.pipeline_mode<synchronous>, transform_indices = @transform_1, window_bounds = array<i64: 9, 16>}, {pipeline_mode = #tpu.pipeline_mode<synchronous>, transform_indices = @transform_2, window_bounds = array<i64: 1, 16>}, {pipeline_mode = #tpu.pipeline_mode<synchronous>, transform_indices = @transform_3, window_bounds = array<i64: 50, 16>}]} {
    %c0 = arith.constant 0 : index
    %c0_0 = arith.constant 0 : index
    %0 = vector.load %arg2[%c0, %c0_0] : memref<9x16xf32, #tpu.memory_space<vmem>>, vector<9x16xf32>
    %c0_1 = arith.constant 0 : index
    %c0_2 = arith.constant 0 : index
    %1 = vector.load %arg3[%c0_1, %c0_2] : memref<1x16xf32, #tpu.memory_space<vmem>>, vector<1x16xf32>
    %c0_3 = arith.constant 0 : index
    %c0_4 = arith.constant 0 : index
    %c0_5 = arith.constant 0 : index
    %2 = vector.load %arg1[%c0_3, %c0_4, %c0_5] : memref<4x50x9xf32, #tpu.memory_space<vmem>>, vector<1x50x9xf32>
    %3 = vector.shape_cast %2 : vector<1x50x9xf32> to vector<50x9xf32>
    %cst = arith.constant dense<0.000000e+00> : vector<50x16xf32>
    %4 = tpu.matmul %3, %0, %cst {dimension_numbers = #tpu.dot_dimension_numbers<[1], [0], [0], [1], [0, 0, 1, 1], [], []>} : vector<50x9xf32>, vector<9x16xf32>, vector<50x16xf32> -> vector<50x16xf32>
    %5 = vector.broadcast %1 : vector<1x16xf32> to vector<50x16xf32>
    %6 = arith.addf %4, %5 : vector<50x16xf32>
    %cst_6 = arith.constant 0.000000e+00 : f32
    %7 = vector.broadcast %cst_6 : f32 to vector<50x16xf32>
    %8 = arith.maximumf %6, %7 : vector<50x16xf32>
    %c1 = arith.constant 1 : index
    %c0_7 = arith.constant 0 : index
    %c0_8 = arith.constant 0 : index
    %9 = vector.load %arg1[%c1, %c0_7, %c0_8] : memref<4x50x9xf32, #tpu.memory_space<vmem>>, vector<1x50x9xf32>
    %10 = vector.shape_cast %9 : vector<1x50x9xf32> to vector<50x9xf32>
    %cst_9 = arith.constant dense<0.000000e+00> : vector<50x16xf32>
    %11 = tpu.matmul %10, %0, %cst_9 {dimension_numbers = #tpu.dot_dimension_numbers<[1], [0], [0], [1], [0, 0, 1, 1], [], []>} : vector<50x9xf32>, vector<9x16xf32>, vector<50x16xf32> -> vector<50x16xf32>
    %12 = vector.broadcast %1 : vector<1x16xf32> to vector<50x16xf32>
    %13 = arith.addf %11, %12 : vector<50x16xf32>
    %cst_10 = arith.constant 0.000000e+00 : f32
    %14 = vector.broadcast %cst_10 : f32 to vector<50x16xf32>
    %15 = arith.maximumf %13, %14 : vector<50x16xf32>
    %16 = arith.maximumf %8, %15 : vector<50x16xf32>
    %c2 = arith.constant 2 : index
    %c0_11 = arith.constant 0 : index
    %c0_12 = arith.constant 0 : index
    %17 = vector.load %arg1[%c2, %c0_11, %c0_12] : memref<4x50x9xf32, #tpu.memory_space<vmem>>, vector<1x50x9xf32>
    %18 = vector.shape_cast %17 : vector<1x50x9xf32> to vector<50x9xf32>
    %cst_13 = arith.constant dense<0.000000e+00> : vector<50x16xf32>
    %19 = tpu.matmul %18, %0, %cst_13 {dimension_numbers = #tpu.dot_dimension_numbers<[1], [0], [0], [1], [0, 0, 1, 1], [], []>} : vector<50x9xf32>, vector<9x16xf32>, vector<50x16xf32> -> vector<50x16xf32>
    %20 = vector.broadcast %1 : vector<1x16xf32> to vector<50x16xf32>
    %21 = arith.addf %19, %20 : vector<50x16xf32>
    %cst_14 = arith.constant 0.000000e+00 : f32
    %22 = vector.broadcast %cst_14 : f32 to vector<50x16xf32>
    %23 = arith.maximumf %21, %22 : vector<50x16xf32>
    %24 = arith.maximumf %16, %23 : vector<50x16xf32>
    %c3 = arith.constant 3 : index
    %c0_15 = arith.constant 0 : index
    %c0_16 = arith.constant 0 : index
    %25 = vector.load %arg1[%c3, %c0_15, %c0_16] : memref<4x50x9xf32, #tpu.memory_space<vmem>>, vector<1x50x9xf32>
    %26 = vector.shape_cast %25 : vector<1x50x9xf32> to vector<50x9xf32>
    %cst_17 = arith.constant dense<0.000000e+00> : vector<50x16xf32>
    %27 = tpu.matmul %26, %0, %cst_17 {dimension_numbers = #tpu.dot_dimension_numbers<[1], [0], [0], [1], [0, 0, 1, 1], [], []>} : vector<50x9xf32>, vector<9x16xf32>, vector<50x16xf32> -> vector<50x16xf32>
    %28 = vector.broadcast %1 : vector<1x16xf32> to vector<50x16xf32>
    %29 = arith.addf %27, %28 : vector<50x16xf32>
    %cst_18 = arith.constant 0.000000e+00 : f32
    %30 = vector.broadcast %cst_18 : f32 to vector<50x16xf32>
    %31 = arith.maximumf %29, %30 : vector<50x16xf32>
    %32 = arith.maximumf %24, %31 : vector<50x16xf32>
    %c0_19 = arith.constant 0 : index
    %c0_20 = arith.constant 0 : index
    %33 = vector.load %arg4[%c0_19, %c0_20] : memref<50x16xf32, #tpu.memory_space<vmem>>, vector<50x16xf32>
    tpu.vector_store %arg4[%c0_19, %c0_20], %32 {strides = array<i32>} : memref<50x16xf32, #tpu.memory_space<vmem>>, vector<50x16xf32>,
    return
  }
  func.func @transform_0(%arg0: i32) -> (i32, i32, i32) {
    %c0_i32 = arith.constant 0 : i32
    %c0_i32_0 = arith.constant 0 : i32
    %c0_i32_1 = arith.constant 0 : i32
    %c0_i32_2 = arith.constant 0 : i32
    return %c0_i32, %c0_i32_0, %c0_i32_1 : i32, i32, i32
  }
  func.func @transform_1(%arg0: i32) -> (i32, i32) {
    %c0_i32 = arith.constant 0 : i32
    %c0_i32_0 = arith.constant 0 : i32
    %c0_i32_1 = arith.constant 0 : i32
    return %c0_i32, %c0_i32_0 : i32, i32
  }
  func.func @transform_2(%arg0: i32) -> (i32, i32) {
    %c0_i32 = arith.constant 0 : i32
    %c0_i32_0 = arith.constant 0 : i32
    %c0_i32_1 = arith.constant 0 : i32
    return %c0_i32, %c0_i32_0 : i32, i32
  }
  func.func @transform_3(%arg0: i32) -> (i32, i32) {
    %c0_i32 = arith.constant 0 : i32
    %c0_i32_0 = arith.constant 0 : i32
    %c0_i32_1 = arith.constant 0 : i32
    return %c0_i32, %c0_i32_0 : i32, i32
  }
}

module attributes {stable_mosaic.version = 11 : i64} {
  func.func @_fused_kernel(%arg0: i32, %arg1: memref<4x2x576xf32, #tpu.memory_space<vmem>>, %arg2: memref<576x32xf32, #tpu.memory_space<vmem>>, %arg3: memref<1x32xf32, #tpu.memory_space<vmem>>, %arg4: memref<32x400xbf16, #tpu.memory_space<vmem>>, %arg5: memref<1x400xf32, #tpu.memory_space<vmem>>, %arg6: memref<400x256xf32, #tpu.memory_space<vmem>>, %arg7: memref<1x256xf32, #tpu.memory_space<vmem>>, %arg8: memref<128x400xbf16, #tpu.memory_space<vmem>>, %arg9: memref<1x400xf32, #tpu.memory_space<vmem>>, %arg10: memref<400x896xbf16, #tpu.memory_space<vmem>>, %arg11: memref<1x896xf32, #tpu.memory_space<vmem>>, %arg12: memref<2x896xf32, #tpu.memory_space<vmem>>, %arg13: memref<2x896xf32, #tpu.memory_space<vmem>>, %arg14: memref<1x1xf32, #tpu.memory_space<vmem>>) attributes {dimension_semantics = [#tpu.dimension_semantics<arbitrary>], iteration_bounds = array<i64: 1>, scalar_prefetch = 0 : i64, scratch_operands = 0 : i64, tpu.core_type = #tpu.core_type<tc>, window_params = [{pipeline_mode = #tpu.pipeline_mode<synchronous>, transform_indices = @transform_0, window_bounds = array<i64: 4, 2, 576>}, {pipeline_mode = #tpu.pipeline_mode<synchronous>, transform_indices = @transform_1, window_bounds = array<i64: 576, 32>}, {pipeline_mode = #tpu.pipeline_mode<synchronous>, transform_indices = @transform_2, window_bounds = array<i64: 1, 32>}, {pipeline_mode = #tpu.pipeline_mode<synchronous>, transform_indices = @transform_3, window_bounds = array<i64: 32, 400>}, {pipeline_mode = #tpu.pipeline_mode<synchronous>, transform_indices = @transform_4, window_bounds = array<i64: 1, 400>}, {pipeline_mode = #tpu.pipeline_mode<synchronous>, transform_indices = @transform_5, window_bounds = array<i64: 400, 256>}, {pipeline_mode = #tpu.pipeline_mode<synchronous>, transform_indices = @transform_6, window_bounds = array<i64: 1, 256>}, {pipeline_mode = #tpu.pipeline_mode<synchronous>, transform_indices = @transform_7, window_bounds = array<i64: 128, 400>}, {pipeline_mode = #tpu.pipeline_mode<synchronous>, transform_indices = @transform_8, window_bounds = array<i64: 1, 400>}, {pipeline_mode = #tpu.pipeline_mode<synchronous>, transform_indices = @transform_9, window_bounds = array<i64: 400, 896>}, {pipeline_mode = #tpu.pipeline_mode<synchronous>, transform_indices = @transform_10, window_bounds = array<i64: 1, 896>}, {pipeline_mode = #tpu.pipeline_mode<synchronous>, transform_indices = @transform_11, window_bounds = array<i64: 2, 896>}, {pipeline_mode = #tpu.pipeline_mode<synchronous>, transform_indices = @transform_12, window_bounds = array<i64: 2, 896>}, {pipeline_mode = #tpu.pipeline_mode<synchronous>, transform_indices = @transform_13, window_bounds = array<i64: 1, 1>}]} {
    %c0 = arith.constant 0 : index
    %c0_0 = arith.constant 0 : index
    %0 = vector.load %arg2[%c0, %c0_0] : memref<576x32xf32, #tpu.memory_space<vmem>>, vector<576x32xf32>
    %c0_1 = arith.constant 0 : index
    %c0_2 = arith.constant 0 : index
    %1 = vector.load %arg3[%c0_1, %c0_2] : memref<1x32xf32, #tpu.memory_space<vmem>>, vector<1x32xf32>
    %c0_3 = arith.constant 0 : index
    %c0_4 = arith.constant 0 : index
    %c0_5 = arith.constant 0 : index
    %2 = vector.load %arg1[%c0_3, %c0_4, %c0_5] : memref<4x2x576xf32, #tpu.memory_space<vmem>>, vector<1x2x576xf32>
    %3 = vector.shape_cast %2 : vector<1x2x576xf32> to vector<2x576xf32>
    %cst = arith.constant dense<0.000000e+00> : vector<2x32xf32>
    %4 = tpu.matmul %3, %0, %cst {dimension_numbers = #tpu.dot_dimension_numbers<[1], [0], [0], [1], [0, 0, 1, 1], [], []>} : vector<2x576xf32>, vector<576x32xf32>, vector<2x32xf32> -> vector<2x32xf32>
    %5 = vector.broadcast %1 : vector<1x32xf32> to vector<2x32xf32>
    %6 = arith.addf %4, %5 : vector<2x32xf32>
    %cst_6 = arith.constant 0.000000e+00 : f32
    %7 = vector.broadcast %cst_6 : f32 to vector<2x32xf32>
    %8 = arith.maximumf %6, %7 : vector<2x32xf32>
    %c1 = arith.constant 1 : index
    %c0_7 = arith.constant 0 : index
    %c0_8 = arith.constant 0 : index
    %9 = vector.load %arg1[%c1, %c0_7, %c0_8] : memref<4x2x576xf32, #tpu.memory_space<vmem>>, vector<1x2x576xf32>
    %10 = vector.shape_cast %9 : vector<1x2x576xf32> to vector<2x576xf32>
    %cst_9 = arith.constant dense<0.000000e+00> : vector<2x32xf32>
    %11 = tpu.matmul %10, %0, %cst_9 {dimension_numbers = #tpu.dot_dimension_numbers<[1], [0], [0], [1], [0, 0, 1, 1], [], []>} : vector<2x576xf32>, vector<576x32xf32>, vector<2x32xf32> -> vector<2x32xf32>
    %12 = vector.broadcast %1 : vector<1x32xf32> to vector<2x32xf32>
    %13 = arith.addf %11, %12 : vector<2x32xf32>
    %cst_10 = arith.constant 0.000000e+00 : f32
    %14 = vector.broadcast %cst_10 : f32 to vector<2x32xf32>
    %15 = arith.maximumf %13, %14 : vector<2x32xf32>
    %16 = arith.maximumf %8, %15 : vector<2x32xf32>
    %c2 = arith.constant 2 : index
    %c0_11 = arith.constant 0 : index
    %c0_12 = arith.constant 0 : index
    %17 = vector.load %arg1[%c2, %c0_11, %c0_12] : memref<4x2x576xf32, #tpu.memory_space<vmem>>, vector<1x2x576xf32>
    %18 = vector.shape_cast %17 : vector<1x2x576xf32> to vector<2x576xf32>
    %cst_13 = arith.constant dense<0.000000e+00> : vector<2x32xf32>
    %19 = tpu.matmul %18, %0, %cst_13 {dimension_numbers = #tpu.dot_dimension_numbers<[1], [0], [0], [1], [0, 0, 1, 1], [], []>} : vector<2x576xf32>, vector<576x32xf32>, vector<2x32xf32> -> vector<2x32xf32>
    %20 = vector.broadcast %1 : vector<1x32xf32> to vector<2x32xf32>
    %21 = arith.addf %19, %20 : vector<2x32xf32>
    %cst_14 = arith.constant 0.000000e+00 : f32
    %22 = vector.broadcast %cst_14 : f32 to vector<2x32xf32>
    %23 = arith.maximumf %21, %22 : vector<2x32xf32>
    %24 = arith.maximumf %16, %23 : vector<2x32xf32>
    %c3 = arith.constant 3 : index
    %c0_15 = arith.constant 0 : index
    %c0_16 = arith.constant 0 : index
    %25 = vector.load %arg1[%c3, %c0_15, %c0_16] : memref<4x2x576xf32, #tpu.memory_space<vmem>>, vector<1x2x576xf32>
    %26 = vector.shape_cast %25 : vector<1x2x576xf32> to vector<2x576xf32>
    %cst_17 = arith.constant dense<0.000000e+00> : vector<2x32xf32>
    %27 = tpu.matmul %26, %0, %cst_17 {dimension_numbers = #tpu.dot_dimension_numbers<[1], [0], [0], [1], [0, 0, 1, 1], [], []>} : vector<2x576xf32>, vector<576x32xf32>, vector<2x32xf32> -> vector<2x32xf32>
    %28 = vector.broadcast %1 : vector<1x32xf32> to vector<2x32xf32>
    %29 = arith.addf %27, %28 : vector<2x32xf32>
    %cst_18 = arith.constant 0.000000e+00 : f32
    %30 = vector.broadcast %cst_18 : f32 to vector<2x32xf32>
    %31 = arith.maximumf %29, %30 : vector<2x32xf32>
    %32 = arith.maximumf %24, %31 : vector<2x32xf32>
    %33 = arith.truncf %32 : vector<2x32xf32> to vector<2x32xbf16>
    %c0_19 = arith.constant 0 : index
    %c0_20 = arith.constant 0 : index
    %34 = vector.load %arg4[%c0_19, %c0_20] : memref<32x400xbf16, #tpu.memory_space<vmem>>, vector<32x400xbf16>
    %cst_21 = arith.constant dense<0.000000e+00> : vector<2x400xf32>
    %35 = tpu.matmul %33, %34, %cst_21 {dimension_numbers = #tpu.dot_dimension_numbers<[1], [0], [0], [1], [0, 0, 1, 1], [], []>} : vector<2x32xbf16>, vector<32x400xbf16>, vector<2x400xf32> -> vector<2x400xf32>
    %c0_22 = arith.constant 0 : index
    %c0_23 = arith.constant 0 : index
    %36 = vector.load %arg5[%c0_22, %c0_23] : memref<1x400xf32, #tpu.memory_space<vmem>>, vector<1x400xf32>
    %37 = vector.broadcast %36 : vector<1x400xf32> to vector<2x400xf32>
    %38 = arith.addf %35, %37 : vector<2x400xf32>
    %cst_24 = arith.constant 0.000000e+00 : f32
    %39 = vector.broadcast %cst_24 : f32 to vector<2x400xf32>
    %40 = arith.maximumf %38, %39 : vector<2x400xf32>
    %c0_25 = arith.constant 0 : index
    %c0_26 = arith.constant 0 : index
    %41 = vector.load %arg6[%c0_25, %c0_26] : memref<400x256xf32, #tpu.memory_space<vmem>>, vector<400x256xf32>
    %cst_27 = arith.constant dense<0.000000e+00> : vector<2x256xf32>
    %42 = tpu.matmul %40, %41, %cst_27 {dimension_numbers = #tpu.dot_dimension_numbers<[1], [0], [0], [1], [0, 0, 1, 1], [], []>} : vector<2x400xf32>, vector<400x256xf32>, vector<2x256xf32> -> vector<2x256xf32>
    %c0_28 = arith.constant 0 : index
    %c0_29 = arith.constant 0 : index
    %43 = vector.load %arg7[%c0_28, %c0_29] : memref<1x256xf32, #tpu.memory_space<vmem>>, vector<1x256xf32>
    %44 = vector.broadcast %43 : vector<1x256xf32> to vector<2x256xf32>
    %45 = arith.addf %42, %44 : vector<2x256xf32>
    %46 = vector.extract_strided_slice %45 {offsets = [0, 0], sizes = [2, 128], strides = [1, 1]} : vector<2x256xf32> to vector<2x128xf32>
    %47 = vector.extract_strided_slice %45 {offsets = [0, 128], sizes = [2, 128], strides = [1, 1]} : vector<2x256xf32> to vector<2x128xf32>
    %cst_30 = arith.constant 1.000000e+00 : f32
    %48 = vector.broadcast %cst_30 : f32 to vector<2x128xf32>
    %49 = arith.addf %48, %47 : vector<2x128xf32>
    %50 = arith.mulf %46, %46 : vector<2x128xf32>
    %51 = arith.subf %49, %50 : vector<2x128xf32>
    %52 = math.exp %47 : vector<2x128xf32>
    %53 = arith.subf %51, %52 : vector<2x128xf32>
    %54 = vector.shape_cast %53 : vector<2x128xf32> to vector<1x2x128xf32>
    %cst_31 = arith.constant dense<0.000000e+00> : vector<1xf32>
    %55 = vector.multi_reduction <add>, %54, %cst_31 [1, 2] : vector<1x2x128xf32> to vector<1xf32>
    %56 = vector.shape_cast %55 : vector<1xf32> to vector<1x1x1xf32>
    %57 = vector.extract %56[0, 0, 0] : f32 from vector<1x1x1xf32>
    %cst_32 = arith.constant -5.000000e-01 : f32
    %58 = arith.mulf %cst_32, %57 : f32
    %59 = arith.truncf %46 : vector<2x128xf32> to vector<2x128xbf16>
    %c0_33 = arith.constant 0 : index
    %c0_34 = arith.constant 0 : index
    %60 = vector.load %arg8[%c0_33, %c0_34] : memref<128x400xbf16, #tpu.memory_space<vmem>>, vector<128x400xbf16>
    %cst_35 = arith.constant dense<0.000000e+00> : vector<2x400xf32>
    %61 = tpu.matmul %59, %60, %cst_35 {dimension_numbers = #tpu.dot_dimension_numbers<[1], [0], [0], [1], [0, 0, 1, 1], [], []>} : vector<2x128xbf16>, vector<128x400xbf16>, vector<2x400xf32> -> vector<2x400xf32>
    %c0_36 = arith.constant 0 : index
    %c0_37 = arith.constant 0 : index
    %62 = vector.load %arg9[%c0_36, %c0_37] : memref<1x400xf32, #tpu.memory_space<vmem>>, vector<1x400xf32>
    %63 = vector.broadcast %62 : vector<1x400xf32> to vector<2x400xf32>
    %64 = arith.addf %61, %63 : vector<2x400xf32>
    %cst_38 = arith.constant 0.000000e+00 : f32
    %65 = vector.broadcast %cst_38 : f32 to vector<2x400xf32>
    %66 = arith.maximumf %64, %65 : vector<2x400xf32>
    %67 = arith.truncf %66 : vector<2x400xf32> to vector<2x400xbf16>
    %c0_39 = arith.constant 0 : index
    %c0_40 = arith.constant 0 : index
    %68 = vector.load %arg10[%c0_39, %c0_40] : memref<400x896xbf16, #tpu.memory_space<vmem>>, vector<400x896xbf16>
    %cst_41 = arith.constant dense<0.000000e+00> : vector<2x896xf32>
    %69 = tpu.matmul %67, %68, %cst_41 {dimension_numbers = #tpu.dot_dimension_numbers<[1], [0], [0], [1], [0, 0, 1, 1], [], []>} : vector<2x400xbf16>, vector<400x896xbf16>, vector<2x896xf32> -> vector<2x896xf32>
    %c0_42 = arith.constant 0 : index
    %c0_43 = arith.constant 0 : index
    %70 = vector.load %arg11[%c0_42, %c0_43] : memref<1x896xf32, #tpu.memory_space<vmem>>, vector<1x896xf32>
    %71 = vector.broadcast %70 : vector<1x896xf32> to vector<2x896xf32>
    %72 = arith.addf %69, %71 : vector<2x896xf32>
    %73 = arith.negf %72 : vector<2x896xf32>
    %74 = math.exp %73 : vector<2x896xf32>
    %cst_44 = arith.constant 1.000000e+00 : f32
    %75 = vector.broadcast %cst_44 : f32 to vector<2x896xf32>
    %76 = arith.addf %75, %74 : vector<2x896xf32>
    %77 = arith.divf %75, %76 : vector<2x896xf32>
    %c0_45 = arith.constant 0 : index
    %c0_46 = arith.constant 0 : index
    %78 = vector.load %arg13[%c0_45, %c0_46] : memref<2x896xf32, #tpu.memory_space<vmem>>, vector<2x896xf32>
    tpu.vector_store %arg13[%c0_45, %c0_46], %77 {strides = array<i32>} : memref<2x896xf32, #tpu.memory_space<vmem>>, vector<2x896xf32>,
    %c0_47 = arith.constant 0 : index
    %c0_48 = arith.constant 0 : index
    %79 = vector.load %arg12[%c0_47, %c0_48] : memref<2x896xf32, #tpu.memory_space<vmem>>, vector<2x896xf32>
    %cst_49 = arith.constant 0.000000e+00 : f32
    %80 = vector.broadcast %cst_49 : f32 to vector<2x896xf32>
    %81 = arith.subf %80, %72 : vector<2x896xf32>
    %cst_50 = arith.constant 0.000000e+00 : f32
    %82 = vector.broadcast %cst_50 : f32 to vector<2x896xf32>
    %83 = arith.maximumf %81, %82 : vector<2x896xf32>
    %84 = math.absf %81 : vector<2x896xf32>
    %cst_51 = arith.constant 0.000000e+00 : f32
    %85 = vector.broadcast %cst_51 : f32 to vector<2x896xf32>
    %86 = arith.subf %85, %84 : vector<2x896xf32>
    %87 = math.exp %86 : vector<2x896xf32>
    %cst_52 = arith.constant 1.000000e+00 : f32
    %88 = vector.broadcast %cst_52 : f32 to vector<2x896xf32>
    %89 = arith.addf %88, %87 : vector<2x896xf32>
    %90 = math.log %89 : vector<2x896xf32>
    %91 = arith.addf %83, %90 : vector<2x896xf32>
    %cst_53 = arith.constant 0.000000e+00 : f32
    %92 = vector.broadcast %cst_53 : f32 to vector<2x896xf32>
    %93 = arith.subf %92, %91 : vector<2x896xf32>
    %cst_54 = arith.constant -1.000000e+02 : f32
    %94 = vector.broadcast %cst_54 : f32 to vector<2x896xf32>
    %95 = arith.maximumf %93, %94 : vector<2x896xf32>
    %cst_55 = arith.constant 0.000000e+00 : f32
    %96 = vector.broadcast %cst_55 : f32 to vector<2x896xf32>
    %97 = arith.maximumf %72, %96 : vector<2x896xf32>
    %98 = math.absf %72 : vector<2x896xf32>
    %cst_56 = arith.constant 0.000000e+00 : f32
    %99 = vector.broadcast %cst_56 : f32 to vector<2x896xf32>
    %100 = arith.subf %99, %98 : vector<2x896xf32>
    %101 = math.exp %100 : vector<2x896xf32>
    %cst_57 = arith.constant 1.000000e+00 : f32
    %102 = vector.broadcast %cst_57 : f32 to vector<2x896xf32>
    %103 = arith.addf %102, %101 : vector<2x896xf32>
    %104 = math.log %103 : vector<2x896xf32>
    %105 = arith.addf %97, %104 : vector<2x896xf32>
    %cst_58 = arith.constant 0.000000e+00 : f32
    %106 = vector.broadcast %cst_58 : f32 to vector<2x896xf32>
    %107 = arith.subf %106, %105 : vector<2x896xf32>
    %cst_59 = arith.constant -1.000000e+02 : f32
    %108 = vector.broadcast %cst_59 : f32 to vector<2x896xf32>
    %109 = arith.maximumf %107, %108 : vector<2x896xf32>
    %110 = tpu.iota {dimensions = array<i32: 1>} : vector<2x896xi32>
    %c784_i32 = arith.constant 784 : i32
    %111 = vector.broadcast %c784_i32 : i32 to vector<2x896xi32>
    %112 = arith.cmpi slt, %110, %111 : vector<2x896xi32>
    %113 = arith.mulf %79, %95 : vector<2x896xf32>
    %cst_60 = arith.constant 1.000000e+00 : f32
    %114 = vector.broadcast %cst_60 : f32 to vector<2x896xf32>
    %115 = arith.subf %114, %79 : vector<2x896xf32>
    %116 = arith.mulf %115, %109 : vector<2x896xf32>
    %117 = arith.addf %113, %116 : vector<2x896xf32>
    %cst_61 = arith.constant 0.000000e+00 : f32
    %118 = vector.broadcast %cst_61 : f32 to vector<2x896xf32>
    %119 = arith.select %112, %117, %118 : vector<2x896xi1>, vector<2x896xf32>
    %120 = vector.shape_cast %119 : vector<2x896xf32> to vector<1x2x896xf32>
    %cst_62 = arith.constant dense<0.000000e+00> : vector<1xf32>
    %121 = vector.multi_reduction <add>, %120, %cst_62 [1, 2] : vector<1x2x896xf32> to vector<1xf32>
    %122 = vector.shape_cast %121 : vector<1xf32> to vector<1x1x1xf32>
    %123 = vector.extract %122[0, 0, 0] : f32 from vector<1x1x1xf32>
    %cst_63 = arith.constant 0.000000e+00 : f32
    %124 = arith.subf %cst_63, %123 : f32
    %125 = arith.addf %124, %58 : f32
    %126 = vector.broadcast %125 : f32 to vector<1x1xf32>
    %c0_64 = arith.constant 0 : index
    %c0_65 = arith.constant 0 : index
    %127 = vector.load %arg14[%c0_64, %c0_65] : memref<1x1xf32, #tpu.memory_space<vmem>>, vector<1x1xf32>
    tpu.vector_store %arg14[%c0_64, %c0_65], %126 {strides = array<i32>} : memref<1x1xf32, #tpu.memory_space<vmem>>, vector<1x1xf32>,
    return
  }
  func.func @transform_0(%arg0: i32) -> (i32, i32, i32) {
    %c0_i32 = arith.constant 0 : i32
    %c0_i32_0 = arith.constant 0 : i32
    %c0_i32_1 = arith.constant 0 : i32
    %c0_i32_2 = arith.constant 0 : i32
    return %c0_i32, %c0_i32_0, %c0_i32_1 : i32, i32, i32
  }
  func.func @transform_1(%arg0: i32) -> (i32, i32) {
    %c0_i32 = arith.constant 0 : i32
    %c0_i32_0 = arith.constant 0 : i32
    %c0_i32_1 = arith.constant 0 : i32
    return %c0_i32, %c0_i32_0 : i32, i32
  }
  func.func @transform_2(%arg0: i32) -> (i32, i32) {
    %c0_i32 = arith.constant 0 : i32
    %c0_i32_0 = arith.constant 0 : i32
    %c0_i32_1 = arith.constant 0 : i32
    return %c0_i32, %c0_i32_0 : i32, i32
  }
  func.func @transform_3(%arg0: i32) -> (i32, i32) {
    %c0_i32 = arith.constant 0 : i32
    %c0_i32_0 = arith.constant 0 : i32
    %c0_i32_1 = arith.constant 0 : i32
    return %c0_i32, %c0_i32_0 : i32, i32
  }
  func.func @transform_4(%arg0: i32) -> (i32, i32) {
    %c0_i32 = arith.constant 0 : i32
    %c0_i32_0 = arith.constant 0 : i32
    %c0_i32_1 = arith.constant 0 : i32
    return %c0_i32, %c0_i32_0 : i32, i32
  }
  func.func @transform_5(%arg0: i32) -> (i32, i32) {
    %c0_i32 = arith.constant 0 : i32
    %c0_i32_0 = arith.constant 0 : i32
    %c0_i32_1 = arith.constant 0 : i32
    return %c0_i32, %c0_i32_0 : i32, i32
  }
  func.func @transform_6(%arg0: i32) -> (i32, i32) {
    %c0_i32 = arith.constant 0 : i32
    %c0_i32_0 = arith.constant 0 : i32
    %c0_i32_1 = arith.constant 0 : i32
    return %c0_i32, %c0_i32_0 : i32, i32
  }
  func.func @transform_7(%arg0: i32) -> (i32, i32) {
    %c0_i32 = arith.constant 0 : i32
    %c0_i32_0 = arith.constant 0 : i32
    %c0_i32_1 = arith.constant 0 : i32
    return %c0_i32, %c0_i32_0 : i32, i32
  }
  func.func @transform_8(%arg0: i32) -> (i32, i32) {
    %c0_i32 = arith.constant 0 : i32
    %c0_i32_0 = arith.constant 0 : i32
    %c0_i32_1 = arith.constant 0 : i32
    return %c0_i32, %c0_i32_0 : i32, i32
  }
  func.func @transform_9(%arg0: i32) -> (i32, i32) {
    %c0_i32 = arith.constant 0 : i32
    %c0_i32_0 = arith.constant 0 : i32
    %c0_i32_1 = arith.constant 0 : i32
    return %c0_i32, %c0_i32_0 : i32, i32
  }
  func.func @transform_10(%arg0: i32) -> (i32, i32) {
    %c0_i32 = arith.constant 0 : i32
    %c0_i32_0 = arith.constant 0 : i32
    %c0_i32_1 = arith.constant 0 : i32
    return %c0_i32, %c0_i32_0 : i32, i32
  }
  func.func @transform_11(%arg0: i32) -> (i32, i32) {
    %c0_i32 = arith.constant 0 : i32
    %c0_i32_0 = arith.constant 0 : i32
    %c0_i32_1 = arith.constant 0 : i32
    return %c0_i32, %c0_i32_0 : i32, i32
  }
  func.func @transform_12(%arg0: i32) -> (i32, i32) {
    %c0_i32 = arith.constant 0 : i32
    %c0_i32_0 = arith.constant 0 : i32
    %c0_i32_1 = arith.constant 0 : i32
    return %c0_i32, %c0_i32_0 : i32, i32
  }
  func.func @transform_13(%arg0: i32) -> (i32, i32) {
    %c0_i32 = arith.constant 0 : i32
    %c0_i32_0 = arith.constant 0 : i32
    %c0_i32_1 = arith.constant 0 : i32
    return %c0_i32, %c0_i32_0 : i32, i32
  }
}

</mosaic_0001>

<llo_original>
// kernel: m1_ff_forward.2
$region0: #{m1_ff_forward.2}
  #allocation0 [shape = 'u32[]', space=smem, size = 0x4, offset = 0x4, fixed_abs, tag = 'smem constant byte address 0x4 - core index']
  #allocation1 [shape = 'u32[72,128]{1,0:T(1,128)}', space=vmem, size = 0x9000, scoped, tag = 'internal scratch']
  %s0 = inlined_call_operand.vmem [shape: f32[4,50,9], index: 0, kind: input, shape index: {}]
  %s1 = inlined_call_operand.vmem [shape: f32[9,16], index: 1, kind: input, shape index: {}]
  %s2 = inlined_call_operand.vmem [shape: f32[1,16], index: 2, kind: input, shape index: {}]
  %s3 = inlined_call_operand.vmem [shape: f32[50,16], index: 3, kind: output, shape index: {}]
  %s4 = sld [smem:[#allocation0]]
  $region22: #{m1_ff_forward.2} parent=0
    _
  %s6 = ssub.s32 1, %s4
  %s7 = scalar_select 0, %s6, %s4
  // Predicated region
  $region2: #{m1_ff_forward.2} parent=0 // pred_check
    _
  $region3: #{m1_ff_forward.2} parent=0 // pred_check_branch
    %9 = sbr.rel (0) target = $region5
  $region4: #{m1_ff_forward.2} parent=0 // pred_region
    _
  $region5: #{m1_ff_forward.2} parent=0 // pred_fallthru
    _
  // Predicated region
  $region6: #{m1_ff_forward.2} parent=0 // pred_check
    _
  $region7: #{m1_ff_forward.2} parent=0 // pred_check_branch
    %11 = sbr.rel (0) target = $region9
  $region8: #{m1_ff_forward.2} parent=0 // pred_region
    _
  $region9: #{m1_ff_forward.2} parent=0 // pred_fallthru
    _
  // Predicated region
  $region10: #{m1_ff_forward.2} parent=0 // pred_check
    _
  $region11: #{m1_ff_forward.2} parent=0 // pred_check_branch
    %13 = sbr.rel (0) target = $region13
  $region12: #{m1_ff_forward.2} parent=0 // pred_region
    _
  $region13: #{m1_ff_forward.2} parent=0 // pred_fallthru
    _
  %v14 = vld [vmem:[%s1] sm:$0xff]
  %v15 = vld [vmem:[%s1 + $0x8] sm:$0x1]
  %v16 = vld [vmem:[%s2] sm:$0x1]
  %v17 = vld [vmem:[%s0] sm:$0xff]
  %v18 = vld [vmem:[%s0 + $0x8] sm:$0xff]
  %v19 = vld [vmem:[%s0 + $0x10] sm:$0xff]
  %v20 = vld [vmem:[%s0 + $0x18] sm:$0xff]
  %v21 = vld [vmem:[%s0 + $0x20] sm:$0xff]
  %v22 = vld [vmem:[%s0 + $0x28] sm:$0xff]
  %v23 = vld [vmem:[%s0 + $0x30] sm:$0x3]
  %v25 = vperm.slane %v16, 0
  %vm27 = vcmask 72704
  %v29 = vsel %vm27, %v17, 0
  %v32 = vsel %vm27, %v18, 0
  %v35 = vsel %vm27, %v19, 0
  %v38 = vsel %vm27, %v20, 0
  %v41 = vsel %vm27, %v21, 0
  %v44 = vsel %vm27, %v22, 0
  %v47 = vsel %vm27, %v23, 0
  %vm49 = vcmask 1040384
  %v51 = vsel %vm49, %v15, 0
  %53 = vmatpush.msra.mxu0 0.0
  %54 = vmatpush.msra.mxu0 0.0
  %55 = vmatpush.msra.mxu0 0.0
  %56 = vmatpush.msra.mxu0 0.0
  %57 = vmatpush.msra.mxu0 0.0
  %58 = vmatpush.msra.mxu0 0.0
  %59 = vmatpush.msra.mxu0 0.0
  %60 = vmatpush.msra.mxu0 0.0
  %61 = vmatpush.msra.mxu0 0.0
  %62 = vmatpush.msra.mxu0 0.0
  %63 = vmatpush.msra.mxu0 0.0
  %64 = vmatpush.msra.mxu0 0.0
  %65 = vmatpush.msra.mxu0 0.0
  %66 = vmatpush.msra.mxu0 0.0
  %67 = vmatpush.msra.mxu0 %v51
  %68 = vmatpush.msra.mxu0 %v14
  %69 = vmatmul.f32.gmra.mxu0 %v29
  %v70 = vpop.f32.mrf.mxu0
  %v71 = vadd.f32 %v25, %v70
  %72 = vmatmul.f32.gmra.mxu0 %v32
  %v73 = vpop.f32.mrf.mxu0
  %v74 = vadd.f32 %v25, %v73
  %75 = vmatmul.f32.gmra.mxu0 %v35
  %v76 = vpop.f32.mrf.mxu0
  %v77 = vadd.f32 %v25, %v76
  %78 = vmatmul.f32.gmra.mxu0 %v38
  %v79 = vpop.f32.mrf.mxu0
  %v80 = vadd.f32 %v25, %v79
  %81 = vmatmul.f32.gmra.mxu0 %v41
  %v82 = vpop.f32.mrf.mxu0
  %v83 = vadd.f32 %v25, %v82
  %84 = vmatmul.f32.gmra.mxu0 %v44
  %v85 = vpop.f32.mrf.mxu0
  %v86 = vadd.f32 %v25, %v85
  %87 = vmatmul.f32.gmra.mxu0 %v47
  %v88 = vpop.f32.mrf.mxu0
  %v89 = vadd.f32 %v25, %v88
  %90 = vdwg.mxu0
  %v91 = vmax.f32 %v71, 0.0
  %v92 = vmax.f32 %v74, 0.0
  %v93 = vmax.f32 %v77, 0.0
  %v94 = vmax.f32 %v80, 0.0
  %v95 = vmax.f32 %v83, 0.0
  %v96 = vmax.f32 %v86, 0.0
  %v97 = vmax.f32 %v89, 0.0
  %s98 = scalar_lea.vmem %s0, 56
  %v99 = vld [vmem:[%s98] sm:$0xff]
  %v100 = vld [vmem:[%s98 + $0x8] sm:$0xff]
  %v101 = vld [vmem:[%s98 + $0x10] sm:$0xff]
  %v102 = vld [vmem:[%s98 + $0x18] sm:$0xff]
  %v103 = vld [vmem:[%s98 + $0x20] sm:$0xff]
  %v104 = vld [vmem:[%s98 + $0x28] sm:$0xff]
  %v105 = vld [vmem:[%s98 + $0x30] sm:$0x3]
  %v107 = vsel %vm27, %v99, 0
  %v110 = vsel %vm27, %v100, 0
  %v113 = vsel %vm27, %v101, 0
  %v116 = vsel %vm27, %v102, 0
  %v119 = vsel %vm27, %v103, 0
  %v122 = vsel %vm27, %v104, 0
  %v125 = vsel %vm27, %v105, 0
  %127 = vmatpush.msra.mxu0 0.0
  %128 = vmatpush.msra.mxu0 0.0
  %129 = vmatpush.msra.mxu0 0.0
  %130 = vmatpush.msra.mxu0 0.0
  %131 = vmatpush.msra.mxu0 0.0
  %132 = vmatpush.msra.mxu0 0.0
  %133 = vmatpush.msra.mxu0 0.0
  %134 = vmatpush.msra.mxu0 0.0
  %135 = vmatpush.msra.mxu0 0.0
  %136 = vmatpush.msra.mxu0 0.0
  %137 = vmatpush.msra.mxu0 0.0
  %138 = vmatpush.msra.mxu0 0.0
  %139 = vmatpush.msra.mxu0 0.0
  %140 = vmatpush.msra.mxu0 0.0
  %141 = vmatpush.msra.mxu0 %v51
  %142 = vmatpush.msra.mxu0 %v14
  %143 = vmatmul.f32.gmra.mxu0 %v107
  %v144 = vpop.f32.mrf.mxu0
  %v145 = vadd.f32 %v25, %v144
  %146 = vmatmul.f32.gmra.mxu0 %v110
  %v147 = vpop.f32.mrf.mxu0
  %v148 = vadd.f32 %v25, %v147
  %149 = vmatmul.f32.gmra.mxu0 %v113
  %v150 = vpop.f32.mrf.mxu0
  %v151 = vadd.f32 %v25, %v150
  %152 = vmatmul.f32.gmra.mxu0 %v116
  %v153 = vpop.f32.mrf.mxu0
  %v154 = vadd.f32 %v25, %v153
  %155 = vmatmul.f32.gmra.mxu0 %v119
  %v156 = vpop.f32.mrf.mxu0
  %v157 = vadd.f32 %v25, %v156
  %158 = vmatmul.f32.gmra.mxu0 %v122
  %v159 = vpop.f32.mrf.mxu0
  %v160 = vadd.f32 %v25, %v159
  %161 = vmatmul.f32.gmra.mxu0 %v125
  %v162 = vpop.f32.mrf.mxu0
  %v163 = vadd.f32 %v25, %v162
  %164 = vdwg.mxu0
  %v165 = vmax.f32 %v145, 0.0
  %v166 = vmax.f32 %v148, 0.0
  %v167 = vmax.f32 %v151, 0.0
  %v168 = vmax.f32 %v154, 0.0
  %v169 = vmax.f32 %v157, 0.0
  %v170 = vmax.f32 %v160, 0.0
  %v171 = vmax.f32 %v163, 0.0
  %v172 = vmax.f32 %v91, %v165
  %v173 = vmax.f32 %v92, %v166
  %v174 = vmax.f32 %v93, %v167
  %v175 = vmax.f32 %v94, %v168
  %v176 = vmax.f32 %v95, %v169
  %v177 = vmax.f32 %v96, %v170
  %v178 = vmax.f32 %v97, %v171
  %s179 = scalar_lea.vmem %s0, 112
  %v180 = vld [vmem:[%s179] sm:$0xff]
  %v181 = vld [vmem:[%s179 + $0x8] sm:$0xff]
  %v182 = vld [vmem:[%s179 + $0x10] sm:$0xff]
  %v183 = vld [vmem:[%s179 + $0x18] sm:$0xff]
  %v184 = vld [vmem:[%s179 + $0x20] sm:$0xff]
  %v185 = vld [vmem:[%s179 + $0x28] sm:$0xff]
  %v186 = vld [vmem:[%s179 + $0x30] sm:$0x3]
  %v188 = vsel %vm27, %v180, 0
  %v191 = vsel %vm27, %v181, 0
  %v194 = vsel %vm27, %v182, 0
  %v197 = vsel %vm27, %v183, 0
  %v200 = vsel %vm27, %v184, 0
  %v203 = vsel %vm27, %v185, 0
  %v206 = vsel %vm27, %v186, 0
  %208 = vmatpush.msra.mxu0 0.0
  %209 = vmatpush.msra.mxu0 0.0
  %210 = vmatpush.msra.mxu0 0.0
  %211 = vmatpush.msra.mxu0 0.0
  %212 = vmatpush.msra.mxu0 0.0
  %213 = vmatpush.msra.mxu0 0.0
  %214 = vmatpush.msra.mxu0 0.0
  %215 = vmatpush.msra.mxu0 0.0
  %216 = vmatpush.msra.mxu0 0.0
  %217 = vmatpush.msra.mxu0 0.0
  %218 = vmatpush.msra.mxu0 0.0
  %219 = vmatpush.msra.mxu0 0.0
  %220 = vmatpush.msra.mxu0 0.0
  %221 = vmatpush.msra.mxu0 0.0
  %222 = vmatpush.msra.mxu0 %v51
  %223 = vmatpush.msra.mxu0 %v14
  %224 = vmatmul.f32.gmra.mxu0 %v188
  %v225 = vpop.f32.mrf.mxu0
  %v226 = vadd.f32 %v25, %v225
  %227 = vmatmul.f32.gmra.mxu0 %v191
  %v228 = vpop.f32.mrf.mxu0
  %v229 = vadd.f32 %v25, %v228
  %230 = vmatmul.f32.gmra.mxu0 %v194
  %v231 = vpop.f32.mrf.mxu0
  %v232 = vadd.f32 %v25, %v231
  %233 = vmatmul.f32.gmra.mxu0 %v197
  %v234 = vpop.f32.mrf.mxu0
  %v235 = vadd.f32 %v25, %v234
  %236 = vmatmul.f32.gmra.mxu0 %v200
  %v237 = vpop.f32.mrf.mxu0
  %v238 = vadd.f32 %v25, %v237
  %239 = vmatmul.f32.gmra.mxu0 %v203
  %v240 = vpop.f32.mrf.mxu0
  %v241 = vadd.f32 %v25, %v240
  %242 = vmatmul.f32.gmra.mxu0 %v206
  %v243 = vpop.f32.mrf.mxu0
  %v244 = vadd.f32 %v25, %v243
  %245 = vdwg.mxu0
  %v246 = vmax.f32 %v226, 0.0
  %v247 = vmax.f32 %v229, 0.0
  %v248 = vmax.f32 %v232, 0.0
  %v249 = vmax.f32 %v235, 0.0
  %v250 = vmax.f32 %v238, 0.0
  %v251 = vmax.f32 %v241, 0.0
  %v252 = vmax.f32 %v244, 0.0
  %v253 = vmax.f32 %v172, %v246
  %v254 = vmax.f32 %v173, %v247
  %v255 = vmax.f32 %v174, %v248
  %v256 = vmax.f32 %v175, %v249
  %v257 = vmax.f32 %v176, %v250
  %v258 = vmax.f32 %v177, %v251
  %v259 = vmax.f32 %v178, %v252
  %s260 = scalar_lea.vmem %s0, 168
  %v261 = vld [vmem:[%s260] sm:$0xff]
  %v262 = vld [vmem:[%s260 + $0x8] sm:$0xff]
  %v263 = vld [vmem:[%s260 + $0x10] sm:$0xff]
  %v264 = vld [vmem:[%s260 + $0x18] sm:$0xff]
  %v265 = vld [vmem:[%s260 + $0x20] sm:$0xff]
  %v266 = vld [vmem:[%s260 + $0x28] sm:$0xff]
  %v267 = vld [vmem:[%s260 + $0x30] sm:$0x3]
  %v269 = vsel %vm27, %v261, 0
  %v272 = vsel %vm27, %v262, 0
  %v275 = vsel %vm27, %v263, 0
  %v278 = vsel %vm27, %v264, 0
  %v281 = vsel %vm27, %v265, 0
  %v284 = vsel %vm27, %v266, 0
  %v287 = vsel %vm27, %v267, 0
  %289 = vmatpush.msra.mxu0 0.0
  %290 = vmatpush.msra.mxu0 0.0
  %291 = vmatpush.msra.mxu0 0.0
  %292 = vmatpush.msra.mxu0 0.0
  %293 = vmatpush.msra.mxu0 0.0
  %294 = vmatpush.msra.mxu0 0.0
  %295 = vmatpush.msra.mxu0 0.0
  %296 = vmatpush.msra.mxu0 0.0
  %297 = vmatpush.msra.mxu0 0.0
  %298 = vmatpush.msra.mxu0 0.0
  %299 = vmatpush.msra.mxu0 0.0
  %300 = vmatpush.msra.mxu0 0.0
  %301 = vmatpush.msra.mxu0 0.0
  %302 = vmatpush.msra.mxu0 0.0
  %303 = vmatpush.msra.mxu0 %v51
  %304 = vmatpush.msra.mxu0 %v14
  %305 = vmatmul.f32.gmra.mxu0 %v269
  %v306 = vpop.f32.mrf.mxu0
  %v307 = vadd.f32 %v25, %v306
  %308 = vmatmul.f32.gmra.mxu0 %v272
  %v309 = vpop.f32.mrf.mxu0
  %v310 = vadd.f32 %v25, %v309
  %311 = vmatmul.f32.gmra.mxu0 %v275
  %v312 = vpop.f32.mrf.mxu0
  %v313 = vadd.f32 %v25, %v312
  %314 = vmatmul.f32.gmra.mxu0 %v278
  %v315 = vpop.f32.mrf.mxu0
  %v316 = vadd.f32 %v25, %v315
  %317 = vmatmul.f32.gmra.mxu0 %v281
  %v318 = vpop.f32.mrf.mxu0
  %v319 = vadd.f32 %v25, %v318
  %320 = vmatmul.f32.gmra.mxu0 %v284
  %v321 = vpop.f32.mrf.mxu0
  %v322 = vadd.f32 %v25, %v321
  %323 = vmatmul.f32.gmra.mxu0 %v287
  %v324 = vpop.f32.mrf.mxu0
  %v325 = vadd.f32 %v25, %v324
  %326 = vdwg.mxu0
  %v327 = vmax.f32 %v307, 0.0
  %v328 = vmax.f32 %v310, 0.0
  %v329 = vmax.f32 %v313, 0.0
  %v330 = vmax.f32 %v316, 0.0
  %v331 = vmax.f32 %v319, 0.0
  %v332 = vmax.f32 %v322, 0.0
  %v333 = vmax.f32 %v325, 0.0
  %v334 = vmax.f32 %v253, %v327
  %v335 = vmax.f32 %v254, %v328
  %v336 = vmax.f32 %v255, %v329
  %v337 = vmax.f32 %v256, %v330
  %v338 = vmax.f32 %v257, %v331
  %v339 = vmax.f32 %v258, %v332
  %v340 = vmax.f32 %v259, %v333
  %vm341 = vcmask 130048
  %342 = vst.msk [vmem:[%s3] sm:$0xff] %vm341, %v334
  %343 = vst.msk [vmem:[%s3 + $0x8] sm:$0xff] %vm341, %v335
  %344 = vst.msk [vmem:[%s3 + $0x10] sm:$0xff] %vm341, %v336
  %345 = vst.msk [vmem:[%s3 + $0x18] sm:$0xff] %vm341, %v337
  %346 = vst.msk [vmem:[%s3 + $0x20] sm:$0xff] %vm341, %v338
  %347 = vst.msk [vmem:[%s3 + $0x28] sm:$0xff] %vm341, %v339
  %vm348 = vcmask 123904
  %349 = vst.msk [vmem:[%s3 + $0x30] sm:$0x3] %vm348, %v340
  // Predicated region
  $region14: #{m1_ff_forward.2} parent=0 // pred_check
    _
  $region15: #{m1_ff_forward.2} parent=0 // pred_check_branch
    %351 = sbr.rel (0) target = $region17
  $region16: #{m1_ff_forward.2} parent=0 // pred_region
    _
  $region17: #{m1_ff_forward.2} parent=0 // pred_fallthru
    _
  // Predicated region
  $region18: #{m1_ff_forward.2} parent=0 // pred_check
    _
  $region19: #{m1_ff_forward.2} parent=0 // pred_check_branch
    %353 = sbr.rel (0) target = $region21
  $region20: #{m1_ff_forward.2} parent=0 // pred_region
    _
  $region21: #{m1_ff_forward.2} parent=0 // pred_fallthru
    _

// kernel: m1_ff_forward.3
$region0: #{m1_ff_forward.3}
  #allocation0 [shape = 'u32[]', space=smem, size = 0x4, offset = 0x4, fixed_abs, tag = 'smem constant byte address 0x4 - core index']
  #allocation1 [shape = 'u32[72,128]{1,0:T(1,128)}', space=vmem, size = 0x9000, scoped, tag = 'internal scratch']
  %s0 = inlined_call_operand.vmem [shape: f32[4,2,576], index: 0, kind: input, shape index: {}]
  %s1 = inlined_call_operand.vmem [shape: f32[576,32], index: 1, kind: input, shape index: {}]
  %s2 = inlined_call_operand.vmem [shape: f32[1,32], index: 2, kind: input, shape index: {}]
  %s3 = inlined_call_operand.vmem [shape: bf16[32,400], index: 3, kind: input, shape index: {}]
  %s4 = inlined_call_operand.vmem [shape: f32[1,400], index: 4, kind: input, shape index: {}]
  %s5 = inlined_call_operand.vmem [shape: f32[400,256], index: 5, kind: input, shape index: {}]
  %s6 = inlined_call_operand.vmem [shape: f32[1,256], index: 6, kind: input, shape index: {}]
  %s7 = inlined_call_operand.vmem [shape: bf16[128,400], index: 7, kind: input, shape index: {}]
  %s8 = inlined_call_operand.vmem [shape: f32[1,400], index: 8, kind: input, shape index: {}]
  %s9 = inlined_call_operand.vmem [shape: bf16[400,896], index: 9, kind: input, shape index: {}]
  %s10 = inlined_call_operand.vmem [shape: f32[1,896], index: 10, kind: input, shape index: {}]
  %s11 = inlined_call_operand.vmem [shape: f32[2,896], index: 11, kind: input, shape index: {}]
  %s12 = inlined_call_operand.hbm [shape: f32[2,896], index: 12, kind: output, shape index: {0}]
  %s13 = inlined_call_operand.hbm [shape: f32[1,1], index: 13, kind: output, shape index: {1}]
  %14 = xla_tuple %s12, %s13
  %s15 = sld [smem:[#allocation0]]
  $region66: #{m1_ff_forward.3} parent=0
    _
  %s17 = ssub.s32 1, %s15
  %s18 = scalar_select 0, %s17, %s15
  $region1: #{m1_ff_forward.3} parent=0
    #allocation2 [shape = 'u8[7168]{0}', space=vmem, size = 0x1c00, scoped, tag = 'output window, operand 0, single buffered']
    #allocation3 [shape = 's32[1]{0}', space=sflag, size = 0x4, scoped, tag = 'scoped memory for m1_ff_forward.3']
    #allocation4 [shape = 'u8[512]{0}', space=vmem, size = 0x400, scoped, tag = 'output window, operand 1, single buffered']
    #allocation5 [shape = 's32[1]{0}', space=sflag, size = 0x4, scoped, tag = 'scoped memory for m1_ff_forward.3']
    %19 = vsyncpa [#allocation3], 0
    %20 = vsyncpa [#allocation5], 0
    // Predicated region
    $region2: #{m1_ff_forward.3} parent=1 // pred_check
      _
    $region3: #{m1_ff_forward.3} parent=1 // pred_check_branch
      %22 = sbr.rel (0) target = $region5
    $region4: #{m1_ff_forward.3} parent=1 // pred_region
      _
    $region5: #{m1_ff_forward.3} parent=1 // pred_fallthru
      _
    // Predicated region
    $region6: #{m1_ff_forward.3} parent=1 // pred_check
      _
    $region7: #{m1_ff_forward.3} parent=1 // pred_check_branch
      %24 = sbr.rel (0) target = $region9
    $region8: #{m1_ff_forward.3} parent=1 // pred_region
      _
    $region9: #{m1_ff_forward.3} parent=1 // pred_fallthru
      _
    // Predicated region
    $region10: #{m1_ff_forward.3} parent=1 // pred_check
      _
    $region11: #{m1_ff_forward.3} parent=1 // pred_check_branch
      %26 = sbr.rel (0) target = $region13
    $region12: #{m1_ff_forward.3} parent=1 // pred_region
      _
    $region13: #{m1_ff_forward.3} parent=1 // pred_fallthru
      _
    // Predicated region
    $region14: #{m1_ff_forward.3} parent=1 // pred_check
      _
    $region15: #{m1_ff_forward.3} parent=1 // pred_check_branch
      %28 = sbr.rel (0) target = $region17
    $region16: #{m1_ff_forward.3} parent=1 // pred_region
      _
    $region17: #{m1_ff_forward.3} parent=1 // pred_fallthru
      _
    // Predicated region
    $region18: #{m1_ff_forward.3} parent=1 // pred_check
      _
    $region19: #{m1_ff_forward.3} parent=1 // pred_check_branch
      %30 = sbr.rel (0) target = $region21
    $region20: #{m1_ff_forward.3} parent=1 // pred_region
      _
    $region21: #{m1_ff_forward.3} parent=1 // pred_fallthru
      _
    // Predicated region
    $region22: #{m1_ff_forward.3} parent=1 // pred_check
      _
    $region23: #{m1_ff_forward.3} parent=1 // pred_check_branch
      %32 = sbr.rel (0) target = $region25
    $region24: #{m1_ff_forward.3} parent=1 // pred_region
      _
    $region25: #{m1_ff_forward.3} parent=1 // pred_fallthru
      _
    // Predicated region
    $region26: #{m1_ff_forward.3} parent=1 // pred_check
      _
    $region27: #{m1_ff_forward.3} parent=1 // pred_check_branch
      %34 = sbr.rel (0) target = $region29
    $region28: #{m1_ff_forward.3} parent=1 // pred_region
      _
    $region29: #{m1_ff_forward.3} parent=1 // pred_fallthru
      _
    // Predicated region
    $region30: #{m1_ff_forward.3} parent=1 // pred_check
      _
    $region31: #{m1_ff_forward.3} parent=1 // pred_check_branch
      %36 = sbr.rel (0) target = $region33
    $region32: #{m1_ff_forward.3} parent=1 // pred_region
      _
    $region33: #{m1_ff_forward.3} parent=1 // pred_fallthru
      _
    // Predicated region
    $region34: #{m1_ff_forward.3} parent=1 // pred_check
      _
    $region35: #{m1_ff_forward.3} parent=1 // pred_check_branch
      %38 = sbr.rel (0) target = $region37
    $region36: #{m1_ff_forward.3} parent=1 // pred_region
      _
    $region37: #{m1_ff_forward.3} parent=1 // pred_fallthru
      _
    // Predicated region
    $region38: #{m1_ff_forward.3} parent=1 // pred_check
      _
    $region39: #{m1_ff_forward.3} parent=1 // pred_check_branch
      %40 = sbr.rel (0) target = $region41
    $region40: #{m1_ff_forward.3} parent=1 // pred_region
      _
    $region41: #{m1_ff_forward.3} parent=1 // pred_fallthru
      _
    // Predicated region
    $region42: #{m1_ff_forward.3} parent=1 // pred_check
      _
    $region43: #{m1_ff_forward.3} parent=1 // pred_check_branch
      %42 = sbr.rel (0) target = $region45
    $region44: #{m1_ff_forward.3} parent=1 // pred_region
      _
    $region45: #{m1_ff_forward.3} parent=1 // pred_fallthru
      _
    // Predicated region
    $region46: #{m1_ff_forward.3} parent=1 // pred_check
      _
    $region47: #{m1_ff_forward.3} parent=1 // pred_check_branch
      %44 = sbr.rel (0) target = $region49
    $region48: #{m1_ff_forward.3} parent=1 // pred_region
      _
    $region49: #{m1_ff_forward.3} parent=1 // pred_fallthru
      _
    %v46 = vld [vmem:[%s1] sm:$0xff]
    %v47 = vld [vmem:[%s1 + $0x8] sm:$0xff]
    %v48 = vld [vmem:[%s1 + $0x10] sm:$0xff]
    %v49 = vld [vmem:[%s1 + $0x18] sm:$0xff]
    %v50 = vld [vmem:[%s1 + $0x20] sm:$0xff]
    %v51 = vld [vmem:[%s1 + $0x28] sm:$0xff]
    %v52 = vld [vmem:[%s1 + $0x30] sm:$0xff]
    %v53 = vld [vmem:[%s1 + $0x38] sm:$0xff]
    %v54 = vld [vmem:[%s1 + $0x40] sm:$0xff]
    %v55 = vld [vmem:[%s1 + $0x48] sm:$0xff]
    %v56 = vld [vmem:[%s1 + $0x50] sm:$0xff]
    %v57 = vld [vmem:[%s1 + $0x58] sm:$0xff]
    %v58 = vld [vmem:[%s1 + $0x60] sm:$0xff]
    %v59 = vld [vmem:[%s1 + $0x68] sm:$0xff]
    %v60 = vld [vmem:[%s1 + $0x70] sm:$0xff]
    %v61 = vld [vmem:[%s1 + $0x78] sm:$0xff]
    %v62 = vld [vmem:[%s1 + $0x80] sm:$0xff]
    %v63 = vld [vmem:[%s1 + $0x88] sm:$0xff]
    %v64 = vld [vmem:[%s1 + $0x90] sm:$0xff]
    %v65 = vld [vmem:[%s1 + $0x98] sm:$0xff]
    %v66 = vld [vmem:[%s1 + $0xa0] sm:$0xff]
    %v67 = vld [vmem:[%s1 + $0xa8] sm:$0xff]
    %v68 = vld [vmem:[%s1 + $0xb0] sm:$0xff]
    %v69 = vld [vmem:[%s1 + $0xb8] sm:$0xff]
    %v70 = vld [vmem:[%s1 + $0xc0] sm:$0xff]
    %v71 = vld [vmem:[%s1 + $0xc8] sm:$0xff]
    %v72 = vld [vmem:[%s1 + $0xd0] sm:$0xff]
    %v73 = vld [vmem:[%s1 + $0xd8] sm:$0xff]
    %v74 = vld [vmem:[%s1 + $0xe0] sm:$0xff]
    %v75 = vld [vmem:[%s1 + $0xe8] sm:$0xff]
    %v76 = vld [vmem:[%s1 + $0xf0] sm:$0xff]
    %v77 = vld [vmem:[%s1 + $0xf8] sm:$0xff]
    %v78 = vld [vmem:[%s1 + $0x100] sm:$0xff]
    %v79 = vld [vmem:[%s1 + $0x108] sm:$0xff]
    %v80 = vld [vmem:[%s1 + $0x110] sm:$0xff]
    %v81 = vld [vmem:[%s1 + $0x118] sm:$0xff]
    %v82 = vld [vmem:[%s1 + $0x120] sm:$0xff]
    %v83 = vld [vmem:[%s1 + $0x128] sm:$0xff]
    %v84 = vld [vmem:[%s1 + $0x130] sm:$0xff]
    %v85 = vld [vmem:[%s1 + $0x138] sm:$0xff]
    %v86 = vld [vmem:[%s1 + $0x140] sm:$0xff]
    %v87 = vld [vmem:[%s1 + $0x148] sm:$0xff]
    %v88 = vld [vmem:[%s1 + $0x150] sm:$0xff]
    %v89 = vld [vmem:[%s1 + $0x158] sm:$0xff]
    %v90 = vld [vmem:[%s1 + $0x160] sm:$0xff]
    %v91 = vld [vmem:[%s1 + $0x168] sm:$0xff]
    %v92 = vld [vmem:[%s1 + $0x170] sm:$0xff]
    %v93 = vld [vmem:[%s1 + $0x178] sm:$0xff]
    %v94 = vld [vmem:[%s1 + $0x180] sm:$0xff]
    %v95 = vld [vmem:[%s1 + $0x188] sm:$0xff]
    %v96 = vld [vmem:[%s1 + $0x190] sm:$0xff]
    %v97 = vld [vmem:[%s1 + $0x198] sm:$0xff]
    %v98 = vld [vmem:[%s1 + $0x1a0] sm:$0xff]
    %v99 = vld [vmem:[%s1 + $0x1a8] sm:$0xff]
    %v100 = vld [vmem:[%s1 + $0x1b0] sm:$0xff]
    %v101 = vld [vmem:[%s1 + $0x1b8] sm:$0xff]
    %v102 = vld [vmem:[%s1 + $0x1c0] sm:$0xff]
    %v103 = vld [vmem:[%s1 + $0x1c8] sm:$0xff]
    %v104 = vld [vmem:[%s1 + $0x1d0] sm:$0xff]
    %v105 = vld [vmem:[%s1 + $0x1d8] sm:$0xff]
    %v106 = vld [vmem:[%s1 + $0x1e0] sm:$0xff]
    %v107 = vld [vmem:[%s1 + $0x1e8] sm:$0xff]
    %v108 = vld [vmem:[%s1 + $0x1f0] sm:$0xff]
    %v109 = vld [vmem:[%s1 + $0x1f8] sm:$0xff]
    %v110 = vld [vmem:[%s1 + $0x200] sm:$0xff]
    %v111 = vld [vmem:[%s1 + $0x208] sm:$0xff]
    %v112 = vld [vmem:[%s1 + $0x210] sm:$0xff]
    %v113 = vld [vmem:[%s1 + $0x218] sm:$0xff]
    %v114 = vld [vmem:[%s1 + $0x220] sm:$0xff]
    %v115 = vld [vmem:[%s1 + $0x228] sm:$0xff]
    %v116 = vld [vmem:[%s1 + $0x230] sm:$0xff]
    %v117 = vld [vmem:[%s1 + $0x238] sm:$0xff]
    %v118 = vld [vmem:[%s2] sm:$0x1]
    %v119 = vld [vmem:[%s0] sm:$0xff]
    %v120 = vld [vmem:[%s0 + $0x8] sm:$0x3]
    %v122 = vperm.slane %v118, 0
    %126 = vst [vmem:[#allocation1] ss:$4 sm:$0xff] %v119
    %s127 = scalar_lea.vmem [#allocation1], 32
    %128 = vst [vmem:[%s127] ss:$4 sm:$0xff] %v120
    %v129 = vld.sshfl [vmem:[#allocation1] sm:$0xff pattern:$0x73625140]
    %v130 = vld.sshfl [vmem:[#allocation1 + $0x8] sm:$0xff pattern:$0x73625140]
    %v131 = vld.sshfl [vmem:[#allocation1 + $0x10] sm:$0xff pattern:$0x73625140]
    %v132 = vld.sshfl [vmem:[#allocation1 + $0x18] sm:$0xff pattern:$0x73625140]
    %v133 = vld.sshfl [vmem:[#allocation1 + $0x20] sm:$0xff pattern:$0x73625140]
    %vm138 = vcmask 523264
    %v139 = vsel %vm138, %v133, 0
    %141 = vmatpush.msra.mxu0 %v61
    %142 = vmatpush.msra.mxu0 %v60
    %143 = vmatpush.msra.mxu0 %v59
    %144 = vmatpush.msra.mxu0 %v58
    %145 = vmatpush.msra.mxu0 %v57
    %146 = vmatpush.msra.mxu0 %v56
    %147 = vmatpush.msra.mxu0 %v55
    %148 = vmatpush.msra.mxu0 %v54
    %149 = vmatpush.msra.mxu0 %v53
    %150 = vmatpush.msra.mxu0 %v52
    %151 = vmatpush.msra.mxu0 %v51
    %152 = vmatpush.msra.mxu0 %v50
    %153 = vmatpush.msra.mxu0 %v49
    %154 = vmatpush.msra.mxu0 %v48
    %155 = vmatpush.msra.mxu0 %v47
    %156 = vmatpush.msra.mxu0 %v46
    %157 = vmatmul.f32.gmra.mxu0 %v129
    %v158 = vpop.f32.mrf.mxu0
    %v159 = vadd.f32 %v122, %v158
    %160 = vdwg.mxu0
    %161 = vmatpush.msra.mxu0 %v77
    %162 = vmatpush.msra.mxu0 %v76
    %163 = vmatpush.msra.mxu0 %v75
    %164 = vmatpush.msra.mxu0 %v74
    %165 = vmatpush.msra.mxu0 %v73
    %166 = vmatpush.msra.mxu0 %v72
    %167 = vmatpush.msra.mxu0 %v71
    %168 = vmatpush.msra.mxu0 %v70
    %169 = vmatpush.msra.mxu0 %v69
    %170 = vmatpush.msra.mxu0 %v68
    %171 = vmatpush.msra.mxu0 %v67
    %172 = vmatpush.msra.mxu0 %v66
    %173 = vmatpush.msra.mxu0 %v65
    %174 = vmatpush.msra.mxu0 %v64
    %175 = vmatpush.msra.mxu0 %v63
    %176 = vmatpush.msra.mxu0 %v62
    %177 = vmatmul.f32.gmra.mxu0 %v130
    %v178 = vpop.f32.mrf.mxu0
    %v179 = vadd.f32 %v159, %v178
    %180 = vdwg.mxu0
    %181 = vmatpush.msra.mxu0 %v93
    %182 = vmatpush.msra.mxu0 %v92
    %183 = vmatpush.msra.mxu0 %v91
    %184 = vmatpush.msra.mxu0 %v90
    %185 = vmatpush.msra.mxu0 %v89
    %186 = vmatpush.msra.mxu0 %v88
    %187 = vmatpush.msra.mxu0 %v87
    %188 = vmatpush.msra.mxu0 %v86
    %189 = vmatpush.msra.mxu0 %v85
    %190 = vmatpush.msra.mxu0 %v84
    %191 = vmatpush.msra.mxu0 %v83
    %192 = vmatpush.msra.mxu0 %v82
    %193 = vmatpush.msra.mxu0 %v81
    %194 = vmatpush.msra.mxu0 %v80
    %195 = vmatpush.msra.mxu0 %v79
    %196 = vmatpush.msra.mxu0 %v78
    %197 = vmatmul.f32.gmra.mxu0 %v131
    %v198 = vpop.f32.mrf.mxu0
    %v199 = vadd.f32 %v179, %v198
    %200 = vdwg.mxu0
    %201 = vmatpush.msra.mxu0 %v109
    %202 = vmatpush.msra.mxu0 %v108
    %203 = vmatpush.msra.mxu0 %v107
    %204 = vmatpush.msra.mxu0 %v106
    %205 = vmatpush.msra.mxu0 %v105
    %206 = vmatpush.msra.mxu0 %v104
    %207 = vmatpush.msra.mxu0 %v103
    %208 = vmatpush.msra.mxu0 %v102
    %209 = vmatpush.msra.mxu0 %v101
    %210 = vmatpush.msra.mxu0 %v100
    %211 = vmatpush.msra.mxu0 %v99
    %212 = vmatpush.msra.mxu0 %v98
    %213 = vmatpush.msra.mxu0 %v97
    %214 = vmatpush.msra.mxu0 %v96
    %215 = vmatpush.msra.mxu0 %v95
    %216 = vmatpush.msra.mxu0 %v94
    %217 = vmatmul.f32.gmra.mxu0 %v132
    %v218 = vpop.f32.mrf.mxu0
    %v219 = vadd.f32 %v199, %v218
    %220 = vdwg.mxu0
    %221 = vmatpush.msra.mxu0 0.0
    %222 = vmatpush.msra.mxu0 0.0
    %223 = vmatpush.msra.mxu0 0.0
    %224 = vmatpush.msra.mxu0 0.0
    %225 = vmatpush.msra.mxu0 0.0
    %226 = vmatpush.msra.mxu0 0.0
    %227 = vmatpush.msra.mxu0 0.0
    %228 = vmatpush.msra.mxu0 0.0
    %229 = vmatpush.msra.mxu0 %v117
    %230 = vmatpush.msra.mxu0 %v116
    %231 = vmatpush.msra.mxu0 %v115
    %232 = vmatpush.msra.mxu0 %v114
    %233 = vmatpush.msra.mxu0 %v113
    %234 = vmatpush.msra.mxu0 %v112
    %235 = vmatpush.msra.mxu0 %v111
    %236 = vmatpush.msra.mxu0 %v110
    %237 = vmatmul.f32.gmra.mxu0 %v139
    %v238 = vpop.f32.mrf.mxu0
    %v239 = vadd.f32 %v219, %v238
    %240 = vdwg.mxu0
    %v241 = vmax.f32 %v239, 0.0
    %s242 = scalar_lea.vmem %s0, 10
    %v243 = vld [vmem:[%s242] sm:$0xff]
    %v244 = vld [vmem:[%s242 + $0x8] sm:$0x3]
    %247 = vst [vmem:[#allocation1] ss:$4 sm:$0xff] %v243
    %s248 = scalar_lea.vmem [#allocation1], 32
    %249 = vst [vmem:[%s248] ss:$4 sm:$0xff] %v244
    %v250 = vld.sshfl [vmem:[#allocation1] sm:$0xff pattern:$0x73625140]
    %v251 = vld.sshfl [vmem:[#allocation1 + $0x8] sm:$0xff pattern:$0x73625140]
    %v252 = vld.sshfl [vmem:[#allocation1 + $0x10] sm:$0xff pattern:$0x73625140]
    %v253 = vld.sshfl [vmem:[#allocation1 + $0x18] sm:$0xff pattern:$0x73625140]
    %v254 = vld.sshfl [vmem:[#allocation1 + $0x20] sm:$0xff pattern:$0x73625140]
    %v259 = vsel %vm138, %v254, 0
    %261 = vmatpush.msra.mxu0 %v61
    %262 = vmatpush.msra.mxu0 %v60
    %263 = vmatpush.msra.mxu0 %v59
    %264 = vmatpush.msra.mxu0 %v58
    %265 = vmatpush.msra.mxu0 %v57
    %266 = vmatpush.msra.mxu0 %v56
    %267 = vmatpush.msra.mxu0 %v55
    %268 = vmatpush.msra.mxu0 %v54
    %269 = vmatpush.msra.mxu0 %v53
    %270 = vmatpush.msra.mxu0 %v52
    %271 = vmatpush.msra.mxu0 %v51
    %272 = vmatpush.msra.mxu0 %v50
    %273 = vmatpush.msra.mxu0 %v49
    %274 = vmatpush.msra.mxu0 %v48
    %275 = vmatpush.msra.mxu0 %v47
    %276 = vmatpush.msra.mxu0 %v46
    %277 = vmatmul.f32.gmra.mxu0 %v250
    %v278 = vpop.f32.mrf.mxu0
    %v279 = vadd.f32 %v122, %v278
    %280 = vdwg.mxu0
    %281 = vmatpush.msra.mxu0 %v77
    %282 = vmatpush.msra.mxu0 %v76
    %283 = vmatpush.msra.mxu0 %v75
    %284 = vmatpush.msra.mxu0 %v74
    %285 = vmatpush.msra.mxu0 %v73
    %286 = vmatpush.msra.mxu0 %v72
    %287 = vmatpush.msra.mxu0 %v71
    %288 = vmatpush.msra.mxu0 %v70
    %289 = vmatpush.msra.mxu0 %v69
    %290 = vmatpush.msra.mxu0 %v68
    %291 = vmatpush.msra.mxu0 %v67
    %292 = vmatpush.msra.mxu0 %v66
    %293 = vmatpush.msra.mxu0 %v65
    %294 = vmatpush.msra.mxu0 %v64
    %295 = vmatpush.msra.mxu0 %v63
    %296 = vmatpush.msra.mxu0 %v62
    %297 = vmatmul.f32.gmra.mxu0 %v251
    %v298 = vpop.f32.mrf.mxu0
    %v299 = vadd.f32 %v279, %v298
    %300 = vdwg.mxu0
    %301 = vmatpush.msra.mxu0 %v93
    %302 = vmatpush.msra.mxu0 %v92
    %303 = vmatpush.msra.mxu0 %v91
    %304 = vmatpush.msra.mxu0 %v90
    %305 = vmatpush.msra.mxu0 %v89
    %306 = vmatpush.msra.mxu0 %v88
    %307 = vmatpush.msra.mxu0 %v87
    %308 = vmatpush.msra.mxu0 %v86
    %309 = vmatpush.msra.mxu0 %v85
    %310 = vmatpush.msra.mxu0 %v84
    %311 = vmatpush.msra.mxu0 %v83
    %312 = vmatpush.msra.mxu0 %v82
    %313 = vmatpush.msra.mxu0 %v81
    %314 = vmatpush.msra.mxu0 %v80
    %315 = vmatpush.msra.mxu0 %v79
    %316 = vmatpush.msra.mxu0 %v78
    %317 = vmatmul.f32.gmra.mxu0 %v252
    %v318 = vpop.f32.mrf.mxu0
    %v319 = vadd.f32 %v299, %v318
    %320 = vdwg.mxu0
    %321 = vmatpush.msra.mxu0 %v109
    %322 = vmatpush.msra.mxu0 %v108
    %323 = vmatpush.msra.mxu0 %v107
    %324 = vmatpush.msra.mxu0 %v106
    %325 = vmatpush.msra.mxu0 %v105
    %326 = vmatpush.msra.mxu0 %v104
    %327 = vmatpush.msra.mxu0 %v103
    %328 = vmatpush.msra.mxu0 %v102
    %329 = vmatpush.msra.mxu0 %v101
    %330 = vmatpush.msra.mxu0 %v100
    %331 = vmatpush.msra.mxu0 %v99
    %332 = vmatpush.msra.mxu0 %v98
    %333 = vmatpush.msra.mxu0 %v97
    %334 = vmatpush.msra.mxu0 %v96
    %335 = vmatpush.msra.mxu0 %v95
    %336 = vmatpush.msra.mxu0 %v94
    %337 = vmatmul.f32.gmra.mxu0 %v253
    %v338 = vpop.f32.mrf.mxu0
    %v339 = vadd.f32 %v319, %v338
    %340 = vdwg.mxu0
    %341 = vmatpush.msra.mxu0 0.0
    %342 = vmatpush.msra.mxu0 0.0
    %343 = vmatpush.msra.mxu0 0.0
    %344 = vmatpush.msra.mxu0 0.0
    %345 = vmatpush.msra.mxu0 0.0
    %346 = vmatpush.msra.mxu0 0.0
    %347 = vmatpush.msra.mxu0 0.0
    %348 = vmatpush.msra.mxu0 0.0
    %349 = vmatpush.msra.mxu0 %v117
    %350 = vmatpush.msra.mxu0 %v116
    %351 = vmatpush.msra.mxu0 %v115
    %352 = vmatpush.msra.mxu0 %v114
    %353 = vmatpush.msra.mxu0 %v113
    %354 = vmatpush.msra.mxu0 %v112
    %355 = vmatpush.msra.mxu0 %v111
    %356 = vmatpush.msra.mxu0 %v110
    %357 = vmatmul.f32.gmra.mxu0 %v259
    %v358 = vpop.f32.mrf.mxu0
    %v359 = vadd.f32 %v339, %v358
    %360 = vdwg.mxu0
    %v361 = vmax.f32 %v359, 0.0
    %v362 = vmax.f32 %v241, %v361
    %s363 = scalar_lea.vmem %s0, 20
    %v364 = vld [vmem:[%s363] sm:$0xff]
    %v365 = vld [vmem:[%s363 + $0x8] sm:$0x3]
    %368 = vst [vmem:[#allocation1] ss:$4 sm:$0xff] %v364
    %s369 = scalar_lea.vmem [#allocation1], 32
    %370 = vst [vmem:[%s369] ss:$4 sm:$0xff] %v365
    %v371 = vld.sshfl [vmem:[#allocation1] sm:$0xff pattern:$0x73625140]
    %v372 = vld.sshfl [vmem:[#allocation1 + $0x8] sm:$0xff pattern:$0x73625140]
    %v373 = vld.sshfl [vmem:[#allocation1 + $0x10] sm:$0xff pattern:$0x73625140]
    %v374 = vld.sshfl [vmem:[#allocation1 + $0x18] sm:$0xff pattern:$0x73625140]
    %v375 = vld.sshfl [vmem:[#allocation1 + $0x20] sm:$0xff pattern:$0x73625140]
    %v380 = vsel %vm138, %v375, 0
    %382 = vmatpush.msra.mxu0 %v61
    %383 = vmatpush.msra.mxu0 %v60
    %384 = vmatpush.msra.mxu0 %v59
    %385 = vmatpush.msra.mxu0 %v58
    %386 = vmatpush.msra.mxu0 %v57
    %387 = vmatpush.msra.mxu0 %v56
    %388 = vmatpush.msra.mxu0 %v55
    %389 = vmatpush.msra.mxu0 %v54
    %390 = vmatpush.msra.mxu0 %v53
    %391 = vmatpush.msra.mxu0 %v52
    %392 = vmatpush.msra.mxu0 %v51
    %393 = vmatpush.msra.mxu0 %v50
    %394 = vmatpush.msra.mxu0 %v49
    %395 = vmatpush.msra.mxu0 %v48
    %396 = vmatpush.msra.mxu0 %v47
    %397 = vmatpush.msra.mxu0 %v46
    %398 = vmatmul.f32.gmra.mxu0 %v371
    %v399 = vpop.f32.mrf.mxu0
    %v400 = vadd.f32 %v122, %v399
    %401 = vdwg.mxu0
    %402 = vmatpush.msra.mxu0 %v77
    %403 = vmatpush.msra.mxu0 %v76
    %404 = vmatpush.msra.mxu0 %v75
    %405 = vmatpush.msra.mxu0 %v74
    %406 = vmatpush.msra.mxu0 %v73
    %407 = vmatpush.msra.mxu0 %v72
    %408 = vmatpush.msra.mxu0 %v71
    %409 = vmatpush.msra.mxu0 %v70
    %410 = vmatpush.msra.mxu0 %v69
    %411 = vmatpush.msra.mxu0 %v68
    %412 = vmatpush.msra.mxu0 %v67
    %413 = vmatpush.msra.mxu0 %v66
    %414 = vmatpush.msra.mxu0 %v65
    %415 = vmatpush.msra.mxu0 %v64
    %416 = vmatpush.msra.mxu0 %v63
    %417 = vmatpush.msra.mxu0 %v62
    %418 = vmatmul.f32.gmra.mxu0 %v372
    %v419 = vpop.f32.mrf.mxu0
    %v420 = vadd.f32 %v400, %v419
    %421 = vdwg.mxu0
    %422 = vmatpush.msra.mxu0 %v93
    %423 = vmatpush.msra.mxu0 %v92
    %424 = vmatpush.msra.mxu0 %v91
    %425 = vmatpush.msra.mxu0 %v90
    %426 = vmatpush.msra.mxu0 %v89
    %427 = vmatpush.msra.mxu0 %v88
    %428 = vmatpush.msra.mxu0 %v87
    %429 = vmatpush.msra.mxu0 %v86
    %430 = vmatpush.msra.mxu0 %v85
    %431 = vmatpush.msra.mxu0 %v84
    %432 = vmatpush.msra.mxu0 %v83
    %433 = vmatpush.msra.mxu0 %v82
    %434 = vmatpush.msra.mxu0 %v81
    %435 = vmatpush.msra.mxu0 %v80
    %436 = vmatpush.msra.mxu0 %v79
    %437 = vmatpush.msra.mxu0 %v78
    %438 = vmatmul.f32.gmra.mxu0 %v373
    %v439 = vpop.f32.mrf.mxu0
    %v440 = vadd.f32 %v420, %v439
    %441 = vdwg.mxu0
    %442 = vmatpush.msra.mxu0 %v109
    %443 = vmatpush.msra.mxu0 %v108
    %444 = vmatpush.msra.mxu0 %v107
    %445 = vmatpush.msra.mxu0 %v106
    %446 = vmatpush.msra.mxu0 %v105
    %447 = vmatpush.msra.mxu0 %v104
    %448 = vmatpush.msra.mxu0 %v103
    %449 = vmatpush.msra.mxu0 %v102
    %450 = vmatpush.msra.mxu0 %v101
    %451 = vmatpush.msra.mxu0 %v100
    %452 = vmatpush.msra.mxu0 %v99
    %453 = vmatpush.msra.mxu0 %v98
    %454 = vmatpush.msra.mxu0 %v97
    %455 = vmatpush.msra.mxu0 %v96
    %456 = vmatpush.msra.mxu0 %v95
    %457 = vmatpush.msra.mxu0 %v94
    %458 = vmatmul.f32.gmra.mxu0 %v374
    %v459 = vpop.f32.mrf.mxu0
    %v460 = vadd.f32 %v440, %v459
    %461 = vdwg.mxu0
    %462 = vmatpush.msra.mxu0 0.0
    %463 = vmatpush.msra.mxu0 0.0
    %464 = vmatpush.msra.mxu0 0.0
    %465 = vmatpush.msra.mxu0 0.0
    %466 = vmatpush.msra.mxu0 0.0
    %467 = vmatpush.msra.mxu0 0.0
    %468 = vmatpush.msra.mxu0 0.0
    %469 = vmatpush.msra.mxu0 0.0
    %470 = vmatpush.msra.mxu0 %v117
    %471 = vmatpush.msra.mxu0 %v116
    %472 = vmatpush.msra.mxu0 %v115
    %473 = vmatpush.msra.mxu0 %v114
    %474 = vmatpush.msra.mxu0 %v113
    %475 = vmatpush.msra.mxu0 %v112
    %476 = vmatpush.msra.mxu0 %v111
    %477 = vmatpush.msra.mxu0 %v110
    %478 = vmatmul.f32.gmra.mxu0 %v380
    %v479 = vpop.f32.mrf.mxu0
    %v480 = vadd.f32 %v460, %v479
    %481 = vdwg.mxu0
    %v482 = vmax.f32 %v480, 0.0
    %v483 = vmax.f32 %v362, %v482
    %s484 = scalar_lea.vmem %s0, 30
    %v485 = vld [vmem:[%s484] sm:$0xff]
    %v486 = vld [vmem:[%s484 + $0x8] sm:$0x3]
    %489 = vst [vmem:[#allocation1] ss:$4 sm:$0xff] %v485
    %s490 = scalar_lea.vmem [#allocation1], 32
    %491 = vst [vmem:[%s490] ss:$4 sm:$0xff] %v486
    %v492 = vld.sshfl [vmem:[#allocation1] sm:$0xff pattern:$0x73625140]
    %v493 = vld.sshfl [vmem:[#allocation1 + $0x8] sm:$0xff pattern:$0x73625140]
    %v494 = vld.sshfl [vmem:[#allocation1 + $0x10] sm:$0xff pattern:$0x73625140]
    %v495 = vld.sshfl [vmem:[#allocation1 + $0x18] sm:$0xff pattern:$0x73625140]
    %v496 = vld.sshfl [vmem:[#allocation1 + $0x20] sm:$0xff pattern:$0x73625140]
    %v501 = vsel %vm138, %v496, 0
    %503 = vmatpush.msra.mxu0 %v61
    %504 = vmatpush.msra.mxu0 %v60
    %505 = vmatpush.msra.mxu0 %v59
    %506 = vmatpush.msra.mxu0 %v58
    %507 = vmatpush.msra.mxu0 %v57
    %508 = vmatpush.msra.mxu0 %v56
    %509 = vmatpush.msra.mxu0 %v55
    %510 = vmatpush.msra.mxu0 %v54
    %511 = vmatpush.msra.mxu0 %v53
    %512 = vmatpush.msra.mxu0 %v52
    %513 = vmatpush.msra.mxu0 %v51
    %514 = vmatpush.msra.mxu0 %v50
    %515 = vmatpush.msra.mxu0 %v49
    %516 = vmatpush.msra.mxu0 %v48
    %517 = vmatpush.msra.mxu0 %v47
    %518 = vmatpush.msra.mxu0 %v46
    %519 = vmatmul.f32.gmra.mxu0 %v492
    %v520 = vpop.f32.mrf.mxu0
    %v521 = vadd.f32 %v122, %v520
    %522 = vdwg.mxu0
    %523 = vmatpush.msra.mxu0 %v77
    %524 = vmatpush.msra.mxu0 %v76
    %525 = vmatpush.msra.mxu0 %v75
    %526 = vmatpush.msra.mxu0 %v74
    %527 = vmatpush.msra.mxu0 %v73
    %528 = vmatpush.msra.mxu0 %v72
    %529 = vmatpush.msra.mxu0 %v71
    %530 = vmatpush.msra.mxu0 %v70
    %531 = vmatpush.msra.mxu0 %v69
    %532 = vmatpush.msra.mxu0 %v68
    %533 = vmatpush.msra.mxu0 %v67
    %534 = vmatpush.msra.mxu0 %v66
    %535 = vmatpush.msra.mxu0 %v65
    %536 = vmatpush.msra.mxu0 %v64
    %537 = vmatpush.msra.mxu0 %v63
    %538 = vmatpush.msra.mxu0 %v62
    %539 = vmatmul.f32.gmra.mxu0 %v493
    %v540 = vpop.f32.mrf.mxu0
    %v541 = vadd.f32 %v521, %v540
    %542 = vdwg.mxu0
    %543 = vmatpush.msra.mxu0 %v93
    %544 = vmatpush.msra.mxu0 %v92
    %545 = vmatpush.msra.mxu0 %v91
    %546 = vmatpush.msra.mxu0 %v90
    %547 = vmatpush.msra.mxu0 %v89
    %548 = vmatpush.msra.mxu0 %v88
    %549 = vmatpush.msra.mxu0 %v87
    %550 = vmatpush.msra.mxu0 %v86
    %551 = vmatpush.msra.mxu0 %v85
    %552 = vmatpush.msra.mxu0 %v84
    %553 = vmatpush.msra.mxu0 %v83
    %554 = vmatpush.msra.mxu0 %v82
    %555 = vmatpush.msra.mxu0 %v81
    %556 = vmatpush.msra.mxu0 %v80
    %557 = vmatpush.msra.mxu0 %v79
    %558 = vmatpush.msra.mxu0 %v78
    %559 = vmatmul.f32.gmra.mxu0 %v494
    %v560 = vpop.f32.mrf.mxu0
    %v561 = vadd.f32 %v541, %v560
    %562 = vdwg.mxu0
    %563 = vmatpush.msra.mxu0 %v109
    %564 = vmatpush.msra.mxu0 %v108
    %565 = vmatpush.msra.mxu0 %v107
    %566 = vmatpush.msra.mxu0 %v106
    %567 = vmatpush.msra.mxu0 %v105
    %568 = vmatpush.msra.mxu0 %v104
    %569 = vmatpush.msra.mxu0 %v103
    %570 = vmatpush.msra.mxu0 %v102
    %571 = vmatpush.msra.mxu0 %v101
    %572 = vmatpush.msra.mxu0 %v100
    %573 = vmatpush.msra.mxu0 %v99
    %574 = vmatpush.msra.mxu0 %v98
    %575 = vmatpush.msra.mxu0 %v97
    %576 = vmatpush.msra.mxu0 %v96
    %577 = vmatpush.msra.mxu0 %v95
    %578 = vmatpush.msra.mxu0 %v94
    %579 = vmatmul.f32.gmra.mxu0 %v495
    %v580 = vpop.f32.mrf.mxu0
    %v581 = vadd.f32 %v561, %v580
    %582 = vdwg.mxu0
    %583 = vmatpush.msra.mxu0 0.0
    %584 = vmatpush.msra.mxu0 0.0
    %585 = vmatpush.msra.mxu0 0.0
    %586 = vmatpush.msra.mxu0 0.0
    %587 = vmatpush.msra.mxu0 0.0
    %588 = vmatpush.msra.mxu0 0.0
    %589 = vmatpush.msra.mxu0 0.0
    %590 = vmatpush.msra.mxu0 0.0
    %591 = vmatpush.msra.mxu0 %v117
    %592 = vmatpush.msra.mxu0 %v116
    %593 = vmatpush.msra.mxu0 %v115
    %594 = vmatpush.msra.mxu0 %v114
    %595 = vmatpush.msra.mxu0 %v113
    %596 = vmatpush.msra.mxu0 %v112
    %597 = vmatpush.msra.mxu0 %v111
    %598 = vmatpush.msra.mxu0 %v110
    %599 = vmatmul.f32.gmra.mxu0 %v501
    %v600 = vpop.f32.mrf.mxu0
    %v601 = vadd.f32 %v581, %v600
    %602 = vdwg.mxu0
    %v603 = vmax.f32 %v601, 0.0
    %v604 = vmax.f32 %v483, %v603
    %v605 = vpack.c.bf16 %v604, %v604
    %v606 = vld [vmem:[%s3] sm:$0xff]
    %v607 = vld [vmem:[%s3 + $0x8] sm:$0xff]
    %v608 = vld [vmem:[%s3 + $0x10] sm:$0xff]
    %v609 = vld [vmem:[%s3 + $0x18] sm:$0xff]
    %v610 = vld [vmem:[%s3 + $0x20] sm:$0xff]
    %v611 = vld [vmem:[%s3 + $0x28] sm:$0xff]
    %v612 = vld [vmem:[%s3 + $0x30] sm:$0xff]
    %v613 = vld [vmem:[%s3 + $0x38] sm:$0xff]
    %v614 = vld [vmem:[%s4] sm:$0xf]
    %v616 = vperm.slane %v614, 0
    %v617 = vperm.slane %v614, 1
    %v618 = vperm.slane %v614, 2
    %v619 = vperm.slane %v614, 3
    %v632 = vunpack.c.l.b16 %v606
    %v633 = vunpack.c.h.b16 %v606
    %v634 = vunpack.c.l.b16 %v607
    %v635 = vunpack.c.h.b16 %v607
    %v636 = vunpack.c.l.b16 %v608
    %v637 = vunpack.c.h.b16 %v608
    %v638 = vunpack.c.l.b16 %v609
    %v639 = vunpack.c.h.b16 %v609
    %v640 = vunpack.c.l.b16 %v610
    %v641 = vunpack.c.h.b16 %v610
    %v642 = vunpack.c.l.b16 %v611
    %v643 = vunpack.c.h.b16 %v611
    %v644 = vunpack.c.l.b16 %v612
    %v645 = vunpack.c.h.b16 %v612
    %v646 = vunpack.c.l.b16 %v613
    %v647 = vunpack.c.h.b16 %v613
    %v648 = vpack.c.b16 %v636, %v632
    %v649 = vpack.c.b16 %v637, %v633
    %v650 = vpack.c.b16 %v638, %v634
    %v651 = vpack.c.b16 %v639, %v635
    %v652 = vpack.c.b16 %v644, %v640
    %v653 = vpack.c.b16 %v645, %v641
    %v654 = vpack.c.b16 %v646, %v642
    %v655 = vpack.c.b16 %v647, %v643
    %vm664 = vcmask 261120
    %v666 = vsel %vm664, %v605, 0
    %668 = vmatpush.bf16.msra.mxu0 0
    %669 = vmatpush.bf16.msra.mxu0 0
    %670 = vmatpush.bf16.msra.mxu0 0
    %671 = vmatpush.bf16.msra.mxu0 0
    %672 = vmatpush.bf16.msra.mxu0 0
    %673 = vmatpush.bf16.msra.mxu0 0
    %674 = vmatpush.bf16.msra.mxu0 %v652
    %675 = vmatpush.bf16.msra.mxu0 %v648
    %676 = vmatmul.bf16.gmra.mxu0 %v666
    %v677 = vpop.f32.mrf.mxu0
    %v678 = vadd.f32 %v616, %v677
    %v679 = vpop.f32.mrf.mxu0
    %680 = vdwg.mxu0
    %681 = vmatpush.bf16.msra.mxu0 0
    %682 = vmatpush.bf16.msra.mxu0 0
    %683 = vmatpush.bf16.msra.mxu0 0
    %684 = vmatpush.bf16.msra.mxu0 0
    %685 = vmatpush.bf16.msra.mxu0 0
    %686 = vmatpush.bf16.msra.mxu0 0
    %687 = vmatpush.bf16.msra.mxu0 %v653
    %688 = vmatpush.bf16.msra.mxu0 %v649
    %689 = vmatmul.bf16.gmra.mxu0 %v666
    %v690 = vpop.f32.mrf.mxu0
    %v691 = vadd.f32 %v617, %v690
    %v692 = vpop.f32.mrf.mxu0
    %693 = vdwg.mxu0
    %694 = vmatpush.bf16.msra.mxu0 0
    %695 = vmatpush.bf16.msra.mxu0 0
    %696 = vmatpush.bf16.msra.mxu0 0
    %697 = vmatpush.bf16.msra.mxu0 0
    %698 = vmatpush.bf16.msra.mxu0 0
    %699 = vmatpush.bf16.msra.mxu0 0
    %700 = vmatpush.bf16.msra.mxu0 %v654
    %701 = vmatpush.bf16.msra.mxu0 %v650
    %702 = vmatmul.bf16.gmra.mxu0 %v666
    %v703 = vpop.f32.mrf.mxu0
    %v704 = vadd.f32 %v618, %v703
    %v705 = vpop.f32.mrf.mxu0
    %706 = vdwg.mxu0
    %707 = vmatpush.bf16.msra.mxu0 0
    %708 = vmatpush.bf16.msra.mxu0 0
    %709 = vmatpush.bf16.msra.mxu0 0
    %710 = vmatpush.bf16.msra.mxu0 0
    %711 = vmatpush.bf16.msra.mxu0 0
    %712 = vmatpush.bf16.msra.mxu0 0
    %713 = vmatpush.bf16.msra.mxu0 %v655
    %714 = vmatpush.bf16.msra.mxu0 %v651
    %715 = vmatmul.bf16.gmra.mxu0 %v666
    %v716 = vpop.f32.mrf.mxu0
    %v717 = vadd.f32 %v619, %v716
    %v718 = vpop.f32.mrf.mxu0
    %719 = vdwg.mxu0
    %v720 = vmax.f32 %v678, 0.0
    %v721 = vmax.f32 %v691, 0.0
    %v722 = vmax.f32 %v704, 0.0
    %v723 = vmax.f32 %v717, 0.0
    %v724 = vld [vmem:[%s5] sm:$0xff]
    %v725 = vld [vmem:[%s5 + $0x8] sm:$0xff]
    %v726 = vld [vmem:[%s5 + $0x10] sm:$0xff]
    %v727 = vld [vmem:[%s5 + $0x18] sm:$0xff]
    %v728 = vld [vmem:[%s5 + $0x20] sm:$0xff]
    %v729 = vld [vmem:[%s5 + $0x28] sm:$0xff]
    %v730 = vld [vmem:[%s5 + $0x30] sm:$0xff]
    %v731 = vld [vmem:[%s5 + $0x38] sm:$0xff]
    %v732 = vld [vmem:[%s5 + $0x40] sm:$0xff]
    %v733 = vld [vmem:[%s5 + $0x48] sm:$0xff]
    %v734 = vld [vmem:[%s5 + $0x50] sm:$0xff]
    %v735 = vld [vmem:[%s5 + $0x58] sm:$0xff]
    %v736 = vld [vmem:[%s5 + $0x60] sm:$0xff]
    %v737 = vld [vmem:[%s5 + $0x68] sm:$0xff]
    %v738 = vld [vmem:[%s5 + $0x70] sm:$0xff]
    %v739 = vld [vmem:[%s5 + $0x78] sm:$0xff]
    %v740 = vld [vmem:[%s5 + $0x80] sm:$0xff]
    %v741 = vld [vmem:[%s5 + $0x88] sm:$0xff]
    %v742 = vld [vmem:[%s5 + $0x90] sm:$0xff]
    %v743 = vld [vmem:[%s5 + $0x98] sm:$0xff]
    %v744 = vld [vmem:[%s5 + $0xa0] sm:$0xff]
    %v745 = vld [vmem:[%s5 + $0xa8] sm:$0xff]
    %v746 = vld [vmem:[%s5 + $0xb0] sm:$0xff]
    %v747 = vld [vmem:[%s5 + $0xb8] sm:$0xff]
    %v748 = vld [vmem:[%s5 + $0xc0] sm:$0xff]
    %v749 = vld [vmem:[%s5 + $0xc8] sm:$0xff]
    %v750 = vld [vmem:[%s5 + $0xd0] sm:$0xff]
    %v751 = vld [vmem:[%s5 + $0xd8] sm:$0xff]
    %v752 = vld [vmem:[%s5 + $0xe0] sm:$0xff]
    %v753 = vld [vmem:[%s5 + $0xe8] sm:$0xff]
    %v754 = vld [vmem:[%s5 + $0xf0] sm:$0xff]
    %v755 = vld [vmem:[%s5 + $0xf8] sm:$0xff]
    %v756 = vld [vmem:[%s5 + $0x100] sm:$0xff]
    %v757 = vld [vmem:[%s5 + $0x108] sm:$0xff]
    %v758 = vld [vmem:[%s5 + $0x110] sm:$0xff]
    %v759 = vld [vmem:[%s5 + $0x118] sm:$0xff]
    %v760 = vld [vmem:[%s5 + $0x120] sm:$0xff]
    %v761 = vld [vmem:[%s5 + $0x128] sm:$0xff]
    %v762 = vld [vmem:[%s5 + $0x130] sm:$0xff]
    %v763 = vld [vmem:[%s5 + $0x138] sm:$0xff]
    %v764 = vld [vmem:[%s5 + $0x140] sm:$0xff]
    %v765 = vld [vmem:[%s5 + $0x148] sm:$0xff]
    %v766 = vld [vmem:[%s5 + $0x150] sm:$0xff]
    %v767 = vld [vmem:[%s5 + $0x158] sm:$0xff]
    %v768 = vld [vmem:[%s5 + $0x160] sm:$0xff]
    %v769 = vld [vmem:[%s5 + $0x168] sm:$0xff]
    %v770 = vld [vmem:[%s5 + $0x170] sm:$0xff]
    %v771 = vld [vmem:[%s5 + $0x178] sm:$0xff]
    %v772 = vld [vmem:[%s5 + $0x180] sm:$0xff]
    %v773 = vld [vmem:[%s5 + $0x188] sm:$0xff]
    %v774 = vld [vmem:[%s5 + $0x190] sm:$0xff]
    %v775 = vld [vmem:[%s5 + $0x198] sm:$0xff]
    %v776 = vld [vmem:[%s5 + $0x1a0] sm:$0xff]
    %v777 = vld [vmem:[%s5 + $0x1a8] sm:$0xff]
    %v778 = vld [vmem:[%s5 + $0x1b0] sm:$0xff]
    %v779 = vld [vmem:[%s5 + $0x1b8] sm:$0xff]
    %v780 = vld [vmem:[%s5 + $0x1c0] sm:$0xff]
    %v781 = vld [vmem:[%s5 + $0x1c8] sm:$0xff]
    %v782 = vld [vmem:[%s5 + $0x1d0] sm:$0xff]
    %v783 = vld [vmem:[%s5 + $0x1d8] sm:$0xff]
    %v784 = vld [vmem:[%s5 + $0x1e0] sm:$0xff]
    %v785 = vld [vmem:[%s5 + $0x1e8] sm:$0xff]
    %v786 = vld [vmem:[%s5 + $0x1f0] sm:$0xff]
    %v787 = vld [vmem:[%s5 + $0x1f8] sm:$0xff]
    %v788 = vld [vmem:[%s5 + $0x200] sm:$0xff]
    %v789 = vld [vmem:[%s5 + $0x208] sm:$0xff]
    %v790 = vld [vmem:[%s5 + $0x210] sm:$0xff]
    %v791 = vld [vmem:[%s5 + $0x218] sm:$0xff]
    %v792 = vld [vmem:[%s5 + $0x220] sm:$0xff]
    %v793 = vld [vmem:[%s5 + $0x228] sm:$0xff]
    %v794 = vld [vmem:[%s5 + $0x230] sm:$0xff]
    %v795 = vld [vmem:[%s5 + $0x238] sm:$0xff]
    %v796 = vld [vmem:[%s5 + $0x240] sm:$0xff]
    %v797 = vld [vmem:[%s5 + $0x248] sm:$0xff]
    %v798 = vld [vmem:[%s5 + $0x250] sm:$0xff]
    %v799 = vld [vmem:[%s5 + $0x258] sm:$0xff]
    %v800 = vld [vmem:[%s5 + $0x260] sm:$0xff]
    %v801 = vld [vmem:[%s5 + $0x268] sm:$0xff]
    %v802 = vld [vmem:[%s5 + $0x270] sm:$0xff]
    %v803 = vld [vmem:[%s5 + $0x278] sm:$0xff]
    %v804 = vld [vmem:[%s5 + $0x280] sm:$0xff]
    %v805 = vld [vmem:[%s5 + $0x288] sm:$0xff]
    %v806 = vld [vmem:[%s5 + $0x290] sm:$0xff]
    %v807 = vld [vmem:[%s5 + $0x298] sm:$0xff]
    %v808 = vld [vmem:[%s5 + $0x2a0] sm:$0xff]
    %v809 = vld [vmem:[%s5 + $0x2a8] sm:$0xff]
    %v810 = vld [vmem:[%s5 + $0x2b0] sm:$0xff]
    %v811 = vld [vmem:[%s5 + $0x2b8] sm:$0xff]
    %v812 = vld [vmem:[%s5 + $0x2c0] sm:$0xff]
    %v813 = vld [vmem:[%s5 + $0x2c8] sm:$0xff]
    %v814 = vld [vmem:[%s5 + $0x2d0] sm:$0xff]
    %v815 = vld [vmem:[%s5 + $0x2d8] sm:$0xff]
    %v816 = vld [vmem:[%s5 + $0x2e0] sm:$0xff]
    %v817 = vld [vmem:[%s5 + $0x2e8] sm:$0xff]
    %v818 = vld [vmem:[%s5 + $0x2f0] sm:$0xff]
    %v819 = vld [vmem:[%s5 + $0x2f8] sm:$0xff]
    %v820 = vld [vmem:[%s5 + $0x300] sm:$0xff]
    %v821 = vld [vmem:[%s5 + $0x308] sm:$0xff]
    %v822 = vld [vmem:[%s5 + $0x310] sm:$0xff]
    %v823 = vld [vmem:[%s5 + $0x318] sm:$0xff]
    %v824 = vld [vmem:[%s6] sm:$0x3]
    %v826 = vperm.slane %v824, 0
    %v827 = vperm.slane %v824, 1
    %vm830 = vcmask 130048
    %v832 = vsel %vm830, %v723, 0
    %834 = vmatpush.msra.mxu0 %v754
    %835 = vmatpush.msra.mxu0 %v752
    %836 = vmatpush.msra.mxu0 %v750
    %837 = vmatpush.msra.mxu0 %v748
    %838 = vmatpush.msra.mxu0 %v746
    %839 = vmatpush.msra.mxu0 %v744
    %840 = vmatpush.msra.mxu0 %v742
    %841 = vmatpush.msra.mxu0 %v740
    %842 = vmatpush.msra.mxu0 %v738
    %843 = vmatpush.msra.mxu0 %v736
    %844 = vmatpush.msra.mxu0 %v734
    %845 = vmatpush.msra.mxu0 %v732
    %846 = vmatpush.msra.mxu0 %v730
    %847 = vmatpush.msra.mxu0 %v728
    %848 = vmatpush.msra.mxu0 %v726
    %849 = vmatpush.msra.mxu0 %v724
    %850 = vmatmul.f32.gmra.mxu0 %v720
    %v851 = vpop.f32.mrf.mxu0
    %v852 = vadd.f32 %v826, %v851
    %853 = vdwg.mxu0
    %854 = vmatpush.msra.mxu0 %v786
    %855 = vmatpush.msra.mxu0 %v784
    %856 = vmatpush.msra.mxu0 %v782
    %857 = vmatpush.msra.mxu0 %v780
    %858 = vmatpush.msra.mxu0 %v778
    %859 = vmatpush.msra.mxu0 %v776
    %860 = vmatpush.msra.mxu0 %v774
    %861 = vmatpush.msra.mxu0 %v772
    %862 = vmatpush.msra.mxu0 %v770
    %863 = vmatpush.msra.mxu0 %v768
    %864 = vmatpush.msra.mxu0 %v766
    %865 = vmatpush.msra.mxu0 %v764
    %866 = vmatpush.msra.mxu0 %v762
    %867 = vmatpush.msra.mxu0 %v760
    %868 = vmatpush.msra.mxu0 %v758
    %869 = vmatpush.msra.mxu0 %v756
    %870 = vmatmul.f32.gmra.mxu0 %v721
    %v871 = vpop.f32.mrf.mxu0
    %v872 = vadd.f32 %v852, %v871
    %873 = vdwg.mxu0
    %874 = vmatpush.msra.mxu0 %v818
    %875 = vmatpush.msra.mxu0 %v816
    %876 = vmatpush.msra.mxu0 %v814
    %877 = vmatpush.msra.mxu0 %v812
    %878 = vmatpush.msra.mxu0 %v810
    %879 = vmatpush.msra.mxu0 %v808
    %880 = vmatpush.msra.mxu0 %v806
    %881 = vmatpush.msra.mxu0 %v804
    %882 = vmatpush.msra.mxu0 %v802
    %883 = vmatpush.msra.mxu0 %v800
    %884 = vmatpush.msra.mxu0 %v798
    %885 = vmatpush.msra.mxu0 %v796
    %886 = vmatpush.msra.mxu0 %v794
    %887 = vmatpush.msra.mxu0 %v792
    %888 = vmatpush.msra.mxu0 %v790
    %889 = vmatpush.msra.mxu0 %v788
    %890 = vmatmul.f32.gmra.mxu0 %v722
    %v891 = vpop.f32.mrf.mxu0
    %v892 = vadd.f32 %v872, %v891
    %893 = vdwg.mxu0
    %894 = vmatpush.msra.mxu0 0.0
    %895 = vmatpush.msra.mxu0 0.0
    %896 = vmatpush.msra.mxu0 0.0
    %897 = vmatpush.msra.mxu0 0.0
    %898 = vmatpush.msra.mxu0 0.0
    %899 = vmatpush.msra.mxu0 0.0
    %900 = vmatpush.msra.mxu0 0.0
    %901 = vmatpush.msra.mxu0 0.0
    %902 = vmatpush.msra.mxu0 0.0
    %903 = vmatpush.msra.mxu0 0.0
    %904 = vmatpush.msra.mxu0 0.0
    %905 = vmatpush.msra.mxu0 0.0
    %906 = vmatpush.msra.mxu0 0.0
    %907 = vmatpush.msra.mxu0 0.0
    %908 = vmatpush.msra.mxu0 %v822
    %909 = vmatpush.msra.mxu0 %v820
    %910 = vmatmul.f32.gmra.mxu0 %v832
    %v911 = vpop.f32.mrf.mxu0
    %v912 = vadd.f32 %v892, %v911
    %913 = vdwg.mxu0
    %914 = vmatpush.msra.mxu0 %v755
    %915 = vmatpush.msra.mxu0 %v753
    %916 = vmatpush.msra.mxu0 %v751
    %917 = vmatpush.msra.mxu0 %v749
    %918 = vmatpush.msra.mxu0 %v747
    %919 = vmatpush.msra.mxu0 %v745
    %920 = vmatpush.msra.mxu0 %v743
    %921 = vmatpush.msra.mxu0 %v741
    %922 = vmatpush.msra.mxu0 %v739
    %923 = vmatpush.msra.mxu0 %v737
    %924 = vmatpush.msra.mxu0 %v735
    %925 = vmatpush.msra.mxu0 %v733
    %926 = vmatpush.msra.mxu0 %v731
    %927 = vmatpush.msra.mxu0 %v729
    %928 = vmatpush.msra.mxu0 %v727
    %929 = vmatpush.msra.mxu0 %v725
    %930 = vmatmul.f32.gmra.mxu0 %v720
    %v931 = vpop.f32.mrf.mxu0
    %v932 = vadd.f32 %v827, %v931
    %933 = vdwg.mxu0
    %934 = vmatpush.msra.mxu0 %v787
    %935 = vmatpush.msra.mxu0 %v785
    %936 = vmatpush.msra.mxu0 %v783
    %937 = vmatpush.msra.mxu0 %v781
    %938 = vmatpush.msra.mxu0 %v779
    %939 = vmatpush.msra.mxu0 %v777
    %940 = vmatpush.msra.mxu0 %v775
    %941 = vmatpush.msra.mxu0 %v773
    %942 = vmatpush.msra.mxu0 %v771
    %943 = vmatpush.msra.mxu0 %v769
    %944 = vmatpush.msra.mxu0 %v767
    %945 = vmatpush.msra.mxu0 %v765
    %946 = vmatpush.msra.mxu0 %v763
    %947 = vmatpush.msra.mxu0 %v761
    %948 = vmatpush.msra.mxu0 %v759
    %949 = vmatpush.msra.mxu0 %v757
    %950 = vmatmul.f32.gmra.mxu0 %v721
    %v951 = vpop.f32.mrf.mxu0
    %v952 = vadd.f32 %v932, %v951
    %953 = vdwg.mxu0
    %954 = vmatpush.msra.mxu0 %v819
    %955 = vmatpush.msra.mxu0 %v817
    %956 = vmatpush.msra.mxu0 %v815
    %957 = vmatpush.msra.mxu0 %v813
    %958 = vmatpush.msra.mxu0 %v811
    %959 = vmatpush.msra.mxu0 %v809
    %960 = vmatpush.msra.mxu0 %v807
    %961 = vmatpush.msra.mxu0 %v805
    %962 = vmatpush.msra.mxu0 %v803
    %963 = vmatpush.msra.mxu0 %v801
    %964 = vmatpush.msra.mxu0 %v799
    %965 = vmatpush.msra.mxu0 %v797
    %966 = vmatpush.msra.mxu0 %v795
    %967 = vmatpush.msra.mxu0 %v793
    %968 = vmatpush.msra.mxu0 %v791
    %969 = vmatpush.msra.mxu0 %v789
    %970 = vmatmul.f32.gmra.mxu0 %v722
    %v971 = vpop.f32.mrf.mxu0
    %v972 = vadd.f32 %v952, %v971
    %973 = vdwg.mxu0
    %974 = vmatpush.msra.mxu0 0.0
    %975 = vmatpush.msra.mxu0 0.0
    %976 = vmatpush.msra.mxu0 0.0
    %977 = vmatpush.msra.mxu0 0.0
    %978 = vmatpush.msra.mxu0 0.0
    %979 = vmatpush.msra.mxu0 0.0
    %980 = vmatpush.msra.mxu0 0.0
    %981 = vmatpush.msra.mxu0 0.0
    %982 = vmatpush.msra.mxu0 0.0
    %983 = vmatpush.msra.mxu0 0.0
    %984 = vmatpush.msra.mxu0 0.0
    %985 = vmatpush.msra.mxu0 0.0
    %986 = vmatpush.msra.mxu0 0.0
    %987 = vmatpush.msra.mxu0 0.0
    %988 = vmatpush.msra.mxu0 %v823
    %989 = vmatpush.msra.mxu0 %v821
    %990 = vmatmul.f32.gmra.mxu0 %v832
    %v991 = vpop.f32.mrf.mxu0
    %v992 = vadd.f32 %v972, %v991
    %993 = vdwg.mxu0
    %v994 = vadd.f32 %v992, 1.0
    %v995 = vmul.f32 %v912, %v912
    %v996 = vsub.f32 %v994, %v995
    %v997 = vmul.f32 %v992, 1.442695
    %v998 = vpow.pop %v997
    %v999 = vsub.f32 %v996, %v998
    %vm1000 = vcmask 1041408
    %v1001 = vsel %vm1000, %v999, 0.0
    %1002 = vadd.xlane.f32.xlu0 %v1001
    %v1003 = vpop.xlane.xlu0 %1002
    %v1004 = vrot.slane %v1003, 4
    %v1005 = vadd.f32 %v1003, %v1004
    %v1006 = vrot.slane %v1005, 2
    %v1007 = vadd.f32 %v1005, %v1006
    %v1008 = vrot.slane %v1007, 1
    %v1009 = vadd.f32 %v1007, %v1008
    %s1010 = vtos %v1009
    %s1011 = smul.f32 %s1010, -0.5
    %v1012 = vpack.c.bf16 %v912, %v912
    %v1013 = vld [vmem:[%s7] sm:$0xff]
    %v1014 = vld [vmem:[%s7 + $0x8] sm:$0xff]
    %v1015 = vld [vmem:[%s7 + $0x10] sm:$0xff]
    %v1016 = vld [vmem:[%s7 + $0x18] sm:$0xff]
    %v1017 = vld [vmem:[%s7 + $0x20] sm:$0xff]
    %v1018 = vld [vmem:[%s7 + $0x28] sm:$0xff]
    %v1019 = vld [vmem:[%s7 + $0x30] sm:$0xff]
    %v1020 = vld [vmem:[%s7 + $0x38] sm:$0xff]
    %v1021 = vld [vmem:[%s7 + $0x40] sm:$0xff]
    %v1022 = vld [vmem:[%s7 + $0x48] sm:$0xff]
    %v1023 = vld [vmem:[%s7 + $0x50] sm:$0xff]
    %v1024 = vld [vmem:[%s7 + $0x58] sm:$0xff]
    %v1025 = vld [vmem:[%s7 + $0x60] sm:$0xff]
    %v1026 = vld [vmem:[%s7 + $0x68] sm:$0xff]
    %v1027 = vld [vmem:[%s7 + $0x70] sm:$0xff]
    %v1028 = vld [vmem:[%s7 + $0x78] sm:$0xff]
    %v1029 = vld [vmem:[%s7 + $0x80] sm:$0xff]
    %v1030 = vld [vmem:[%s7 + $0x88] sm:$0xff]
    %v1031 = vld [vmem:[%s7 + $0x90] sm:$0xff]
    %v1032 = vld [vmem:[%s7 + $0x98] sm:$0xff]
    %v1033 = vld [vmem:[%s7 + $0xa0] sm:$0xff]
    %v1034 = vld [vmem:[%s7 + $0xa8] sm:$0xff]
    %v1035 = vld [vmem:[%s7 + $0xb0] sm:$0xff]
    %v1036 = vld [vmem:[%s7 + $0xb8] sm:$0xff]
    %v1037 = vld [vmem:[%s7 + $0xc0] sm:$0xff]
    %v1038 = vld [vmem:[%s7 + $0xc8] sm:$0xff]
    %v1039 = vld [vmem:[%s7 + $0xd0] sm:$0xff]
    %v1040 = vld [vmem:[%s7 + $0xd8] sm:$0xff]
    %v1041 = vld [vmem:[%s7 + $0xe0] sm:$0xff]
    %v1042 = vld [vmem:[%s7 + $0xe8] sm:$0xff]
    %v1043 = vld [vmem:[%s7 + $0xf0] sm:$0xff]
    %v1044 = vld [vmem:[%s7 + $0xf8] sm:$0xff]
    %v1045 = vld [vmem:[%s8] sm:$0xf]
    %v1047 = vperm.slane %v1045, 0
    %v1048 = vperm.slane %v1045, 1
    %v1049 = vperm.slane %v1045, 2
    %v1050 = vperm.slane %v1045, 3
    %v1087 = vunpack.c.l.b16 %v1013
    %v1088 = vunpack.c.h.b16 %v1013
    %v1089 = vunpack.c.l.b16 %v1014
    %v1090 = vunpack.c.h.b16 %v1014
    %v1091 = vunpack.c.l.b16 %v1015
    %v1092 = vunpack.c.h.b16 %v1015
    %v1093 = vunpack.c.l.b16 %v1016
    %v1094 = vunpack.c.h.b16 %v1016
    %v1095 = vunpack.c.l.b16 %v1017
    %v1096 = vunpack.c.h.b16 %v1017
    %v1097 = vunpack.c.l.b16 %v1018
    %v1098 = vunpack.c.h.b16 %v1018
    %v1099 = vunpack.c.l.b16 %v1019
    %v1100 = vunpack.c.h.b16 %v1019
    %v1101 = vunpack.c.l.b16 %v1020
    %v1102 = vunpack.c.h.b16 %v1020
    %v1103 = vunpack.c.l.b16 %v1021
    %v1104 = vunpack.c.h.b16 %v1021
    %v1105 = vunpack.c.l.b16 %v1022
    %v1106 = vunpack.c.h.b16 %v1022
    %v1107 = vunpack.c.l.b16 %v1023
    %v1108 = vunpack.c.h.b16 %v1023
    %v1109 = vunpack.c.l.b16 %v1024
    %v1110 = vunpack.c.h.b16 %v1024
    %v1111 = vunpack.c.l.b16 %v1025
    %v1112 = vunpack.c.h.b16 %v1025
    %v1113 = vunpack.c.l.b16 %v1026
    %v1114 = vunpack.c.h.b16 %v1026
    %v1115 = vunpack.c.l.b16 %v1027
    %v1116 = vunpack.c.h.b16 %v1027
    %v1117 = vunpack.c.l.b16 %v1028
    %v1118 = vunpack.c.h.b16 %v1028
    %v1119 = vunpack.c.l.b16 %v1029
    %v1120 = vunpack.c.h.b16 %v1029
    %v1121 = vunpack.c.l.b16 %v1030
    %v1122 = vunpack.c.h.b16 %v1030
    %v1123 = vunpack.c.l.b16 %v1031
    %v1124 = vunpack.c.h.b16 %v1031
    %v1125 = vunpack.c.l.b16 %v1032
    %v1126 = vunpack.c.h.b16 %v1032
    %v1127 = vunpack.c.l.b16 %v1033
    %v1128 = vunpack.c.h.b16 %v1033
    %v1129 = vunpack.c.l.b16 %v1034
    %v1130 = vunpack.c.h.b16 %v1034
    %v1131 = vunpack.c.l.b16 %v1035
    %v1132 = vunpack.c.h.b16 %v1035
    %v1133 = vunpack.c.l.b16 %v1036
    %v1134 = vunpack.c.h.b16 %v1036
    %v1135 = vunpack.c.l.b16 %v1037
    %v1136 = vunpack.c.h.b16 %v1037
    %v1137 = vunpack.c.l.b16 %v1038
    %v1138 = vunpack.c.h.b16 %v1038
    %v1139 = vunpack.c.l.b16 %v1039
    %v1140 = vunpack.c.h.b16 %v1039
    %v1141 = vunpack.c.l.b16 %v1040
    %v1142 = vunpack.c.h.b16 %v1040
    %v1143 = vunpack.c.l.b16 %v1041
    %v1144 = vunpack.c.h.b16 %v1041
    %v1145 = vunpack.c.l.b16 %v1042
    %v1146 = vunpack.c.h.b16 %v1042
    %v1147 = vunpack.c.l.b16 %v1043
    %v1148 = vunpack.c.h.b16 %v1043
    %v1149 = vunpack.c.l.b16 %v1044
    %v1150 = vunpack.c.h.b16 %v1044
    %v1151 = vpack.c.b16 %v1091, %v1087
    %v1152 = vpack.c.b16 %v1092, %v1088
    %v1153 = vpack.c.b16 %v1093, %v1089
    %v1154 = vpack.c.b16 %v1094, %v1090
    %v1155 = vpack.c.b16 %v1099, %v1095
    %v1156 = vpack.c.b16 %v1100, %v1096
    %v1157 = vpack.c.b16 %v1101, %v1097
    %v1158 = vpack.c.b16 %v1102, %v1098
    %v1159 = vpack.c.b16 %v1107, %v1103
    %v1160 = vpack.c.b16 %v1108, %v1104
    %v1161 = vpack.c.b16 %v1109, %v1105
    %v1162 = vpack.c.b16 %v1110, %v1106
    %v1163 = vpack.c.b16 %v1115, %v1111
    %v1164 = vpack.c.b16 %v1116, %v1112
    %v1165 = vpack.c.b16 %v1117, %v1113
    %v1166 = vpack.c.b16 %v1118, %v1114
    %v1167 = vpack.c.b16 %v1123, %v1119
    %v1168 = vpack.c.b16 %v1124, %v1120
    %v1169 = vpack.c.b16 %v1125, %v1121
    %v1170 = vpack.c.b16 %v1126, %v1122
    %v1171 = vpack.c.b16 %v1131, %v1127
    %v1172 = vpack.c.b16 %v1132, %v1128
    %v1173 = vpack.c.b16 %v1133, %v1129
    %v1174 = vpack.c.b16 %v1134, %v1130
    %v1175 = vpack.c.b16 %v1139, %v1135
    %v1176 = vpack.c.b16 %v1140, %v1136
    %v1177 = vpack.c.b16 %v1141, %v1137
    %v1178 = vpack.c.b16 %v1142, %v1138
    %v1179 = vpack.c.b16 %v1147, %v1143
    %v1180 = vpack.c.b16 %v1148, %v1144
    %v1181 = vpack.c.b16 %v1149, %v1145
    %v1182 = vpack.c.b16 %v1150, %v1146
    %1215 = vmatpush.bf16.msra.mxu0 %v1179
    %1216 = vmatpush.bf16.msra.mxu0 %v1175
    %1217 = vmatpush.bf16.msra.mxu0 %v1171
    %1218 = vmatpush.bf16.msra.mxu0 %v1167
    %1219 = vmatpush.bf16.msra.mxu0 %v1163
    %1220 = vmatpush.bf16.msra.mxu0 %v1159
    %1221 = vmatpush.bf16.msra.mxu0 %v1155
    %1222 = vmatpush.bf16.msra.mxu0 %v1151
    %1223 = vmatmul.bf16.gmra.mxu0 %v1012
    %v1224 = vpop.f32.mrf.mxu0
    %v1225 = vadd.f32 %v1047, %v1224
    %v1226 = vpop.f32.mrf.mxu0
    %1227 = vdwg.mxu0
    %1228 = vmatpush.bf16.msra.mxu0 %v1180
    %1229 = vmatpush.bf16.msra.mxu0 %v1176
    %1230 = vmatpush.bf16.msra.mxu0 %v1172
    %1231 = vmatpush.bf16.msra.mxu0 %v1168
    %1232 = vmatpush.bf16.msra.mxu0 %v1164
    %1233 = vmatpush.bf16.msra.mxu0 %v1160
    %1234 = vmatpush.bf16.msra.mxu0 %v1156
    %1235 = vmatpush.bf16.msra.mxu0 %v1152
    %1236 = vmatmul.bf16.gmra.mxu0 %v1012
    %v1237 = vpop.f32.mrf.mxu0
    %v1238 = vadd.f32 %v1048, %v1237
    %v1239 = vpop.f32.mrf.mxu0
    %1240 = vdwg.mxu0
    %1241 = vmatpush.bf16.msra.mxu0 %v1181
    %1242 = vmatpush.bf16.msra.mxu0 %v1177
    %1243 = vmatpush.bf16.msra.mxu0 %v1173
    %1244 = vmatpush.bf16.msra.mxu0 %v1169
    %1245 = vmatpush.bf16.msra.mxu0 %v1165
    %1246 = vmatpush.bf16.msra.mxu0 %v1161
    %1247 = vmatpush.bf16.msra.mxu0 %v1157
    %1248 = vmatpush.bf16.msra.mxu0 %v1153
    %1249 = vmatmul.bf16.gmra.mxu0 %v1012
    %v1250 = vpop.f32.mrf.mxu0
    %v1251 = vadd.f32 %v1049, %v1250
    %v1252 = vpop.f32.mrf.mxu0
    %1253 = vdwg.mxu0
    %1254 = vmatpush.bf16.msra.mxu0 %v1182
    %1255 = vmatpush.bf16.msra.mxu0 %v1178
    %1256 = vmatpush.bf16.msra.mxu0 %v1174
    %1257 = vmatpush.bf16.msra.mxu0 %v1170
    %1258 = vmatpush.bf16.msra.mxu0 %v1166
    %1259 = vmatpush.bf16.msra.mxu0 %v1162
    %1260 = vmatpush.bf16.msra.mxu0 %v1158
    %1261 = vmatpush.bf16.msra.mxu0 %v1154
    %1262 = vmatmul.bf16.gmra.mxu0 %v1012
    %v1263 = vpop.f32.mrf.mxu0
    %v1264 = vadd.f32 %v1050, %v1263
    %v1265 = vpop.f32.mrf.mxu0
    %1266 = vdwg.mxu0
    %v1267 = vmax.f32 %v1225, 0.0
    %v1268 = vmax.f32 %v1238, 0.0
    %v1269 = vmax.f32 %v1251, 0.0
    %v1270 = vmax.f32 %v1264, 0.0
    %v1271 = vpack.c.bf16 %v1267, %v1267
    %v1272 = vpack.c.bf16 %v1268, %v1268
    %v1273 = vpack.c.bf16 %v1269, %v1269
    %v1274 = vpack.c.bf16 %v1270, %v1270
    %v1275 = vld [vmem:[%s9] sm:$0xff]
    %v1276 = vld [vmem:[%s9 + $0x8] sm:$0xff]
    %v1277 = vld [vmem:[%s9 + $0x10] sm:$0xff]
    %v1278 = vld [vmem:[%s9 + $0x18] sm:$0xf]
    %v1279 = vld [vmem:[%s9 + $0x1c] sm:$0xff]
    %v1280 = vld [vmem:[%s9 + $0x24] sm:$0xff]
    %v1281 = vld [vmem:[%s9 + $0x2c] sm:$0xff]
    %v1282 = vld [vmem:[%s9 + $0x34] sm:$0xf]
    %v1283 = vld [vmem:[%s9 + $0x38] sm:$0xff]
    %v1284 = vld [vmem:[%s9 + $0x40] sm:$0xff]
    %v1285 = vld [vmem:[%s9 + $0x48] sm:$0xff]
    %v1286 = vld [vmem:[%s9 + $0x50] sm:$0xf]
    %v1287 = vld [vmem:[%s9 + $0x54] sm:$0xff]
    %v1288 = vld [vmem:[%s9 + $0x5c] sm:$0xff]
    %v1289 = vld [vmem:[%s9 + $0x64] sm:$0xff]
    %v1290 = vld [vmem:[%s9 + $0x6c] sm:$0xf]
    %v1291 = vld [vmem:[%s9 + $0x70] sm:$0xff]
    %v1292 = vld [vmem:[%s9 + $0x78] sm:$0xff]
    %v1293 = vld [vmem:[%s9 + $0x80] sm:$0xff]
    %v1294 = vld [vmem:[%s9 + $0x88] sm:$0xf]
    %v1295 = vld [vmem:[%s9 + $0x8c] sm:$0xff]
    %v1296 = vld [vmem:[%s9 + $0x94] sm:$0xff]
    %v1297 = vld [vmem:[%s9 + $0x9c] sm:$0xff]
    %v1298 = vld [vmem:[%s9 + $0xa4] sm:$0xf]
    %v1299 = vld [vmem:[%s9 + $0xa8] sm:$0xff]
    %v1300 = vld [vmem:[%s9 + $0xb0] sm:$0xff]
    %v1301 = vld [vmem:[%s9 + $0xb8] sm:$0xff]
    %v1302 = vld [vmem:[%s9 + $0xc0] sm:$0xf]
    %v1303 = vld [vmem:[%s9 + $0xc4] sm:$0xff]
    %v1304 = vld [vmem:[%s9 + $0xcc] sm:$0xff]
    %v1305 = vld [vmem:[%s9 + $0xd4] sm:$0xff]
    %v1306 = vld [vmem:[%s9 + $0xdc] sm:$0xf]
    %v1307 = vld [vmem:[%s9 + $0xe0] sm:$0xff]
    %v1308 = vld [vmem:[%s9 + $0xe8] sm:$0xff]
    %v1309 = vld [vmem:[%s9 + $0xf0] sm:$0xff]
    %v1310 = vld [vmem:[%s9 + $0xf8] sm:$0xf]
    %v1311 = vld [vmem:[%s9 + $0xfc] sm:$0xff]
    %v1312 = vld [vmem:[%s9 + $0x104] sm:$0xff]
    %v1313 = vld [vmem:[%s9 + $0x10c] sm:$0xff]
    %v1314 = vld [vmem:[%s9 + $0x114] sm:$0xf]
    %v1315 = vld [vmem:[%s9 + $0x118] sm:$0xff]
    %v1316 = vld [vmem:[%s9 + $0x120] sm:$0xff]
    %v1317 = vld [vmem:[%s9 + $0x128] sm:$0xff]
    %v1318 = vld [vmem:[%s9 + $0x130] sm:$0xf]
    %v1319 = vld [vmem:[%s9 + $0x134] sm:$0xff]
    %v1320 = vld [vmem:[%s9 + $0x13c] sm:$0xff]
    %v1321 = vld [vmem:[%s9 + $0x144] sm:$0xff]
    %v1322 = vld [vmem:[%s9 + $0x14c] sm:$0xf]
    %v1323 = vld [vmem:[%s9 + $0x150] sm:$0xff]
    %v1324 = vld [vmem:[%s9 + $0x158] sm:$0xff]
    %v1325 = vld [vmem:[%s9 + $0x160] sm:$0xff]
    %v1326 = vld [vmem:[%s9 + $0x168] sm:$0xf]
    %v1327 = vld [vmem:[%s9 + $0x16c] sm:$0xff]
    %v1328 = vld [vmem:[%s9 + $0x174] sm:$0xff]
    %v1329 = vld [vmem:[%s9 + $0x17c] sm:$0xff]
    %v1330 = vld [vmem:[%s9 + $0x184] sm:$0xf]
    %v1331 = vld [vmem:[%s9 + $0x188] sm:$0xff]
    %v1332 = vld [vmem:[%s9 + $0x190] sm:$0xff]
    %v1333 = vld [vmem:[%s9 + $0x198] sm:$0xff]
    %v1334 = vld [vmem:[%s9 + $0x1a0] sm:$0xf]
    %v1335 = vld [vmem:[%s9 + $0x1a4] sm:$0xff]
    %v1336 = vld [vmem:[%s9 + $0x1ac] sm:$0xff]
    %v1337 = vld [vmem:[%s9 + $0x1b4] sm:$0xff]
    %v1338 = vld [vmem:[%s9 + $0x1bc] sm:$0xf]
    %v1339 = vld [vmem:[%s9 + $0x1c0] sm:$0xff]
    %v1340 = vld [vmem:[%s9 + $0x1c8] sm:$0xff]
    %v1341 = vld [vmem:[%s9 + $0x1d0] sm:$0xff]
    %v1342 = vld [vmem:[%s9 + $0x1d8] sm:$0xf]
    %v1343 = vld [vmem:[%s9 + $0x1dc] sm:$0xff]
    %v1344 = vld [vmem:[%s9 + $0x1e4] sm:$0xff]
    %v1345 = vld [vmem:[%s9 + $0x1ec] sm:$0xff]
    %v1346 = vld [vmem:[%s9 + $0x1f4] sm:$0xf]
    %v1347 = vld [vmem:[%s9 + $0x1f8] sm:$0xff]
    %v1348 = vld [vmem:[%s9 + $0x200] sm:$0xff]
    %v1349 = vld [vmem:[%s9 + $0x208] sm:$0xff]
    %v1350 = vld [vmem:[%s9 + $0x210] sm:$0xf]
    %v1351 = vld [vmem:[%s9 + $0x214] sm:$0xff]
    %v1352 = vld [vmem:[%s9 + $0x21c] sm:$0xff]
    %v1353 = vld [vmem:[%s9 + $0x224] sm:$0xff]
    %v1354 = vld [vmem:[%s9 + $0x22c] sm:$0xf]
    %v1355 = vld [vmem:[%s9 + $0x230] sm:$0xff]
    %v1356 = vld [vmem:[%s9 + $0x238] sm:$0xff]
    %v1357 = vld [vmem:[%s9 + $0x240] sm:$0xff]
    %v1358 = vld [vmem:[%s9 + $0x248] sm:$0xf]
    %v1359 = vld [vmem:[%s9 + $0x24c] sm:$0xff]
    %v1360 = vld [vmem:[%s9 + $0x254] sm:$0xff]
    %v1361 = vld [vmem:[%s9 + $0x25c] sm:$0xff]
    %v1362 = vld [vmem:[%s9 + $0x264] sm:$0xf]
    %v1363 = vld [vmem:[%s9 + $0x268] sm:$0xff]
    %v1364 = vld [vmem:[%s9 + $0x270] sm:$0xff]
    %v1365 = vld [vmem:[%s9 + $0x278] sm:$0xff]
    %v1366 = vld [vmem:[%s9 + $0x280] sm:$0xf]
    %v1367 = vld [vmem:[%s9 + $0x284] sm:$0xff]
    %v1368 = vld [vmem:[%s9 + $0x28c] sm:$0xff]
    %v1369 = vld [vmem:[%s9 + $0x294] sm:$0xff]
    %v1370 = vld [vmem:[%s9 + $0x29c] sm:$0xf]
    %v1371 = vld [vmem:[%s9 + $0x2a0] sm:$0xff]
    %v1372 = vld [vmem:[%s9 + $0x2a8] sm:$0xff]
    %v1373 = vld [vmem:[%s9 + $0x2b0] sm:$0xff]
    %v1374 = vld [vmem:[%s9 + $0x2b8] sm:$0xf]
    %v1375 = vld [vmem:[%s9 + $0x2bc] sm:$0xff]
    %v1376 = vld [vmem:[%s9 + $0x2c4] sm:$0xff]
    %v1377 = vld [vmem:[%s9 + $0x2cc] sm:$0xff]
    %v1378 = vld [vmem:[%s9 + $0x2d4] sm:$0xf]
    %v1379 = vld [vmem:[%s9 + $0x2d8] sm:$0xff]
    %v1380 = vld [vmem:[%s9 + $0x2e0] sm:$0xff]
    %v1381 = vld [vmem:[%s9 + $0x2e8] sm:$0xff]
    %v1382 = vld [vmem:[%s9 + $0x2f0] sm:$0xf]
    %v1383 = vld [vmem:[%s9 + $0x2f4] sm:$0xff]
    %v1384 = vld [vmem:[%s9 + $0x2fc] sm:$0xff]
    %v1385 = vld [vmem:[%s9 + $0x304] sm:$0xff]
    %v1386 = vld [vmem:[%s9 + $0x30c] sm:$0xf]
    %v1387 = vld [vmem:[%s9 + $0x310] sm:$0xff]
    %v1388 = vld [vmem:[%s9 + $0x318] sm:$0xff]
    %v1389 = vld [vmem:[%s9 + $0x320] sm:$0xff]
    %v1390 = vld [vmem:[%s9 + $0x328] sm:$0xf]
    %v1391 = vld [vmem:[%s9 + $0x32c] sm:$0xff]
    %v1392 = vld [vmem:[%s9 + $0x334] sm:$0xff]
    %v1393 = vld [vmem:[%s9 + $0x33c] sm:$0xff]
    %v1394 = vld [vmem:[%s9 + $0x344] sm:$0xf]
    %v1395 = vld [vmem:[%s9 + $0x348] sm:$0xff]
    %v1396 = vld [vmem:[%s9 + $0x350] sm:$0xff]
    %v1397 = vld [vmem:[%s9 + $0x358] sm:$0xff]
    %v1398 = vld [vmem:[%s9 + $0x360] sm:$0xf]
    %v1399 = vld [vmem:[%s9 + $0x364] sm:$0xff]
    %v1400 = vld [vmem:[%s9 + $0x36c] sm:$0xff]
    %v1401 = vld [vmem:[%s9 + $0x374] sm:$0xff]
    %v1402 = vld [vmem:[%s9 + $0x37c] sm:$0xf]
    %v1403 = vld [vmem:[%s9 + $0x380] sm:$0xff]
    %v1404 = vld [vmem:[%s9 + $0x388] sm:$0xff]
    %v1405 = vld [vmem:[%s9 + $0x390] sm:$0xff]
    %v1406 = vld [vmem:[%s9 + $0x398] sm:$0xf]
    %v1407 = vld [vmem:[%s9 + $0x39c] sm:$0xff]
    %v1408 = vld [vmem:[%s9 + $0x3a4] sm:$0xff]
    %v1409 = vld [vmem:[%s9 + $0x3ac] sm:$0xff]
    %v1410 = vld [vmem:[%s9 + $0x3b4] sm:$0xf]
    %v1411 = vld [vmem:[%s9 + $0x3b8] sm:$0xff]
    %v1412 = vld [vmem:[%s9 + $0x3c0] sm:$0xff]
    %v1413 = vld [vmem:[%s9 + $0x3c8] sm:$0xff]
    %v1414 = vld [vmem:[%s9 + $0x3d0] sm:$0xf]
    %v1415 = vld [vmem:[%s9 + $0x3d4] sm:$0xff]
    %v1416 = vld [vmem:[%s9 + $0x3dc] sm:$0xff]
    %v1417 = vld [vmem:[%s9 + $0x3e4] sm:$0xff]
    %v1418 = vld [vmem:[%s9 + $0x3ec] sm:$0xf]
    %v1419 = vld [vmem:[%s9 + $0x3f0] sm:$0xff]
    %v1420 = vld [vmem:[%s9 + $0x3f8] sm:$0xff]
    %v1421 = vld [vmem:[%s9 + $0x400] sm:$0xff]
    %v1422 = vld [vmem:[%s9 + $0x408] sm:$0xf]
    %v1423 = vld [vmem:[%s9 + $0x40c] sm:$0xff]
    %v1424 = vld [vmem:[%s9 + $0x414] sm:$0xff]
    %v1425 = vld [vmem:[%s9 + $0x41c] sm:$0xff]
    %v1426 = vld [vmem:[%s9 + $0x424] sm:$0xf]
    %v1427 = vld [vmem:[%s9 + $0x428] sm:$0xff]
    %v1428 = vld [vmem:[%s9 + $0x430] sm:$0xff]
    %v1429 = vld [vmem:[%s9 + $0x438] sm:$0xff]
    %v1430 = vld [vmem:[%s9 + $0x440] sm:$0xf]
    %v1431 = vld [vmem:[%s9 + $0x444] sm:$0xff]
    %v1432 = vld [vmem:[%s9 + $0x44c] sm:$0xff]
    %v1433 = vld [vmem:[%s9 + $0x454] sm:$0xff]
    %v1434 = vld [vmem:[%s9 + $0x45c] sm:$0xf]
    %v1435 = vld [vmem:[%s9 + $0x460] sm:$0xff]
    %v1436 = vld [vmem:[%s9 + $0x468] sm:$0xff]
    %v1437 = vld [vmem:[%s9 + $0x470] sm:$0xff]
    %v1438 = vld [vmem:[%s9 + $0x478] sm:$0xf]
    %v1439 = vld [vmem:[%s9 + $0x47c] sm:$0xff]
    %v1440 = vld [vmem:[%s9 + $0x484] sm:$0xff]
    %v1441 = vld [vmem:[%s9 + $0x48c] sm:$0xff]
    %v1442 = vld [vmem:[%s9 + $0x494] sm:$0xf]
    %v1443 = vld [vmem:[%s9 + $0x498] sm:$0xff]
    %v1444 = vld [vmem:[%s9 + $0x4a0] sm:$0xff]
    %v1445 = vld [vmem:[%s9 + $0x4a8] sm:$0xff]
    %v1446 = vld [vmem:[%s9 + $0x4b0] sm:$0xf]
    %v1447 = vld [vmem:[%s9 + $0x4b4] sm:$0xff]
    %v1448 = vld [vmem:[%s9 + $0x4bc] sm:$0xff]
    %v1449 = vld [vmem:[%s9 + $0x4c4] sm:$0xff]
    %v1450 = vld [vmem:[%s9 + $0x4cc] sm:$0xf]
    %v1451 = vld [vmem:[%s9 + $0x4d0] sm:$0xff]
    %v1452 = vld [vmem:[%s9 + $0x4d8] sm:$0xff]
    %v1453 = vld [vmem:[%s9 + $0x4e0] sm:$0xff]
    %v1454 = vld [vmem:[%s9 + $0x4e8] sm:$0xf]
    %v1455 = vld [vmem:[%s9 + $0x4ec] sm:$0xff]
    %v1456 = vld [vmem:[%s9 + $0x4f4] sm:$0xff]
    %v1457 = vld [vmem:[%s9 + $0x4fc] sm:$0xff]
    %v1458 = vld [vmem:[%s9 + $0x504] sm:$0xf]
    %v1459 = vld [vmem:[%s9 + $0x508] sm:$0xff]
    %v1460 = vld [vmem:[%s9 + $0x510] sm:$0xff]
    %v1461 = vld [vmem:[%s9 + $0x518] sm:$0xff]
    %v1462 = vld [vmem:[%s9 + $0x520] sm:$0xf]
    %v1463 = vld [vmem:[%s9 + $0x524] sm:$0xff]
    %v1464 = vld [vmem:[%s9 + $0x52c] sm:$0xff]
    %v1465 = vld [vmem:[%s9 + $0x534] sm:$0xff]
    %v1466 = vld [vmem:[%s9 + $0x53c] sm:$0xf]
    %v1467 = vld [vmem:[%s9 + $0x540] sm:$0xff]
    %v1468 = vld [vmem:[%s9 + $0x548] sm:$0xff]
    %v1469 = vld [vmem:[%s9 + $0x550] sm:$0xff]
    %v1470 = vld [vmem:[%s9 + $0x558] sm:$0xf]
    %v1471 = vld [vmem:[%s9 + $0x55c] sm:$0xff]
    %v1472 = vld [vmem:[%s9 + $0x564] sm:$0xff]
    %v1473 = vld [vmem:[%s9 + $0x56c] sm:$0xff]
    %v1474 = vld [vmem:[%s9 + $0x574] sm:$0xf]
    %v1475 = vld [vmem:[%s10] sm:$0xff]
    %v1477 = vperm.slane %v1475, 0
    %v1478 = vperm.slane %v1475, 1
    %v1479 = vperm.slane %v1475, 2
    %v1480 = vperm.slane %v1475, 3
    %v1481 = vperm.slane %v1475, 4
    %v1482 = vperm.slane %v1475, 5
    %v1483 = vperm.slane %v1475, 6
    %v1691 = vunpack.c.l.b16 %v1275
    %v1692 = vunpack.c.h.b16 %v1275
    %v1693 = vunpack.c.l.b16 %v1276
    %v1694 = vunpack.c.h.b16 %v1276
    %v1695 = vunpack.c.l.b16 %v1277
    %v1696 = vunpack.c.h.b16 %v1277
    %v1697 = vunpack.c.l.b16 %v1278
    %v1698 = vunpack.c.l.b16 %v1279
    %v1699 = vunpack.c.h.b16 %v1279
    %v1700 = vunpack.c.l.b16 %v1280
    %v1701 = vunpack.c.h.b16 %v1280
    %v1702 = vunpack.c.l.b16 %v1281
    %v1703 = vunpack.c.h.b16 %v1281
    %v1704 = vunpack.c.l.b16 %v1282
    %v1705 = vunpack.c.l.b16 %v1283
    %v1706 = vunpack.c.h.b16 %v1283
    %v1707 = vunpack.c.l.b16 %v1284
    %v1708 = vunpack.c.h.b16 %v1284
    %v1709 = vunpack.c.l.b16 %v1285
    %v1710 = vunpack.c.h.b16 %v1285
    %v1711 = vunpack.c.l.b16 %v1286
    %v1712 = vunpack.c.l.b16 %v1287
    %v1713 = vunpack.c.h.b16 %v1287
    %v1714 = vunpack.c.l.b16 %v1288
    %v1715 = vunpack.c.h.b16 %v1288
    %v1716 = vunpack.c.l.b16 %v1289
    %v1717 = vunpack.c.h.b16 %v1289
    %v1718 = vunpack.c.l.b16 %v1290
    %v1719 = vunpack.c.l.b16 %v1291
    %v1720 = vunpack.c.h.b16 %v1291
    %v1721 = vunpack.c.l.b16 %v1292
    %v1722 = vunpack.c.h.b16 %v1292
    %v1723 = vunpack.c.l.b16 %v1293
    %v1724 = vunpack.c.h.b16 %v1293
    %v1725 = vunpack.c.l.b16 %v1294
    %v1726 = vunpack.c.l.b16 %v1295
    %v1727 = vunpack.c.h.b16 %v1295
    %v1728 = vunpack.c.l.b16 %v1296
    %v1729 = vunpack.c.h.b16 %v1296
    %v1730 = vunpack.c.l.b16 %v1297
    %v1731 = vunpack.c.h.b16 %v1297
    %v1732 = vunpack.c.l.b16 %v1298
    %v1733 = vunpack.c.l.b16 %v1299
    %v1734 = vunpack.c.h.b16 %v1299
    %v1735 = vunpack.c.l.b16 %v1300
    %v1736 = vunpack.c.h.b16 %v1300
    %v1737 = vunpack.c.l.b16 %v1301
    %v1738 = vunpack.c.h.b16 %v1301
    %v1739 = vunpack.c.l.b16 %v1302
    %v1740 = vunpack.c.l.b16 %v1303
    %v1741 = vunpack.c.h.b16 %v1303
    %v1742 = vunpack.c.l.b16 %v1304
    %v1743 = vunpack.c.h.b16 %v1304
    %v1744 = vunpack.c.l.b16 %v1305
    %v1745 = vunpack.c.h.b16 %v1305
    %v1746 = vunpack.c.l.b16 %v1306
    %v1747 = vunpack.c.l.b16 %v1307
    %v1748 = vunpack.c.h.b16 %v1307
    %v1749 = vunpack.c.l.b16 %v1308
    %v1750 = vunpack.c.h.b16 %v1308
    %v1751 = vunpack.c.l.b16 %v1309
    %v1752 = vunpack.c.h.b16 %v1309
    %v1753 = vunpack.c.l.b16 %v1310
    %v1754 = vunpack.c.l.b16 %v1311
    %v1755 = vunpack.c.h.b16 %v1311
    %v1756 = vunpack.c.l.b16 %v1312
    %v1757 = vunpack.c.h.b16 %v1312
    %v1758 = vunpack.c.l.b16 %v1313
    %v1759 = vunpack.c.h.b16 %v1313
    %v1760 = vunpack.c.l.b16 %v1314
    %v1761 = vunpack.c.l.b16 %v1315
    %v1762 = vunpack.c.h.b16 %v1315
    %v1763 = vunpack.c.l.b16 %v1316
    %v1764 = vunpack.c.h.b16 %v1316
    %v1765 = vunpack.c.l.b16 %v1317
    %v1766 = vunpack.c.h.b16 %v1317
    %v1767 = vunpack.c.l.b16 %v1318
    %v1768 = vunpack.c.l.b16 %v1319
    %v1769 = vunpack.c.h.b16 %v1319
    %v1770 = vunpack.c.l.b16 %v1320
    %v1771 = vunpack.c.h.b16 %v1320
    %v1772 = vunpack.c.l.b16 %v1321
    %v1773 = vunpack.c.h.b16 %v1321
    %v1774 = vunpack.c.l.b16 %v1322
    %v1775 = vunpack.c.l.b16 %v1323
    %v1776 = vunpack.c.h.b16 %v1323
    %v1777 = vunpack.c.l.b16 %v1324
    %v1778 = vunpack.c.h.b16 %v1324
    %v1779 = vunpack.c.l.b16 %v1325
    %v1780 = vunpack.c.h.b16 %v1325
    %v1781 = vunpack.c.l.b16 %v1326
    %v1782 = vunpack.c.l.b16 %v1327
    %v1783 = vunpack.c.h.b16 %v1327
    %v1784 = vunpack.c.l.b16 %v1328
    %v1785 = vunpack.c.h.b16 %v1328
    %v1786 = vunpack.c.l.b16 %v1329
    %v1787 = vunpack.c.h.b16 %v1329
    %v1788 = vunpack.c.l.b16 %v1330
    %v1789 = vunpack.c.l.b16 %v1331
    %v1790 = vunpack.c.h.b16 %v1331
    %v1791 = vunpack.c.l.b16 %v1332
    %v1792 = vunpack.c.h.b16 %v1332
    %v1793 = vunpack.c.l.b16 %v1333
    %v1794 = vunpack.c.h.b16 %v1333
    %v1795 = vunpack.c.l.b16 %v1334
    %v1796 = vunpack.c.l.b16 %v1335
    %v1797 = vunpack.c.h.b16 %v1335
    %v1798 = vunpack.c.l.b16 %v1336
    %v1799 = vunpack.c.h.b16 %v1336
    %v1800 = vunpack.c.l.b16 %v1337
    %v1801 = vunpack.c.h.b16 %v1337
    %v1802 = vunpack.c.l.b16 %v1338
    %v1803 = vunpack.c.l.b16 %v1339
    %v1804 = vunpack.c.h.b16 %v1339
    %v1805 = vunpack.c.l.b16 %v1340
    %v1806 = vunpack.c.h.b16 %v1340
    %v1807 = vunpack.c.l.b16 %v1341
    %v1808 = vunpack.c.h.b16 %v1341
    %v1809 = vunpack.c.l.b16 %v1342
    %v1810 = vunpack.c.l.b16 %v1343
    %v1811 = vunpack.c.h.b16 %v1343
    %v1812 = vunpack.c.l.b16 %v1344
    %v1813 = vunpack.c.h.b16 %v1344
    %v1814 = vunpack.c.l.b16 %v1345
    %v1815 = vunpack.c.h.b16 %v1345
    %v1816 = vunpack.c.l.b16 %v1346
    %v1817 = vunpack.c.l.b16 %v1347
    %v1818 = vunpack.c.h.b16 %v1347
    %v1819 = vunpack.c.l.b16 %v1348
    %v1820 = vunpack.c.h.b16 %v1348
    %v1821 = vunpack.c.l.b16 %v1349
    %v1822 = vunpack.c.h.b16 %v1349
    %v1823 = vunpack.c.l.b16 %v1350
    %v1824 = vunpack.c.l.b16 %v1351
    %v1825 = vunpack.c.h.b16 %v1351
    %v1826 = vunpack.c.l.b16 %v1352
    %v1827 = vunpack.c.h.b16 %v1352
    %v1828 = vunpack.c.l.b16 %v1353
    %v1829 = vunpack.c.h.b16 %v1353
    %v1830 = vunpack.c.l.b16 %v1354
    %v1831 = vunpack.c.l.b16 %v1355
    %v1832 = vunpack.c.h.b16 %v1355
    %v1833 = vunpack.c.l.b16 %v1356
    %v1834 = vunpack.c.h.b16 %v1356
    %v1835 = vunpack.c.l.b16 %v1357
    %v1836 = vunpack.c.h.b16 %v1357
    %v1837 = vunpack.c.l.b16 %v1358
    %v1838 = vunpack.c.l.b16 %v1359
    %v1839 = vunpack.c.h.b16 %v1359
    %v1840 = vunpack.c.l.b16 %v1360
    %v1841 = vunpack.c.h.b16 %v1360
    %v1842 = vunpack.c.l.b16 %v1361
    %v1843 = vunpack.c.h.b16 %v1361
    %v1844 = vunpack.c.l.b16 %v1362
    %v1845 = vunpack.c.l.b16 %v1363
    %v1846 = vunpack.c.h.b16 %v1363
    %v1847 = vunpack.c.l.b16 %v1364
    %v1848 = vunpack.c.h.b16 %v1364
    %v1849 = vunpack.c.l.b16 %v1365
    %v1850 = vunpack.c.h.b16 %v1365
    %v1851 = vunpack.c.l.b16 %v1366
    %v1852 = vunpack.c.l.b16 %v1367
    %v1853 = vunpack.c.h.b16 %v1367
    %v1854 = vunpack.c.l.b16 %v1368
    %v1855 = vunpack.c.h.b16 %v1368
    %v1856 = vunpack.c.l.b16 %v1369
    %v1857 = vunpack.c.h.b16 %v1369
    %v1858 = vunpack.c.l.b16 %v1370
    %v1859 = vunpack.c.l.b16 %v1371
    %v1860 = vunpack.c.h.b16 %v1371
    %v1861 = vunpack.c.l.b16 %v1372
    %v1862 = vunpack.c.h.b16 %v1372
    %v1863 = vunpack.c.l.b16 %v1373
    %v1864 = vunpack.c.h.b16 %v1373
    %v1865 = vunpack.c.l.b16 %v1374
    %v1866 = vunpack.c.l.b16 %v1375
    %v1867 = vunpack.c.h.b16 %v1375
    %v1868 = vunpack.c.l.b16 %v1376
    %v1869 = vunpack.c.h.b16 %v1376
    %v1870 = vunpack.c.l.b16 %v1377
    %v1871 = vunpack.c.h.b16 %v1377
    %v1872 = vunpack.c.l.b16 %v1378
    %v1873 = vunpack.c.l.b16 %v1379
    %v1874 = vunpack.c.h.b16 %v1379
    %v1875 = vunpack.c.l.b16 %v1380
    %v1876 = vunpack.c.h.b16 %v1380
    %v1877 = vunpack.c.l.b16 %v1381
    %v1878 = vunpack.c.h.b16 %v1381
    %v1879 = vunpack.c.l.b16 %v1382
    %v1880 = vunpack.c.l.b16 %v1383
    %v1881 = vunpack.c.h.b16 %v1383
    %v1882 = vunpack.c.l.b16 %v1384
    %v1883 = vunpack.c.h.b16 %v1384
    %v1884 = vunpack.c.l.b16 %v1385
    %v1885 = vunpack.c.h.b16 %v1385
    %v1886 = vunpack.c.l.b16 %v1386
    %v1887 = vunpack.c.l.b16 %v1387
    %v1888 = vunpack.c.h.b16 %v1387
    %v1889 = vunpack.c.l.b16 %v1388
    %v1890 = vunpack.c.h.b16 %v1388
    %v1891 = vunpack.c.l.b16 %v1389
    %v1892 = vunpack.c.h.b16 %v1389
    %v1893 = vunpack.c.l.b16 %v1390
    %v1894 = vunpack.c.l.b16 %v1391
    %v1895 = vunpack.c.h.b16 %v1391
    %v1896 = vunpack.c.l.b16 %v1392
    %v1897 = vunpack.c.h.b16 %v1392
    %v1898 = vunpack.c.l.b16 %v1393
    %v1899 = vunpack.c.h.b16 %v1393
    %v1900 = vunpack.c.l.b16 %v1394
    %v1901 = vunpack.c.l.b16 %v1395
    %v1902 = vunpack.c.h.b16 %v1395
    %v1903 = vunpack.c.l.b16 %v1396
    %v1904 = vunpack.c.h.b16 %v1396
    %v1905 = vunpack.c.l.b16 %v1397
    %v1906 = vunpack.c.h.b16 %v1397
    %v1907 = vunpack.c.l.b16 %v1398
    %v1908 = vunpack.c.l.b16 %v1399
    %v1909 = vunpack.c.h.b16 %v1399
    %v1910 = vunpack.c.l.b16 %v1400
    %v1911 = vunpack.c.h.b16 %v1400
    %v1912 = vunpack.c.l.b16 %v1401
    %v1913 = vunpack.c.h.b16 %v1401
    %v1914 = vunpack.c.l.b16 %v1402
    %v1915 = vunpack.c.l.b16 %v1403
    %v1916 = vunpack.c.h.b16 %v1403
    %v1917 = vunpack.c.l.b16 %v1404
    %v1918 = vunpack.c.h.b16 %v1404
    %v1919 = vunpack.c.l.b16 %v1405
    %v1920 = vunpack.c.h.b16 %v1405
    %v1921 = vunpack.c.l.b16 %v1406
    %v1922 = vunpack.c.l.b16 %v1407
    %v1923 = vunpack.c.h.b16 %v1407
    %v1924 = vunpack.c.l.b16 %v1408
    %v1925 = vunpack.c.h.b16 %v1408
    %v1926 = vunpack.c.l.b16 %v1409
    %v1927 = vunpack.c.h.b16 %v1409
    %v1928 = vunpack.c.l.b16 %v1410
    %v1929 = vunpack.c.l.b16 %v1411
    %v1930 = vunpack.c.h.b16 %v1411
    %v1931 = vunpack.c.l.b16 %v1412
    %v1932 = vunpack.c.h.b16 %v1412
    %v1933 = vunpack.c.l.b16 %v1413
    %v1934 = vunpack.c.h.b16 %v1413
    %v1935 = vunpack.c.l.b16 %v1414
    %v1936 = vunpack.c.l.b16 %v1415
    %v1937 = vunpack.c.h.b16 %v1415
    %v1938 = vunpack.c.l.b16 %v1416
    %v1939 = vunpack.c.h.b16 %v1416
    %v1940 = vunpack.c.l.b16 %v1417
    %v1941 = vunpack.c.h.b16 %v1417
    %v1942 = vunpack.c.l.b16 %v1418
    %v1943 = vunpack.c.l.b16 %v1419
    %v1944 = vunpack.c.h.b16 %v1419
    %v1945 = vunpack.c.l.b16 %v1420
    %v1946 = vunpack.c.h.b16 %v1420
    %v1947 = vunpack.c.l.b16 %v1421
    %v1948 = vunpack.c.h.b16 %v1421
    %v1949 = vunpack.c.l.b16 %v1422
    %v1950 = vunpack.c.l.b16 %v1423
    %v1951 = vunpack.c.h.b16 %v1423
    %v1952 = vunpack.c.l.b16 %v1424
    %v1953 = vunpack.c.h.b16 %v1424
    %v1954 = vunpack.c.l.b16 %v1425
    %v1955 = vunpack.c.h.b16 %v1425
    %v1956 = vunpack.c.l.b16 %v1426
    %v1957 = vunpack.c.l.b16 %v1427
    %v1958 = vunpack.c.h.b16 %v1427
    %v1959 = vunpack.c.l.b16 %v1428
    %v1960 = vunpack.c.h.b16 %v1428
    %v1961 = vunpack.c.l.b16 %v1429
    %v1962 = vunpack.c.h.b16 %v1429
    %v1963 = vunpack.c.l.b16 %v1430
    %v1964 = vunpack.c.l.b16 %v1431
    %v1965 = vunpack.c.h.b16 %v1431
    %v1966 = vunpack.c.l.b16 %v1432
    %v1967 = vunpack.c.h.b16 %v1432
    %v1968 = vunpack.c.l.b16 %v1433
    %v1969 = vunpack.c.h.b16 %v1433
    %v1970 = vunpack.c.l.b16 %v1434
    %v1971 = vunpack.c.l.b16 %v1435
    %v1972 = vunpack.c.h.b16 %v1435
    %v1973 = vunpack.c.l.b16 %v1436
    %v1974 = vunpack.c.h.b16 %v1436
    %v1975 = vunpack.c.l.b16 %v1437
    %v1976 = vunpack.c.h.b16 %v1437
    %v1977 = vunpack.c.l.b16 %v1438
    %v1978 = vunpack.c.l.b16 %v1439
    %v1979 = vunpack.c.h.b16 %v1439
    %v1980 = vunpack.c.l.b16 %v1440
    %v1981 = vunpack.c.h.b16 %v1440
    %v1982 = vunpack.c.l.b16 %v1441
    %v1983 = vunpack.c.h.b16 %v1441
    %v1984 = vunpack.c.l.b16 %v1442
    %v1985 = vunpack.c.l.b16 %v1443
    %v1986 = vunpack.c.h.b16 %v1443
    %v1987 = vunpack.c.l.b16 %v1444
    %v1988 = vunpack.c.h.b16 %v1444
    %v1989 = vunpack.c.l.b16 %v1445
    %v1990 = vunpack.c.h.b16 %v1445
    %v1991 = vunpack.c.l.b16 %v1446
    %v1992 = vunpack.c.l.b16 %v1447
    %v1993 = vunpack.c.h.b16 %v1447
    %v1994 = vunpack.c.l.b16 %v1448
    %v1995 = vunpack.c.h.b16 %v1448
    %v1996 = vunpack.c.l.b16 %v1449
    %v1997 = vunpack.c.h.b16 %v1449
    %v1998 = vunpack.c.l.b16 %v1450
    %v1999 = vunpack.c.l.b16 %v1451
    %v2000 = vunpack.c.h.b16 %v1451
    %v2001 = vunpack.c.l.b16 %v1452
    %v2002 = vunpack.c.h.b16 %v1452
    %v2003 = vunpack.c.l.b16 %v1453
    %v2004 = vunpack.c.h.b16 %v1453
    %v2005 = vunpack.c.l.b16 %v1454
    %v2006 = vunpack.c.l.b16 %v1455
    %v2007 = vunpack.c.h.b16 %v1455
    %v2008 = vunpack.c.l.b16 %v1456
    %v2009 = vunpack.c.h.b16 %v1456
    %v2010 = vunpack.c.l.b16 %v1457
    %v2011 = vunpack.c.h.b16 %v1457
    %v2012 = vunpack.c.l.b16 %v1458
    %v2013 = vunpack.c.l.b16 %v1459
    %v2014 = vunpack.c.h.b16 %v1459
    %v2015 = vunpack.c.l.b16 %v1460
    %v2016 = vunpack.c.h.b16 %v1460
    %v2017 = vunpack.c.l.b16 %v1461
    %v2018 = vunpack.c.h.b16 %v1461
    %v2019 = vunpack.c.l.b16 %v1462
    %v2020 = vunpack.c.l.b16 %v1463
    %v2021 = vunpack.c.h.b16 %v1463
    %v2022 = vunpack.c.l.b16 %v1464
    %v2023 = vunpack.c.h.b16 %v1464
    %v2024 = vunpack.c.l.b16 %v1465
    %v2025 = vunpack.c.h.b16 %v1465
    %v2026 = vunpack.c.l.b16 %v1466
    %v2027 = vunpack.c.l.b16 %v1467
    %v2028 = vunpack.c.h.b16 %v1467
    %v2029 = vunpack.c.l.b16 %v1468
    %v2030 = vunpack.c.h.b16 %v1468
    %v2031 = vunpack.c.l.b16 %v1469
    %v2032 = vunpack.c.h.b16 %v1469
    %v2033 = vunpack.c.l.b16 %v1470
    %v2034 = vunpack.c.l.b16 %v1471
    %v2035 = vunpack.c.h.b16 %v1471
    %v2036 = vunpack.c.l.b16 %v1472
    %v2037 = vunpack.c.h.b16 %v1472
    %v2038 = vunpack.c.l.b16 %v1473
    %v2039 = vunpack.c.h.b16 %v1473
    %v2040 = vunpack.c.l.b16 %v1474
    %v2041 = vpack.c.b16 %v1698, %v1691
    %v2042 = vpack.c.b16 %v1699, %v1692
    %v2043 = vpack.c.b16 %v1700, %v1693
    %v2044 = vpack.c.b16 %v1701, %v1694
    %v2045 = vpack.c.b16 %v1702, %v1695
    %v2046 = vpack.c.b16 %v1703, %v1696
    %v2047 = vpack.c.b16 %v1704, %v1697
    %v2048 = vpack.c.b16 %v1712, %v1705
    %v2049 = vpack.c.b16 %v1713, %v1706
    %v2050 = vpack.c.b16 %v1714, %v1707
    %v2051 = vpack.c.b16 %v1715, %v1708
    %v2052 = vpack.c.b16 %v1716, %v1709
    %v2053 = vpack.c.b16 %v1717, %v1710
    %v2054 = vpack.c.b16 %v1718, %v1711
    %v2055 = vpack.c.b16 %v1726, %v1719
    %v2056 = vpack.c.b16 %v1727, %v1720
    %v2057 = vpack.c.b16 %v1728, %v1721
    %v2058 = vpack.c.b16 %v1729, %v1722
    %v2059 = vpack.c.b16 %v1730, %v1723
    %v2060 = vpack.c.b16 %v1731, %v1724
    %v2061 = vpack.c.b16 %v1732, %v1725
    %v2062 = vpack.c.b16 %v1740, %v1733
    %v2063 = vpack.c.b16 %v1741, %v1734
    %v2064 = vpack.c.b16 %v1742, %v1735
    %v2065 = vpack.c.b16 %v1743, %v1736
    %v2066 = vpack.c.b16 %v1744, %v1737
    %v2067 = vpack.c.b16 %v1745, %v1738
    %v2068 = vpack.c.b16 %v1746, %v1739
    %v2069 = vpack.c.b16 %v1754, %v1747
    %v2070 = vpack.c.b16 %v1755, %v1748
    %v2071 = vpack.c.b16 %v1756, %v1749
    %v2072 = vpack.c.b16 %v1757, %v1750
    %v2073 = vpack.c.b16 %v1758, %v1751
    %v2074 = vpack.c.b16 %v1759, %v1752
    %v2075 = vpack.c.b16 %v1760, %v1753
    %v2076 = vpack.c.b16 %v1768, %v1761
    %v2077 = vpack.c.b16 %v1769, %v1762
    %v2078 = vpack.c.b16 %v1770, %v1763
    %v2079 = vpack.c.b16 %v1771, %v1764
    %v2080 = vpack.c.b16 %v1772, %v1765
    %v2081 = vpack.c.b16 %v1773, %v1766
    %v2082 = vpack.c.b16 %v1774, %v1767
    %v2083 = vpack.c.b16 %v1782, %v1775
    %v2084 = vpack.c.b16 %v1783, %v1776
    %v2085 = vpack.c.b16 %v1784, %v1777
    %v2086 = vpack.c.b16 %v1785, %v1778
    %v2087 = vpack.c.b16 %v1786, %v1779
    %v2088 = vpack.c.b16 %v1787, %v1780
    %v2089 = vpack.c.b16 %v1788, %v1781
    %v2090 = vpack.c.b16 %v1796, %v1789
    %v2091 = vpack.c.b16 %v1797, %v1790
    %v2092 = vpack.c.b16 %v1798, %v1791
    %v2093 = vpack.c.b16 %v1799, %v1792
    %v2094 = vpack.c.b16 %v1800, %v1793
    %v2095 = vpack.c.b16 %v1801, %v1794
    %v2096 = vpack.c.b16 %v1802, %v1795
    %v2097 = vpack.c.b16 %v1810, %v1803
    %v2098 = vpack.c.b16 %v1811, %v1804
    %v2099 = vpack.c.b16 %v1812, %v1805
    %v2100 = vpack.c.b16 %v1813, %v1806
    %v2101 = vpack.c.b16 %v1814, %v1807
    %v2102 = vpack.c.b16 %v1815, %v1808
    %v2103 = vpack.c.b16 %v1816, %v1809
    %v2104 = vpack.c.b16 %v1824, %v1817
    %v2105 = vpack.c.b16 %v1825, %v1818
    %v2106 = vpack.c.b16 %v1826, %v1819
    %v2107 = vpack.c.b16 %v1827, %v1820
    %v2108 = vpack.c.b16 %v1828, %v1821
    %v2109 = vpack.c.b16 %v1829, %v1822
    %v2110 = vpack.c.b16 %v1830, %v1823
    %v2111 = vpack.c.b16 %v1838, %v1831
    %v2112 = vpack.c.b16 %v1839, %v1832
    %v2113 = vpack.c.b16 %v1840, %v1833
    %v2114 = vpack.c.b16 %v1841, %v1834
    %v2115 = vpack.c.b16 %v1842, %v1835
    %v2116 = vpack.c.b16 %v1843, %v1836
    %v2117 = vpack.c.b16 %v1844, %v1837
    %v2118 = vpack.c.b16 %v1852, %v1845
    %v2119 = vpack.c.b16 %v1853, %v1846
    %v2120 = vpack.c.b16 %v1854, %v1847
    %v2121 = vpack.c.b16 %v1855, %v1848
    %v2122 = vpack.c.b16 %v1856, %v1849
    %v2123 = vpack.c.b16 %v1857, %v1850
    %v2124 = vpack.c.b16 %v1858, %v1851
    %v2125 = vpack.c.b16 %v1866, %v1859
    %v2126 = vpack.c.b16 %v1867, %v1860
    %v2127 = vpack.c.b16 %v1868, %v1861
    %v2128 = vpack.c.b16 %v1869, %v1862
    %v2129 = vpack.c.b16 %v1870, %v1863
    %v2130 = vpack.c.b16 %v1871, %v1864
    %v2131 = vpack.c.b16 %v1872, %v1865
    %v2132 = vpack.c.b16 %v1880, %v1873
    %v2133 = vpack.c.b16 %v1881, %v1874
    %v2134 = vpack.c.b16 %v1882, %v1875
    %v2135 = vpack.c.b16 %v1883, %v1876
    %v2136 = vpack.c.b16 %v1884, %v1877
    %v2137 = vpack.c.b16 %v1885, %v1878
    %v2138 = vpack.c.b16 %v1886, %v1879
    %v2139 = vpack.c.b16 %v1894, %v1887
    %v2140 = vpack.c.b16 %v1895, %v1888
    %v2141 = vpack.c.b16 %v1896, %v1889
    %v2142 = vpack.c.b16 %v1897, %v1890
    %v2143 = vpack.c.b16 %v1898, %v1891
    %v2144 = vpack.c.b16 %v1899, %v1892
    %v2145 = vpack.c.b16 %v1900, %v1893
    %v2146 = vpack.c.b16 %v1908, %v1901
    %v2147 = vpack.c.b16 %v1909, %v1902
    %v2148 = vpack.c.b16 %v1910, %v1903
    %v2149 = vpack.c.b16 %v1911, %v1904
    %v2150 = vpack.c.b16 %v1912, %v1905
    %v2151 = vpack.c.b16 %v1913, %v1906
    %v2152 = vpack.c.b16 %v1914, %v1907
    %v2153 = vpack.c.b16 %v1922, %v1915
    %v2154 = vpack.c.b16 %v1923, %v1916
    %v2155 = vpack.c.b16 %v1924, %v1917
    %v2156 = vpack.c.b16 %v1925, %v1918
    %v2157 = vpack.c.b16 %v1926, %v1919
    %v2158 = vpack.c.b16 %v1927, %v1920
    %v2159 = vpack.c.b16 %v1928, %v1921
    %v2160 = vpack.c.b16 %v1936, %v1929
    %v2161 = vpack.c.b16 %v1937, %v1930
    %v2162 = vpack.c.b16 %v1938, %v1931
    %v2163 = vpack.c.b16 %v1939, %v1932
    %v2164 = vpack.c.b16 %v1940, %v1933
    %v2165 = vpack.c.b16 %v1941, %v1934
    %v2166 = vpack.c.b16 %v1942, %v1935
    %v2167 = vpack.c.b16 %v1950, %v1943
    %v2168 = vpack.c.b16 %v1951, %v1944
    %v2169 = vpack.c.b16 %v1952, %v1945
    %v2170 = vpack.c.b16 %v1953, %v1946
    %v2171 = vpack.c.b16 %v1954, %v1947
    %v2172 = vpack.c.b16 %v1955, %v1948
    %v2173 = vpack.c.b16 %v1956, %v1949
    %v2174 = vpack.c.b16 %v1964, %v1957
    %v2175 = vpack.c.b16 %v1965, %v1958
    %v2176 = vpack.c.b16 %v1966, %v1959
    %v2177 = vpack.c.b16 %v1967, %v1960
    %v2178 = vpack.c.b16 %v1968, %v1961
    %v2179 = vpack.c.b16 %v1969, %v1962
    %v2180 = vpack.c.b16 %v1970, %v1963
    %v2181 = vpack.c.b16 %v1978, %v1971
    %v2182 = vpack.c.b16 %v1979, %v1972
    %v2183 = vpack.c.b16 %v1980, %v1973
    %v2184 = vpack.c.b16 %v1981, %v1974
    %v2185 = vpack.c.b16 %v1982, %v1975
    %v2186 = vpack.c.b16 %v1983, %v1976
    %v2187 = vpack.c.b16 %v1984, %v1977
    %v2188 = vpack.c.b16 %v1992, %v1985
    %v2189 = vpack.c.b16 %v1993, %v1986
    %v2190 = vpack.c.b16 %v1994, %v1987
    %v2191 = vpack.c.b16 %v1995, %v1988
    %v2192 = vpack.c.b16 %v1996, %v1989
    %v2193 = vpack.c.b16 %v1997, %v1990
    %v2194 = vpack.c.b16 %v1998, %v1991
    %v2195 = vpack.c.b16 %v2006, %v1999
    %v2196 = vpack.c.b16 %v2007, %v2000
    %v2197 = vpack.c.b16 %v2008, %v2001
    %v2198 = vpack.c.b16 %v2009, %v2002
    %v2199 = vpack.c.b16 %v2010, %v2003
    %v2200 = vpack.c.b16 %v2011, %v2004
    %v2201 = vpack.c.b16 %v2012, %v2005
    %v2202 = vpack.c.b16 %v2020, %v2013
    %v2203 = vpack.c.b16 %v2021, %v2014
    %v2204 = vpack.c.b16 %v2022, %v2015
    %v2205 = vpack.c.b16 %v2023, %v2016
    %v2206 = vpack.c.b16 %v2024, %v2017
    %v2207 = vpack.c.b16 %v2025, %v2018
    %v2208 = vpack.c.b16 %v2026, %v2019
    %v2209 = vpack.c.b16 %v2034, %v2027
    %v2210 = vpack.c.b16 %v2035, %v2028
    %v2211 = vpack.c.b16 %v2036, %v2029
    %v2212 = vpack.c.b16 %v2037, %v2030
    %v2213 = vpack.c.b16 %v2038, %v2031
    %v2214 = vpack.c.b16 %v2039, %v2032
    %v2215 = vpack.c.b16 %v2040, %v2033
    %v2392 = vsel %vm830, %v1274, 0
    %2394 = vmatpush.bf16.msra.mxu0 %v2090
    %2395 = vmatpush.bf16.msra.mxu0 %v2083
    %2396 = vmatpush.bf16.msra.mxu0 %v2076
    %2397 = vmatpush.bf16.msra.mxu0 %v2069
    %2398 = vmatpush.bf16.msra.mxu0 %v2062
    %2399 = vmatpush.bf16.msra.mxu0 %v2055
    %2400 = vmatpush.bf16.msra.mxu0 %v2048
    %2401 = vmatpush.bf16.msra.mxu0 %v2041
    %2402 = vmatmul.bf16.gmra.mxu0 %v1271
    %v2403 = vpop.f32.mrf.mxu0
    %v2404 = vadd.f32 %v1477, %v2403
    %v2405 = vpop.f32.mrf.mxu0
    %2406 = vdwg.mxu0
    %2407 = vmatpush.bf16.msra.mxu0 %v2146
    %2408 = vmatpush.bf16.msra.mxu0 %v2139
    %2409 = vmatpush.bf16.msra.mxu0 %v2132
    %2410 = vmatpush.bf16.msra.mxu0 %v2125
    %2411 = vmatpush.bf16.msra.mxu0 %v2118
    %2412 = vmatpush.bf16.msra.mxu0 %v2111
    %2413 = vmatpush.bf16.msra.mxu0 %v2104
    %2414 = vmatpush.bf16.msra.mxu0 %v2097
    %2415 = vmatmul.bf16.gmra.mxu0 %v1272
    %v2416 = vpop.f32.mrf.mxu0
    %v2417 = vadd.f32 %v2404, %v2416
    %v2418 = vpop.f32.mrf.mxu0
    %2419 = vdwg.mxu0
    %2420 = vmatpush.bf16.msra.mxu0 %v2202
    %2421 = vmatpush.bf16.msra.mxu0 %v2195
    %2422 = vmatpush.bf16.msra.mxu0 %v2188
    %2423 = vmatpush.bf16.msra.mxu0 %v2181
    %2424 = vmatpush.bf16.msra.mxu0 %v2174
    %2425 = vmatpush.bf16.msra.mxu0 %v2167
    %2426 = vmatpush.bf16.msra.mxu0 %v2160
    %2427 = vmatpush.bf16.msra.mxu0 %v2153
    %2428 = vmatmul.bf16.gmra.mxu0 %v1273
    %v2429 = vpop.f32.mrf.mxu0
    %v2430 = vadd.f32 %v2417, %v2429
    %v2431 = vpop.f32.mrf.mxu0
    %2432 = vdwg.mxu0
    %2433 = vmatpush.bf16.msra.mxu0 0
    %2434 = vmatpush.bf16.msra.mxu0 0
    %2435 = vmatpush.bf16.msra.mxu0 0
    %2436 = vmatpush.bf16.msra.mxu0 0
    %2437 = vmatpush.bf16.msra.mxu0 0
    %2438 = vmatpush.bf16.msra.mxu0 0
    %2439 = vmatpush.bf16.msra.mxu0 0
    %2440 = vmatpush.bf16.msra.mxu0 %v2209
    %2441 = vmatmul.bf16.gmra.mxu0 %v2392
    %v2442 = vpop.f32.mrf.mxu0
    %v2443 = vadd.f32 %v2430, %v2442
    %v2444 = vpop.f32.mrf.mxu0
    %2445 = vdwg.mxu0
    %2446 = vmatpush.bf16.msra.mxu0 %v2091
    %2447 = vmatpush.bf16.msra.mxu0 %v2084
    %2448 = vmatpush.bf16.msra.mxu0 %v2077
    %2449 = vmatpush.bf16.msra.mxu0 %v2070
    %2450 = vmatpush.bf16.msra.mxu0 %v2063
    %2451 = vmatpush.bf16.msra.mxu0 %v2056
    %2452 = vmatpush.bf16.msra.mxu0 %v2049
    %2453 = vmatpush.bf16.msra.mxu0 %v2042
    %2454 = vmatmul.bf16.gmra.mxu0 %v1271
    %v2455 = vpop.f32.mrf.mxu0
    %v2456 = vadd.f32 %v1478, %v2455
    %v2457 = vpop.f32.mrf.mxu0
    %2458 = vdwg.mxu0
    %2459 = vmatpush.bf16.msra.mxu0 %v2147
    %2460 = vmatpush.bf16.msra.mxu0 %v2140
    %2461 = vmatpush.bf16.msra.mxu0 %v2133
    %2462 = vmatpush.bf16.msra.mxu0 %v2126
    %2463 = vmatpush.bf16.msra.mxu0 %v2119
    %2464 = vmatpush.bf16.msra.mxu0 %v2112
    %2465 = vmatpush.bf16.msra.mxu0 %v2105
    %2466 = vmatpush.bf16.msra.mxu0 %v2098
    %2467 = vmatmul.bf16.gmra.mxu0 %v1272
    %v2468 = vpop.f32.mrf.mxu0
    %v2469 = vadd.f32 %v2456, %v2468
    %v2470 = vpop.f32.mrf.mxu0
    %2471 = vdwg.mxu0
    %2472 = vmatpush.bf16.msra.mxu0 %v2203
    %2473 = vmatpush.bf16.msra.mxu0 %v2196
    %2474 = vmatpush.bf16.msra.mxu0 %v2189
    %2475 = vmatpush.bf16.msra.mxu0 %v2182
    %2476 = vmatpush.bf16.msra.mxu0 %v2175
    %2477 = vmatpush.bf16.msra.mxu0 %v2168
    %2478 = vmatpush.bf16.msra.mxu0 %v2161
    %2479 = vmatpush.bf16.msra.mxu0 %v2154
    %2480 = vmatmul.bf16.gmra.mxu0 %v1273
    %v2481 = vpop.f32.mrf.mxu0
    %v2482 = vadd.f32 %v2469, %v2481
    %v2483 = vpop.f32.mrf.mxu0
    %2484 = vdwg.mxu0
    %2485 = vmatpush.bf16.msra.mxu0 0
    %2486 = vmatpush.bf16.msra.mxu0 0
    %2487 = vmatpush.bf16.msra.mxu0 0
    %2488 = vmatpush.bf16.msra.mxu0 0
    %2489 = vmatpush.bf16.msra.mxu0 0
    %2490 = vmatpush.bf16.msra.mxu0 0
    %2491 = vmatpush.bf16.msra.mxu0 0
    %2492 = vmatpush.bf16.msra.mxu0 %v2210
    %2493 = vmatmul.bf16.gmra.mxu0 %v2392
    %v2494 = vpop.f32.mrf.mxu0
    %v2495 = vadd.f32 %v2482, %v2494
    %v2496 = vpop.f32.mrf.mxu0
    %2497 = vdwg.mxu0
    %2498 = vmatpush.bf16.msra.mxu0 %v2092
    %2499 = vmatpush.bf16.msra.mxu0 %v2085
    %2500 = vmatpush.bf16.msra.mxu0 %v2078
    %2501 = vmatpush.bf16.msra.mxu0 %v2071
    %2502 = vmatpush.bf16.msra.mxu0 %v2064
    %2503 = vmatpush.bf16.msra.mxu0 %v2057
    %2504 = vmatpush.bf16.msra.mxu0 %v2050
    %2505 = vmatpush.bf16.msra.mxu0 %v2043
    %2506 = vmatmul.bf16.gmra.mxu0 %v1271
    %v2507 = vpop.f32.mrf.mxu0
    %v2508 = vadd.f32 %v1479, %v2507
    %v2509 = vpop.f32.mrf.mxu0
    %2510 = vdwg.mxu0
    %2511 = vmatpush.bf16.msra.mxu0 %v2148
    %2512 = vmatpush.bf16.msra.mxu0 %v2141
    %2513 = vmatpush.bf16.msra.mxu0 %v2134
    %2514 = vmatpush.bf16.msra.mxu0 %v2127
    %2515 = vmatpush.bf16.msra.mxu0 %v2120
    %2516 = vmatpush.bf16.msra.mxu0 %v2113
    %2517 = vmatpush.bf16.msra.mxu0 %v2106
    %2518 = vmatpush.bf16.msra.mxu0 %v2099
    %2519 = vmatmul.bf16.gmra.mxu0 %v1272
    %v2520 = vpop.f32.mrf.mxu0
    %v2521 = vadd.f32 %v2508, %v2520
    %v2522 = vpop.f32.mrf.mxu0
    %2523 = vdwg.mxu0
    %2524 = vmatpush.bf16.msra.mxu0 %v2204
    %2525 = vmatpush.bf16.msra.mxu0 %v2197
    %2526 = vmatpush.bf16.msra.mxu0 %v2190
    %2527 = vmatpush.bf16.msra.mxu0 %v2183
    %2528 = vmatpush.bf16.msra.mxu0 %v2176
    %2529 = vmatpush.bf16.msra.mxu0 %v2169
    %2530 = vmatpush.bf16.msra.mxu0 %v2162
    %2531 = vmatpush.bf16.msra.mxu0 %v2155
    %2532 = vmatmul.bf16.gmra.mxu0 %v1273
    %v2533 = vpop.f32.mrf.mxu0
    %v2534 = vadd.f32 %v2521, %v2533
    %v2535 = vpop.f32.mrf.mxu0
    %2536 = vdwg.mxu0
    %2537 = vmatpush.bf16.msra.mxu0 0
    %2538 = vmatpush.bf16.msra.mxu0 0
    %2539 = vmatpush.bf16.msra.mxu0 0
    %2540 = vmatpush.bf16.msra.mxu0 0
    %2541 = vmatpush.bf16.msra.mxu0 0
    %2542 = vmatpush.bf16.msra.mxu0 0
    %2543 = vmatpush.bf16.msra.mxu0 0
    %2544 = vmatpush.bf16.msra.mxu0 %v2211
    %2545 = vmatmul.bf16.gmra.mxu0 %v2392
    %v2546 = vpop.f32.mrf.mxu0
    %v2547 = vadd.f32 %v2534, %v2546
    %v2548 = vpop.f32.mrf.mxu0
    %2549 = vdwg.mxu0
    %2550 = vmatpush.bf16.msra.mxu0 %v2093
    %2551 = vmatpush.bf16.msra.mxu0 %v2086
    %2552 = vmatpush.bf16.msra.mxu0 %v2079
    %2553 = vmatpush.bf16.msra.mxu0 %v2072
    %2554 = vmatpush.bf16.msra.mxu0 %v2065
    %2555 = vmatpush.bf16.msra.mxu0 %v2058
    %2556 = vmatpush.bf16.msra.mxu0 %v2051
    %2557 = vmatpush.bf16.msra.mxu0 %v2044
    %2558 = vmatmul.bf16.gmra.mxu0 %v1271
    %v2559 = vpop.f32.mrf.mxu0
    %v2560 = vadd.f32 %v1480, %v2559
    %v2561 = vpop.f32.mrf.mxu0
    %2562 = vdwg.mxu0
    %2563 = vmatpush.bf16.msra.mxu0 %v2149
    %2564 = vmatpush.bf16.msra.mxu0 %v2142
    %2565 = vmatpush.bf16.msra.mxu0 %v2135
    %2566 = vmatpush.bf16.msra.mxu0 %v2128
    %2567 = vmatpush.bf16.msra.mxu0 %v2121
    %2568 = vmatpush.bf16.msra.mxu0 %v2114
    %2569 = vmatpush.bf16.msra.mxu0 %v2107
    %2570 = vmatpush.bf16.msra.mxu0 %v2100
    %2571 = vmatmul.bf16.gmra.mxu0 %v1272
    %v2572 = vpop.f32.mrf.mxu0
    %v2573 = vadd.f32 %v2560, %v2572
    %v2574 = vpop.f32.mrf.mxu0
    %2575 = vdwg.mxu0
    %2576 = vmatpush.bf16.msra.mxu0 %v2205
    %2577 = vmatpush.bf16.msra.mxu0 %v2198
    %2578 = vmatpush.bf16.msra.mxu0 %v2191
    %2579 = vmatpush.bf16.msra.mxu0 %v2184
    %2580 = vmatpush.bf16.msra.mxu0 %v2177
    %2581 = vmatpush.bf16.msra.mxu0 %v2170
    %2582 = vmatpush.bf16.msra.mxu0 %v2163
    %2583 = vmatpush.bf16.msra.mxu0 %v2156
    %2584 = vmatmul.bf16.gmra.mxu0 %v1273
    %v2585 = vpop.f32.mrf.mxu0
    %v2586 = vadd.f32 %v2573, %v2585
    %v2587 = vpop.f32.mrf.mxu0
    %2588 = vdwg.mxu0
    %2589 = vmatpush.bf16.msra.mxu0 0
    %2590 = vmatpush.bf16.msra.mxu0 0
    %2591 = vmatpush.bf16.msra.mxu0 0
    %2592 = vmatpush.bf16.msra.mxu0 0
    %2593 = vmatpush.bf16.msra.mxu0 0
    %2594 = vmatpush.bf16.msra.mxu0 0
    %2595 = vmatpush.bf16.msra.mxu0 0
    %2596 = vmatpush.bf16.msra.mxu0 %v2212
    %2597 = vmatmul.bf16.gmra.mxu0 %v2392
    %v2598 = vpop.f32.mrf.mxu0
    %v2599 = vadd.f32 %v2586, %v2598
    %v2600 = vpop.f32.mrf.mxu0
    %2601 = vdwg.mxu0
    %2602 = vmatpush.bf16.msra.mxu0 %v2094
    %2603 = vmatpush.bf16.msra.mxu0 %v2087
    %2604 = vmatpush.bf16.msra.mxu0 %v2080
    %2605 = vmatpush.bf16.msra.mxu0 %v2073
    %2606 = vmatpush.bf16.msra.mxu0 %v2066
    %2607 = vmatpush.bf16.msra.mxu0 %v2059
    %2608 = vmatpush.bf16.msra.mxu0 %v2052
    %2609 = vmatpush.bf16.msra.mxu0 %v2045
    %2610 = vmatmul.bf16.gmra.mxu0 %v1271
    %v2611 = vpop.f32.mrf.mxu0
    %v2612 = vadd.f32 %v1481, %v2611
    %v2613 = vpop.f32.mrf.mxu0
    %2614 = vdwg.mxu0
    %2615 = vmatpush.bf16.msra.mxu0 %v2150
    %2616 = vmatpush.bf16.msra.mxu0 %v2143
    %2617 = vmatpush.bf16.msra.mxu0 %v2136
    %2618 = vmatpush.bf16.msra.mxu0 %v2129
    %2619 = vmatpush.bf16.msra.mxu0 %v2122
    %2620 = vmatpush.bf16.msra.mxu0 %v2115
    %2621 = vmatpush.bf16.msra.mxu0 %v2108
    %2622 = vmatpush.bf16.msra.mxu0 %v2101
    %2623 = vmatmul.bf16.gmra.mxu0 %v1272
    %v2624 = vpop.f32.mrf.mxu0
    %v2625 = vadd.f32 %v2612, %v2624
    %v2626 = vpop.f32.mrf.mxu0
    %2627 = vdwg.mxu0
    %2628 = vmatpush.bf16.msra.mxu0 %v2206
    %2629 = vmatpush.bf16.msra.mxu0 %v2199
    %2630 = vmatpush.bf16.msra.mxu0 %v2192
    %2631 = vmatpush.bf16.msra.mxu0 %v2185
    %2632 = vmatpush.bf16.msra.mxu0 %v2178
    %2633 = vmatpush.bf16.msra.mxu0 %v2171
    %2634 = vmatpush.bf16.msra.mxu0 %v2164
    %2635 = vmatpush.bf16.msra.mxu0 %v2157
    %2636 = vmatmul.bf16.gmra.mxu0 %v1273
    %v2637 = vpop.f32.mrf.mxu0
    %v2638 = vadd.f32 %v2625, %v2637
    %v2639 = vpop.f32.mrf.mxu0
    %2640 = vdwg.mxu0
    %2641 = vmatpush.bf16.msra.mxu0 0
    %2642 = vmatpush.bf16.msra.mxu0 0
    %2643 = vmatpush.bf16.msra.mxu0 0
    %2644 = vmatpush.bf16.msra.mxu0 0
    %2645 = vmatpush.bf16.msra.mxu0 0
    %2646 = vmatpush.bf16.msra.mxu0 0
    %2647 = vmatpush.bf16.msra.mxu0 0
    %2648 = vmatpush.bf16.msra.mxu0 %v2213
    %2649 = vmatmul.bf16.gmra.mxu0 %v2392
    %v2650 = vpop.f32.mrf.mxu0
    %v2651 = vadd.f32 %v2638, %v2650
    %v2652 = vpop.f32.mrf.mxu0
    %2653 = vdwg.mxu0
    %2654 = vmatpush.bf16.msra.mxu0 %v2095
    %2655 = vmatpush.bf16.msra.mxu0 %v2088
    %2656 = vmatpush.bf16.msra.mxu0 %v2081
    %2657 = vmatpush.bf16.msra.mxu0 %v2074
    %2658 = vmatpush.bf16.msra.mxu0 %v2067
    %2659 = vmatpush.bf16.msra.mxu0 %v2060
    %2660 = vmatpush.bf16.msra.mxu0 %v2053
    %2661 = vmatpush.bf16.msra.mxu0 %v2046
    %2662 = vmatmul.bf16.gmra.mxu0 %v1271
    %v2663 = vpop.f32.mrf.mxu0
    %v2664 = vadd.f32 %v1482, %v2663
    %v2665 = vpop.f32.mrf.mxu0
    %2666 = vdwg.mxu0
    %2667 = vmatpush.bf16.msra.mxu0 %v2151
    %2668 = vmatpush.bf16.msra.mxu0 %v2144
    %2669 = vmatpush.bf16.msra.mxu0 %v2137
    %2670 = vmatpush.bf16.msra.mxu0 %v2130
    %2671 = vmatpush.bf16.msra.mxu0 %v2123
    %2672 = vmatpush.bf16.msra.mxu0 %v2116
    %2673 = vmatpush.bf16.msra.mxu0 %v2109
    %2674 = vmatpush.bf16.msra.mxu0 %v2102
    %2675 = vmatmul.bf16.gmra.mxu0 %v1272
    %v2676 = vpop.f32.mrf.mxu0
    %v2677 = vadd.f32 %v2664, %v2676
    %v2678 = vpop.f32.mrf.mxu0
    %2679 = vdwg.mxu0
    %2680 = vmatpush.bf16.msra.mxu0 %v2207
    %2681 = vmatpush.bf16.msra.mxu0 %v2200
    %2682 = vmatpush.bf16.msra.mxu0 %v2193
    %2683 = vmatpush.bf16.msra.mxu0 %v2186
    %2684 = vmatpush.bf16.msra.mxu0 %v2179
    %2685 = vmatpush.bf16.msra.mxu0 %v2172
    %2686 = vmatpush.bf16.msra.mxu0 %v2165
    %2687 = vmatpush.bf16.msra.mxu0 %v2158
    %2688 = vmatmul.bf16.gmra.mxu0 %v1273
    %v2689 = vpop.f32.mrf.mxu0
    %v2690 = vadd.f32 %v2677, %v2689
    %v2691 = vpop.f32.mrf.mxu0
    %2692 = vdwg.mxu0
    %2693 = vmatpush.bf16.msra.mxu0 0
    %2694 = vmatpush.bf16.msra.mxu0 0
    %2695 = vmatpush.bf16.msra.mxu0 0
    %2696 = vmatpush.bf16.msra.mxu0 0
    %2697 = vmatpush.bf16.msra.mxu0 0
    %2698 = vmatpush.bf16.msra.mxu0 0
    %2699 = vmatpush.bf16.msra.mxu0 0
    %2700 = vmatpush.bf16.msra.mxu0 %v2214
    %2701 = vmatmul.bf16.gmra.mxu0 %v2392
    %v2702 = vpop.f32.mrf.mxu0
    %v2703 = vadd.f32 %v2690, %v2702
    %v2704 = vpop.f32.mrf.mxu0
    %2705 = vdwg.mxu0
    %2706 = vmatpush.bf16.msra.mxu0 %v2096
    %2707 = vmatpush.bf16.msra.mxu0 %v2089
    %2708 = vmatpush.bf16.msra.mxu0 %v2082
    %2709 = vmatpush.bf16.msra.mxu0 %v2075
    %2710 = vmatpush.bf16.msra.mxu0 %v2068
    %2711 = vmatpush.bf16.msra.mxu0 %v2061
    %2712 = vmatpush.bf16.msra.mxu0 %v2054
    %2713 = vmatpush.bf16.msra.mxu0 %v2047
    %2714 = vmatmul.bf16.gmra.mxu0 %v1271
    %v2715 = vpop.f32.mrf.mxu0
    %v2716 = vadd.f32 %v1483, %v2715
    %v2717 = vpop.f32.mrf.mxu0
    %2718 = vdwg.mxu0
    %2719 = vmatpush.bf16.msra.mxu0 %v2152
    %2720 = vmatpush.bf16.msra.mxu0 %v2145
    %2721 = vmatpush.bf16.msra.mxu0 %v2138
    %2722 = vmatpush.bf16.msra.mxu0 %v2131
    %2723 = vmatpush.bf16.msra.mxu0 %v2124
    %2724 = vmatpush.bf16.msra.mxu0 %v2117
    %2725 = vmatpush.bf16.msra.mxu0 %v2110
    %2726 = vmatpush.bf16.msra.mxu0 %v2103
    %2727 = vmatmul.bf16.gmra.mxu0 %v1272
    %v2728 = vpop.f32.mrf.mxu0
    %v2729 = vadd.f32 %v2716, %v2728
    %v2730 = vpop.f32.mrf.mxu0
    %2731 = vdwg.mxu0
    %2732 = vmatpush.bf16.msra.mxu0 %v2208
    %2733 = vmatpush.bf16.msra.mxu0 %v2201
    %2734 = vmatpush.bf16.msra.mxu0 %v2194
    %2735 = vmatpush.bf16.msra.mxu0 %v2187
    %2736 = vmatpush.bf16.msra.mxu0 %v2180
    %2737 = vmatpush.bf16.msra.mxu0 %v2173
    %2738 = vmatpush.bf16.msra.mxu0 %v2166
    %2739 = vmatpush.bf16.msra.mxu0 %v2159
    %2740 = vmatmul.bf16.gmra.mxu0 %v1273
    %v2741 = vpop.f32.mrf.mxu0
    %v2742 = vadd.f32 %v2729, %v2741
    %v2743 = vpop.f32.mrf.mxu0
    %2744 = vdwg.mxu0
    %2745 = vmatpush.bf16.msra.mxu0 0
    %2746 = vmatpush.bf16.msra.mxu0 0
    %2747 = vmatpush.bf16.msra.mxu0 0
    %2748 = vmatpush.bf16.msra.mxu0 0
    %2749 = vmatpush.bf16.msra.mxu0 0
    %2750 = vmatpush.bf16.msra.mxu0 0
    %2751 = vmatpush.bf16.msra.mxu0 0
    %2752 = vmatpush.bf16.msra.mxu0 %v2215
    %2753 = vmatmul.bf16.gmra.mxu0 %v2392
    %v2754 = vpop.f32.mrf.mxu0
    %v2755 = vadd.f32 %v2742, %v2754
    %v2756 = vpop.f32.mrf.mxu0
    %2757 = vdwg.mxu0
    %v2758 = vxor.u32 %v2443, 2147483648
    %v2759 = vxor.u32 %v2495, 2147483648
    %v2760 = vxor.u32 %v2547, 2147483648
    %v2761 = vxor.u32 %v2599, 2147483648
    %v2762 = vxor.u32 %v2651, 2147483648
    %v2763 = vxor.u32 %v2703, 2147483648
    %v2764 = vxor.u32 %v2755, 2147483648
    %v2765 = vmul.f32 %v2758, 1.442695
    %v2766 = vpow.pop %v2765
    %v2767 = vmul.f32 %v2759, 1.442695
    %v2768 = vpow.pop %v2767
    %v2769 = vmul.f32 %v2760, 1.442695
    %v2770 = vpow.pop %v2769
    %v2771 = vmul.f32 %v2761, 1.442695
    %v2772 = vpow.pop %v2771
    %v2773 = vmul.f32 %v2762, 1.442695
    %v2774 = vpow.pop %v2773
    %v2775 = vmul.f32 %v2763, 1.442695
    %v2776 = vpow.pop %v2775
    %v2777 = vmul.f32 %v2764, 1.442695
    %v2778 = vpow.pop %v2777
    %v2779 = vadd.f32 %v2766, 1.0
    %v2780 = vadd.f32 %v2768, 1.0
    %v2781 = vadd.f32 %v2770, 1.0
    %v2782 = vadd.f32 %v2772, 1.0
    %v2783 = vadd.f32 %v2774, 1.0
    %v2784 = vadd.f32 %v2776, 1.0
    %v2785 = vadd.f32 %v2778, 1.0
    %v2786 = vrcp.pop %v2779
    %v2787 = vmul.f32 %v2779, %v2786
    %v2788 = vsub.f32 1.0, %v2787
    %v2789 = vmul.f32 %v2786, %v2788
    %v2790 = vadd.f32 %v2786, %v2789
    %vm2791 = vweird.f32 %v2779
    %vm2792 = vweird.f32 %v2786
    %vm2793 = vmor %vm2791, %vm2792
    %v2794 = vsel %vm2793, %v2786, %v2790
    %v2795 = vand.u32 2147483647, %v2779
    %vm2796 = vcmp.eq.f32.partialorder %v2795, 8.507059e+37
    %v2797 = vand.u32 %v2779, 2147483648
    %v2798 = vor.u32 1.1754944e-38, %v2797
    %v2799 = vsel %vm2796, %v2798, %v2794
    %v2800 = vmul.f32 1.0, %v2799
    %v2801 = vrcp.pop %v2780
    %v2802 = vmul.f32 %v2780, %v2801
    %v2803 = vsub.f32 1.0, %v2802
    %v2804 = vmul.f32 %v2801, %v2803
    %v2805 = vadd.f32 %v2801, %v2804
    %vm2806 = vweird.f32 %v2780
    %vm2807 = vweird.f32 %v2801
    %vm2808 = vmor %vm2806, %vm2807
    %v2809 = vsel %vm2808, %v2801, %v2805
    %v2810 = vand.u32 2147483647, %v2780
    %vm2811 = vcmp.eq.f32.partialorder %v2810, 8.507059e+37
    %v2812 = vand.u32 %v2780, 2147483648
    %v2813 = vor.u32 1.1754944e-38, %v2812
    %v2814 = vsel %vm2811, %v2813, %v2809
    %v2815 = vmul.f32 1.0, %v2814
    %v2816 = vrcp.pop %v2781
    %v2817 = vmul.f32 %v2781, %v2816
    %v2818 = vsub.f32 1.0, %v2817
    %v2819 = vmul.f32 %v2816, %v2818
    %v2820 = vadd.f32 %v2816, %v2819
    %vm2821 = vweird.f32 %v2781
    %vm2822 = vweird.f32 %v2816
    %vm2823 = vmor %vm2821, %vm2822
    %v2824 = vsel %vm2823, %v2816, %v2820
    %v2825 = vand.u32 2147483647, %v2781
    %vm2826 = vcmp.eq.f32.partialorder %v2825, 8.507059e+37
    %v2827 = vand.u32 %v2781, 2147483648
    %v2828 = vor.u32 1.1754944e-38, %v2827
    %v2829 = vsel %vm2826, %v2828, %v2824
    %v2830 = vmul.f32 1.0, %v2829
    %v2831 = vrcp.pop %v2782
    %v2832 = vmul.f32 %v2782, %v2831
    %v2833 = vsub.f32 1.0, %v2832
    %v2834 = vmul.f32 %v2831, %v2833
    %v2835 = vadd.f32 %v2831, %v2834
    %vm2836 = vweird.f32 %v2782
    %vm2837 = vweird.f32 %v2831
    %vm2838 = vmor %vm2836, %vm2837
    %v2839 = vsel %vm2838, %v2831, %v2835
    %v2840 = vand.u32 2147483647, %v2782
    %vm2841 = vcmp.eq.f32.partialorder %v2840, 8.507059e+37
    %v2842 = vand.u32 %v2782, 2147483648
    %v2843 = vor.u32 1.1754944e-38, %v2842
    %v2844 = vsel %vm2841, %v2843, %v2839
    %v2845 = vmul.f32 1.0, %v2844
    %v2846 = vrcp.pop %v2783
    %v2847 = vmul.f32 %v2783, %v2846
    %v2848 = vsub.f32 1.0, %v2847
    %v2849 = vmul.f32 %v2846, %v2848
    %v2850 = vadd.f32 %v2846, %v2849
    %vm2851 = vweird.f32 %v2783
    %vm2852 = vweird.f32 %v2846
    %vm2853 = vmor %vm2851, %vm2852
    %v2854 = vsel %vm2853, %v2846, %v2850
    %v2855 = vand.u32 2147483647, %v2783
    %vm2856 = vcmp.eq.f32.partialorder %v2855, 8.507059e+37
    %v2857 = vand.u32 %v2783, 2147483648
    %v2858 = vor.u32 1.1754944e-38, %v2857
    %v2859 = vsel %vm2856, %v2858, %v2854
    %v2860 = vmul.f32 1.0, %v2859
    %v2861 = vrcp.pop %v2784
    %v2862 = vmul.f32 %v2784, %v2861
    %v2863 = vsub.f32 1.0, %v2862
    %v2864 = vmul.f32 %v2861, %v2863
    %v2865 = vadd.f32 %v2861, %v2864
    %vm2866 = vweird.f32 %v2784
    %vm2867 = vweird.f32 %v2861
    %vm2868 = vmor %vm2866, %vm2867
    %v2869 = vsel %vm2868, %v2861, %v2865
    %v2870 = vand.u32 2147483647, %v2784
    %vm2871 = vcmp.eq.f32.partialorder %v2870, 8.507059e+37
    %v2872 = vand.u32 %v2784, 2147483648
    %v2873 = vor.u32 1.1754944e-38, %v2872
    %v2874 = vsel %vm2871, %v2873, %v2869
    %v2875 = vmul.f32 1.0, %v2874
    %v2876 = vrcp.pop %v2785
    %v2877 = vmul.f32 %v2785, %v2876
    %v2878 = vsub.f32 1.0, %v2877
    %v2879 = vmul.f32 %v2876, %v2878
    %v2880 = vadd.f32 %v2876, %v2879
    %vm2881 = vweird.f32 %v2785
    %vm2882 = vweird.f32 %v2876
    %vm2883 = vmor %vm2881, %vm2882
    %v2884 = vsel %vm2883, %v2876, %v2880
    %v2885 = vand.u32 2147483647, %v2785
    %vm2886 = vcmp.eq.f32.partialorder %v2885, 8.507059e+37
    %v2887 = vand.u32 %v2785, 2147483648
    %v2888 = vor.u32 1.1754944e-38, %v2887
    %v2889 = vsel %vm2886, %v2888, %v2884
    %v2890 = vmul.f32 1.0, %v2889
    %v2898 = vrot.slane %v2815, 6
    %v2899 = vrot.slane %v2830, 4
    %v2900 = vrot.slane %v2845, 2
    %v2901 = vrot.slane %v2875, 6
    %v2902 = vrot.slane %v2890, 4
    %v2903 = vsel %vm1000, %v2800, %v2898
    %vm2904 = vcmask 1045508
    %v2905 = vsel %vm2904, %v2899, %v2900
    %vm2906 = vcmask 1043456
    %v2907 = vsel %vm2906, %v2903, %v2905
    %v2908 = vsel %vm1000, %v2860, %v2901
    %v2909 = vsel %vm2906, %v2908, %v2902
    %2912 = vst [vmem:[#allocation2] sm:$0xff] %v2907
    %2913 = vst [vmem:[#allocation2 + $0x8] sm:$0x3f] %v2909
    %v2914 = vld [vmem:[%s11] sm:$0xff]
    %v2915 = vld [vmem:[%s11 + $0x8] sm:$0x3f]
    %v2916 = vsub.f32 0.0, %v2443
    %v2917 = vsub.f32 0.0, %v2495
    %v2918 = vsub.f32 0.0, %v2547
    %v2919 = vsub.f32 0.0, %v2599
    %v2920 = vsub.f32 0.0, %v2651
    %v2921 = vsub.f32 0.0, %v2703
    %v2922 = vsub.f32 0.0, %v2755
    %v2923 = vmax.f32 %v2916, 0.0
    %v2924 = vmax.f32 %v2917, 0.0
    %v2925 = vmax.f32 %v2918, 0.0
    %v2926 = vmax.f32 %v2919, 0.0
    %v2927 = vmax.f32 %v2920, 0.0
    %v2928 = vmax.f32 %v2921, 0.0
    %v2929 = vmax.f32 %v2922, 0.0
    %v2930 = vand.u32 2147483647, %v2916
    %v2931 = vand.u32 2147483647, %v2917
    %v2932 = vand.u32 2147483647, %v2918
    %v2933 = vand.u32 2147483647, %v2919
    %v2934 = vand.u32 2147483647, %v2920
    %v2935 = vand.u32 2147483647, %v2921
    %v2936 = vand.u32 2147483647, %v2922
    %v2937 = vsub.f32 0.0, %v2930
    %v2938 = vsub.f32 0.0, %v2931
    %v2939 = vsub.f32 0.0, %v2932
    %v2940 = vsub.f32 0.0, %v2933
    %v2941 = vsub.f32 0.0, %v2934
    %v2942 = vsub.f32 0.0, %v2935
    %v2943 = vsub.f32 0.0, %v2936
    %v2944 = vmul.f32 %v2937, 1.442695
    %v2945 = vpow.pop %v2944
    %v2946 = vmul.f32 %v2938, 1.442695
    %v2947 = vpow.pop %v2946
    %v2948 = vmul.f32 %v2939, 1.442695
    %v2949 = vpow.pop %v2948
    %v2950 = vmul.f32 %v2940, 1.442695
    %v2951 = vpow.pop %v2950
    %v2952 = vmul.f32 %v2941, 1.442695
    %v2953 = vpow.pop %v2952
    %v2954 = vmul.f32 %v2942, 1.442695
    %v2955 = vpow.pop %v2954
    %v2956 = vmul.f32 %v2943, 1.442695
    %v2957 = vpow.pop %v2956
    %v2958 = vadd.f32 %v2945, 1.0
    %v2959 = vadd.f32 %v2947, 1.0
    %v2960 = vadd.f32 %v2949, 1.0
    %v2961 = vadd.f32 %v2951, 1.0
    %v2962 = vadd.f32 %v2953, 1.0
    %v2963 = vadd.f32 %v2955, 1.0
    %v2964 = vadd.f32 %v2957, 1.0
    %v2965 = vlog2.pop %v2958
    %v2966 = vmul.f32 %v2965, 0.6931472
    %v2967 = vlog2.pop %v2959
    %v2968 = vmul.f32 %v2967, 0.6931472
    %v2969 = vlog2.pop %v2960
    %v2970 = vmul.f32 %v2969, 0.6931472
    %v2971 = vlog2.pop %v2961
    %v2972 = vmul.f32 %v2971, 0.6931472
    %v2973 = vlog2.pop %v2962
    %v2974 = vmul.f32 %v2973, 0.6931472
    %v2975 = vlog2.pop %v2963
    %v2976 = vmul.f32 %v2975, 0.6931472
    %v2977 = vlog2.pop %v2964
    %v2978 = vmul.f32 %v2977, 0.6931472
    %v2979 = vadd.f32 %v2923, %v2966
    %v2980 = vadd.f32 %v2924, %v2968
    %v2981 = vadd.f32 %v2925, %v2970
    %v2982 = vadd.f32 %v2926, %v2972
    %v2983 = vadd.f32 %v2927, %v2974
    %v2984 = vadd.f32 %v2928, %v2976
    %v2985 = vadd.f32 %v2929, %v2978
    %v2986 = vsub.f32 0.0, %v2979
    %v2987 = vsub.f32 0.0, %v2980
    %v2988 = vsub.f32 0.0, %v2981
    %v2989 = vsub.f32 0.0, %v2982
    %v2990 = vsub.f32 0.0, %v2983
    %v2991 = vsub.f32 0.0, %v2984
    %v2992 = vsub.f32 0.0, %v2985
    %v2993 = vmax.f32 %v2986, -100.0
    %v2994 = vmax.f32 %v2987, -100.0
    %v2995 = vmax.f32 %v2988, -100.0
    %v2996 = vmax.f32 %v2989, -100.0
    %v2997 = vmax.f32 %v2990, -100.0
    %v2998 = vmax.f32 %v2991, -100.0
    %v2999 = vmax.f32 %v2992, -100.0
    %v3000 = vmax.f32 %v2443, 0.0
    %v3001 = vmax.f32 %v2495, 0.0
    %v3002 = vmax.f32 %v2547, 0.0
    %v3003 = vmax.f32 %v2599, 0.0
    %v3004 = vmax.f32 %v2651, 0.0
    %v3005 = vmax.f32 %v2703, 0.0
    %v3006 = vmax.f32 %v2755, 0.0
    %v3007 = vand.u32 2147483647, %v2443
    %v3008 = vand.u32 2147483647, %v2495
    %v3009 = vand.u32 2147483647, %v2547
    %v3010 = vand.u32 2147483647, %v2599
    %v3011 = vand.u32 2147483647, %v2651
    %v3012 = vand.u32 2147483647, %v2703
    %v3013 = vand.u32 2147483647, %v2755
    %v3014 = vsub.f32 0.0, %v3007
    %v3015 = vsub.f32 0.0, %v3008
    %v3016 = vsub.f32 0.0, %v3009
    %v3017 = vsub.f32 0.0, %v3010
    %v3018 = vsub.f32 0.0, %v3011
    %v3019 = vsub.f32 0.0, %v3012
    %v3020 = vsub.f32 0.0, %v3013
    %v3021 = vmul.f32 %v3014, 1.442695
    %v3022 = vpow.pop %v3021
    %v3023 = vmul.f32 %v3015, 1.442695
    %v3024 = vpow.pop %v3023
    %v3025 = vmul.f32 %v3016, 1.442695
    %v3026 = vpow.pop %v3025
    %v3027 = vmul.f32 %v3017, 1.442695
    %v3028 = vpow.pop %v3027
    %v3029 = vmul.f32 %v3018, 1.442695
    %v3030 = vpow.pop %v3029
    %v3031 = vmul.f32 %v3019, 1.442695
    %v3032 = vpow.pop %v3031
    %v3033 = vmul.f32 %v3020, 1.442695
    %v3034 = vpow.pop %v3033
    %v3035 = vadd.f32 %v3022, 1.0
    %v3036 = vadd.f32 %v3024, 1.0
    %v3037 = vadd.f32 %v3026, 1.0
    %v3038 = vadd.f32 %v3028, 1.0
    %v3039 = vadd.f32 %v3030, 1.0
    %v3040 = vadd.f32 %v3032, 1.0
    %v3041 = vadd.f32 %v3034, 1.0
    %v3042 = vlog2.pop %v3035
    %v3043 = vmul.f32 %v3042, 0.6931472
    %v3044 = vlog2.pop %v3036
    %v3045 = vmul.f32 %v3044, 0.6931472
    %v3046 = vlog2.pop %v3037
    %v3047 = vmul.f32 %v3046, 0.6931472
    %v3048 = vlog2.pop %v3038
    %v3049 = vmul.f32 %v3048, 0.6931472
    %v3050 = vlog2.pop %v3039
    %v3051 = vmul.f32 %v3050, 0.6931472
    %v3052 = vlog2.pop %v3040
    %v3053 = vmul.f32 %v3052, 0.6931472
    %v3054 = vlog2.pop %v3041
    %v3055 = vmul.f32 %v3054, 0.6931472
    %v3056 = vadd.f32 %v3000, %v3043
    %v3057 = vadd.f32 %v3001, %v3045
    %v3058 = vadd.f32 %v3002, %v3047
    %v3059 = vadd.f32 %v3003, %v3049
    %v3060 = vadd.f32 %v3004, %v3051
    %v3061 = vadd.f32 %v3005, %v3053
    %v3062 = vadd.f32 %v3006, %v3055
    %v3063 = vsub.f32 0.0, %v3056
    %v3064 = vsub.f32 0.0, %v3057
    %v3065 = vsub.f32 0.0, %v3058
    %v3066 = vsub.f32 0.0, %v3059
    %v3067 = vsub.f32 0.0, %v3060
    %v3068 = vsub.f32 0.0, %v3061
    %v3069 = vsub.f32 0.0, %v3062
    %v3070 = vmax.f32 %v3063, -100.0
    %v3071 = vmax.f32 %v3064, -100.0
    %v3072 = vmax.f32 %v3065, -100.0
    %v3073 = vmax.f32 %v3066, -100.0
    %v3074 = vmax.f32 %v3067, -100.0
    %v3075 = vmax.f32 %v3068, -100.0
    %v3076 = vmax.f32 %v3069, -100.0
    %v3077 = vlaneseq
    %v3078 = vand.u32 %v3077, 127
    %v3079 = vadd.s32 %v3078, 128
    %v3080 = vadd.s32 %v3078, 256
    %v3081 = vadd.s32 %v3078, 384
    %v3082 = vadd.s32 %v3078, 512
    %v3083 = vadd.s32 %v3078, 640
    %v3084 = vadd.s32 %v3078, 768
    %vm3085 = vcmp.lt.s32.totalorder %v3078, 784
    %vm3086 = vcmp.lt.s32.totalorder %v3079, 784
    %vm3087 = vcmp.lt.s32.totalorder %v3080, 784
    %vm3088 = vcmp.lt.s32.totalorder %v3081, 784
    %vm3089 = vcmp.lt.s32.totalorder %v3082, 784
    %vm3090 = vcmp.lt.s32.totalorder %v3083, 784
    %vm3091 = vcmp.lt.s32.totalorder %v3084, 784
    %v3099 = vrot.slane %v2994, 6
    %v3100 = vrot.slane %v2995, 4
    %v3101 = vrot.slane %v2996, 2
    %v3102 = vrot.slane %v2998, 6
    %v3103 = vrot.slane %v2999, 4
    %v3104 = vsel %vm1000, %v2993, %v3099
    %v3105 = vsel %vm2904, %v3100, %v3101
    %v3106 = vsel %vm2906, %v3104, %v3105
    %v3107 = vsel %vm1000, %v2997, %v3102
    %v3108 = vsel %vm2906, %v3107, %v3103
    %v3111 = vmul.f32 %v2914, %v3106
    %v3112 = vmul.f32 %v2915, %v3108
    %v3113 = vsub.f32 1.0, %v2914
    %v3114 = vsub.f32 1.0, %v2915
    %v3122 = vrot.slane %v3071, 6
    %v3123 = vrot.slane %v3072, 4
    %v3124 = vrot.slane %v3073, 2
    %v3125 = vrot.slane %v3075, 6
    %v3126 = vrot.slane %v3076, 4
    %v3127 = vsel %vm1000, %v3070, %v3122
    %v3128 = vsel %vm2904, %v3123, %v3124
    %v3129 = vsel %vm2906, %v3127, %v3128
    %v3130 = vsel %vm1000, %v3074, %v3125
    %v3131 = vsel %vm2906, %v3130, %v3126
    %v3134 = vmul.f32 %v3113, %v3129
    %v3135 = vmul.f32 %v3114, %v3131
    %v3136 = vadd.f32 %v3111, %v3134
    %v3137 = vadd.f32 %v3112, %v3135
    %3140 = vst [vmem:[#allocation1] ss:$4 sm:$0xff] %v3136
    %s3141 = scalar_lea.vmem [#allocation1], 32
    %3142 = vst [vmem:[%s3141] ss:$4 sm:$0xff] %v3137
    %v3143 = vld.sshfl [vmem:[#allocation1] sm:$0xff pattern:$0x73625140]
    %v3144 = vld.sshfl [vmem:[#allocation1 + $0x8] sm:$0xff pattern:$0x73625140]
    %v3145 = vld.sshfl [vmem:[#allocation1 + $0x10] sm:$0xff pattern:$0x73625140]
    %v3146 = vld.sshfl [vmem:[#allocation1 + $0x18] sm:$0xff pattern:$0x73625140]
    %v3147 = vld.sshfl [vmem:[#allocation1 + $0x20] sm:$0xff pattern:$0x73625140]
    %v3148 = vld.sshfl [vmem:[#allocation1 + $0x28] sm:$0xff pattern:$0x73625140]
    %v3149 = vld.sshfl [vmem:[#allocation1 + $0x30] sm:$0xff pattern:$0x73625140]
    %v3157 = vsel %vm3085, %v3143, 0.0
    %v3158 = vsel %vm3086, %v3144, 0.0
    %v3159 = vsel %vm3087, %v3145, 0.0
    %v3160 = vsel %vm3088, %v3146, 0.0
    %v3161 = vsel %vm3089, %v3147, 0.0
    %v3162 = vsel %vm3090, %v3148, 0.0
    %v3163 = vsel %vm3091, %v3149, 0.0
    %v3164 = vsel %vm1000, %v3157, 0.0
    %v3165 = vsel %vm1000, %v3158, 0.0
    %v3166 = vadd.f32 %v3164, %v3165
    %v3167 = vsel %vm1000, %v3159, 0.0
    %v3168 = vadd.f32 %v3166, %v3167
    %v3169 = vsel %vm1000, %v3160, 0.0
    %v3170 = vadd.f32 %v3168, %v3169
    %v3171 = vsel %vm1000, %v3161, 0.0
    %v3172 = vadd.f32 %v3170, %v3171
    %v3173 = vsel %vm1000, %v3162, 0.0
    %v3174 = vadd.f32 %v3172, %v3173
    %v3175 = vsel %vm1000, %v3163, 0.0
    %v3176 = vadd.f32 %v3174, %v3175
    %3177 = vadd.xlane.f32.xlu0 %v3176
    %v3178 = vpop.xlane.xlu0 %3177
    %v3179 = vrot.slane %v3178, 4
    %v3180 = vadd.f32 %v3178, %v3179
    %v3181 = vrot.slane %v3180, 2
    %v3182 = vadd.f32 %v3180, %v3181
    %v3183 = vrot.slane %v3182, 1
    %v3184 = vadd.f32 %v3182, %v3183
    %s3185 = vtos %v3184
    %s3186 = ssub.f32 0.0, %s3185
    %s3187 = sadd.f32 %s3186, %s1011
    %v3188 = vstv %s3187
    %vm3189 = vcmask 0
    %3190 = vst.msk [vmem:[#allocation4] sm:$0x1] %vm3189, %v3188
    // Predicated region
    $region50: #{m1_ff_forward.3} parent=1 // pred_check
      _
    $region51: #{m1_ff_forward.3} parent=1 // pred_check_branch
      %3192 = sbr.rel (0) target = $region53
    $region52: #{m1_ff_forward.3} parent=1 // pred_region
      %3194 = vsyncadd [#allocation3], 0
      %s3196 = sshll.u32 [#allocation2], 4
      %s3197 = int_to_ptr.vmem [resolvable:$true] %s3196
      %s3198 = sshll.u32 %s12, 4
      %s3199 = int_to_ptr.hbm [resolvable:$true] %s3198
      %3201 = dma.vmem_to_hbm [thread:$0]  %s3197, 224, %s3199, [#allocation3]
    $region53: #{m1_ff_forward.3} parent=1 // pred_fallthru
      _
    // Predicated region
    $region54: #{m1_ff_forward.3} parent=1 // pred_check
      _
    $region55: #{m1_ff_forward.3} parent=1 // pred_check_branch
      %3203 = sbr.rel (0) target = $region57
    $region56: #{m1_ff_forward.3} parent=1 // pred_region
      %3205 = vsyncadd [#allocation5], 0
      %s3207 = sshll.u32 [#allocation4], 4
      %s3208 = int_to_ptr.vmem [resolvable:$true] %s3207
      %s3209 = sshll.u32 %s13, 4
      %s3210 = int_to_ptr.hbm [resolvable:$true] %s3209
      %3212 = dma.vmem_to_hbm [thread:$0]  %s3208, 16, %s3210, [#allocation5]
    $region57: #{m1_ff_forward.3} parent=1 // pred_fallthru
      _
    // Predicated region
    $region58: #{m1_ff_forward.3} parent=1 // pred_check
      _
    $region59: #{m1_ff_forward.3} parent=1 // pred_check_branch
      %3214 = sbr.rel (0) target = $region61
    $region60: #{m1_ff_forward.3} parent=1 // pred_region
      %3216 = dma.done [#allocation3], 224
    $region61: #{m1_ff_forward.3} parent=1 // pred_fallthru
      _
    // Predicated region
    $region62: #{m1_ff_forward.3} parent=1 // pred_check
      _
    $region63: #{m1_ff_forward.3} parent=1 // pred_check_branch
      %3218 = sbr.rel (0) target = $region65
    $region64: #{m1_ff_forward.3} parent=1 // pred_region
      %3220 = dma.done [#allocation5], 16
    $region65: #{m1_ff_forward.3} parent=1 // pred_fallthru
      _
    %3221 = vsyncpa [#allocation3], 1
    %3222 = vsyncpa [#allocation5], 1

</llo_original>
